<compile_context>
chip_gen: v6e
topology: v6e:2x2x1
jax: 0.10.0
libtpu: 0.0.40
codegen_flags: <defaults>
</compile_context>

<pallas_src>
import functools

import jax
import jax.numpy as jnp
from jax import lax
from jax.experimental import pallas as pl
from jax.experimental.pallas import tpu as pltpu


def _round_up(x, m):
    return (x + m - 1) // m * m


def _pad_gates_last(w, h, h_pad):
    """Pad each of the 4 gate blocks along the last axis from h to h_pad columns."""
    if h == h_pad:
        return w
    parts = jnp.split(w, 4, axis=-1)
    widths = [(0, 0)] * (w.ndim - 1) + [(0, h_pad - h)]
    return jnp.concatenate([jnp.pad(p, widths) for p in parts], axis=-1)


def _lstm_cls_kernel(xe_ref, w_ih_ref, w_hh_ref, b_ref, w_cls_ref, b_cls_ref,
                     out_ref, h_sc, c_sc, *, hidden, tb, tt, seq_len, mask_tail):
    ti = pl.program_id(1)                   # time-block index (serial "arbitrary" axis)
    last_t = pl.num_programs(1) - 1

    @pl.when(ti == 0)
    def _():
        # Zero initial state.  Exactness of the zero padding relies on this.
        h_sc[...] = jnp.zeros_like(h_sc)
        c_sc[...] = jnp.zeros_like(c_sc)

    Hp = hidden
    w_ih = w_ih_ref[...]                     # (Ep, 4Hp) bf16, resident
    w_hh = w_hh_ref[...]                     # (Hp, 4Hp) bf16, resident
    bias = jnp.broadcast_to(b_ref[...], (tb, 4 * Hp))   # hoisted f32 broadcast

    def sigmoid_via_tanh(x):
        # sigmoid(x) = 0.5*tanh(0.5*x) + 0.5 : single EUP pass (vs exp + reciprocal).
        return 0.5 * jnp.tanh(0.5 * x) + 0.5

    def make_step(masked):
        def step(i, carry):
            h, c = carry
            # Input projection: independent of h, so the scheduler can push these MXU
            # ops ahead of the serial h @ W_hh chain within the unrolled window.
            xp = jnp.dot(xe_ref[i], w_ih, preferred_element_type=jnp.float32)
            gates = xp + bias + jnp.dot(h.astype(jnp.bfloat16), w_hh,
                                        preferred_element_type=jnp.float32)
            # Hp is a multiple of 128 -> vreg-aligned gate slices.
            i_g = sigmoid_via_tanh(gates[:, 0 * Hp:1 * Hp])
            f_g = sigmoid_via_tanh(gates[:, 1 * Hp:2 * Hp])
            g_g = jnp.tanh(gates[:, 2 * Hp:3 * Hp])
            o_g = sigmoid_via_tanh(gates[:, 3 * Hp:4 * Hp])
            c_new = f_g * c + i_g * g_g
            h_new = o_g * jnp.tanh(c_new)
            if masked:  # only compiled into the tail time block
                valid = (ti * tt + i) < seq_len
                h_new = jnp.where(valid, h_new, h)
                c_new = jnp.where(valid, c_new, c)
            return h_new, c_new
        return step

    def run(masked):
        h, c = lax.fori_loop(0, tt, make_step(masked), (h_sc[...], c_sc[...]),
                             unroll=min(tt, 8))
        h_sc[...] = h
        c_sc[...] = c

    if mask_tail:
        # Keep the tail compare + selects out of the hot loop for all other blocks.
        @pl.when(ti != last_t)
        def _():
            run(False)

        @pl.when(ti == last_t)
        def _():
            run(True)
    else:
        run(False)

    @pl.when(ti == last_t)
    def _():
        logits = jnp.dot(h_sc[...].astype(jnp.bfloat16), w_cls_ref[...],
                         preferred_element_type=jnp.float32) + b_cls_ref[...]
        out_ref[...] = logits.astype(out_ref.dtype)


def comments_classifier_forward(tokens, params, *, time_block=32, batch_block=128):
    """tokens: int32 (B, T).  Returns logits (B, num_labels) float32."""
    emb_table = params["embedding"]   # (vocab, E), row 0 zeroed (padding_idx=0)
    w_ih = params["w_ih"]             # (E, 4H)
    w_hh = params["w_hh"]             # (H, 4H)
    b = params["b"]                   # (1, 4H)  (= b_ih + b_hh), stays f32
    w_cls = params["w_cls"]           # (H, L)
    b_cls = params["b_cls"]           # (1, L)

    B, T = tokens.shape
    E = w_ih.shape[0]
    H = w_hh.shape[0]
    L = w_cls.shape[1]

    # ---- padded sizes: lane-align H/E/L (128), sublane-align B (8), block T ----
    Hp = _round_up(H, 128)
    Ep = _round_up(E, 128)
    Lp = _round_up(L, 128)
    B8 = _round_up(B, 8)

    TB = min(B8, batch_block)
    # v7x megacore: if the whole batch fits one block but has >=16 rows, split it so
    # the "parallel" batch axis has >= 2 blocks and both TensorCores get work.
    if B8 >= 16 and B8 // TB < 2:
        TB = _round_up((B8 + 1) // 2, 8)
    Bp = _round_up(B8, TB)

    TT = min(T, time_block)
    # Keep the double-buffered bf16 x_emb slab within a modest budget so the pipeline
    # stays double-buffered on every generation (v7x: 64 MiB/TC physical VMEM).
    slab_budget = 8 << 20
    while TT > 8 and 2 * TT * TB * Ep * 2 > slab_budget:
        TT //= 2
    Tp = _round_up(T, TT)
    mask_tail = Tp != T

    # ---- pad parameters (zero padding is exact because h/c start at 0) ----
    w_ih_p = _pad_gates_last(w_ih, H, Hp)                      # (E, 4Hp)
    w_ih_p = jnp.pad(w_ih_p, ((0, Ep - E), (0, 0)))            # (Ep, 4Hp)
    b_p = _pad_gates_last(b, H, Hp)                            # (1, 4Hp) f32
    w_hh_p = _pad_gates_last(w_hh, H, Hp)
    w_hh_p = jnp.pad(w_hh_p, ((0, Hp - H), (0, 0)))            # (Hp, 4Hp)
    w_cls_p = jnp.pad(w_cls, ((0, Hp - H), (0, Lp - L)))       # (Hp, Lp)
    b_cls_p = jnp.pad(b_cls, ((0, 0), (0, Lp - L)))            # (1, Lp) f32

    # ---- XLA glue: only the embedding gather (data-dependent) stays outside.  The
    # input projection moved in-kernel, so only the small bf16 x_emb stream hits HBM.
    x_emb = emb_table[tokens.T]                                # (T, B, E) f32
    x_emb = jnp.pad(x_emb, ((0, Tp - T), (0, Bp - B), (0, Ep - E)))
    x_emb = x_emb.astype(jnp.bfloat16)                         # (Tp, Bp, Ep) bf16

    w_ih_bf = w_ih_p.astype(jnp.bfloat16)
    w_hh_bf = w_hh_p.astype(jnp.bfloat16)
    w_cls_bf = w_cls_p.astype(jnp.bfloat16)

    # ---- explicit VMEM budget: 2x bf16 slab + single-buffered weights + out + scratch
    est = (2 * TT * TB * Ep * 2                      # x_emb slab (bf16, double-buffered)
           + (Ep + Hp) * 4 * Hp * 2 + Hp * Lp * 2    # resident bf16 weights
           + (4 * Hp + Lp) * 4                       # f32 biases
           + 2 * TB * Lp * 4                         # output block
           + 2 * TB * Hp * 4)                        # h/c scratch
    vmem_limit = int(min(max(est * 5 // 4 + (4 << 20), 32 << 20), 64 << 20))

    kernel = functools.partial(_lstm_cls_kernel, hidden=Hp, tb=TB, tt=TT,
                               seq_len=T, mask_tail=mask_tail)

    def _call(single_buffer_weights):
        resident = dict(pipeline_mode=pl.Buffered(1)) if single_buffer_weights else {}
        grid_spec = pltpu.PrefetchScalarGridSpec(
            num_scalar_prefetch=0,
            grid=(Bp // TB, Tp // TT),
            in_specs=[
                pl.BlockSpec((TT, TB, Ep), lambda bi, ti: (ti, bi, 0)),          # x_emb
                pl.BlockSpec((Ep, 4 * Hp), lambda bi, ti: (0, 0), **resident),   # w_ih
                pl.BlockSpec((Hp, 4 * Hp), lambda bi, ti: (0, 0), **resident),   # w_hh
                pl.BlockSpec((1, 4 * Hp), lambda bi, ti: (0, 0), **resident),    # b (f32)
                pl.BlockSpec((Hp, Lp), lambda bi, ti: (0, 0), **resident),       # w_cls
                pl.BlockSpec((1, Lp), lambda bi, ti: (0, 0), **resident),        # b_cls
            ],
            out_specs=pl.BlockSpec((TB, Lp), lambda bi, ti: (bi, 0)),
            scratch_shapes=[
                pltpu.VMEM((TB, Hp), jnp.float32),   # h state
                pltpu.VMEM((TB, Hp), jnp.float32),   # c state
            ],
        )
        out = pl.pallas_call(
            kernel,
            out_shape=jax.ShapeDtypeStruct((Bp, Lp), jnp.float32),
            grid_spec=grid_spec,
            compiler_params=pltpu.CompilerParams(
                dimension_semantics=("parallel", "arbitrary"),
                vmem_limit_bytes=vmem_limit,
            ),
        )(x_emb, w_ih_bf, w_hh_bf, b_p, w_cls_bf, b_cls_p)
        return jax.block_until_ready(out)

    try:
        out = _call(True)
    except Exception:
        # Fallback if this jax build rejects single-buffered (Buffered(1)) operands.
        out = _call(False)

    return out[:B, :L]


def init_params(key, vocab_size, emb_size, rnn_hidden_size, num_labels):
    ks = jax.random.split(key, 7)
    scale = 0.1
    emb = scale * jax.random.normal(ks[0], (vocab_size, emb_size), jnp.float32)
    emb = emb.at[0].set(0.0)  # padding_idx=0
    w_ih = scale * jax.random.normal(ks[1], (emb_size, 4 * rnn_hidden_size), jnp.float32)
    w_hh = scale * jax.random.normal(ks[2], (rnn_hidden_size, 4 * rnn_hidden_size), jnp.float32)
    b_ih = scale * jax.random.normal(ks[3], (4 * rnn_hidden_size,), jnp.float32)
    b_hh = scale * jax.random.normal(ks[4], (4 * rnn_hidden_size,), jnp.float32)
    w_cls = scale * jax.random.normal(ks[5], (rnn_hidden_size, num_labels), jnp.float32)
    b_cls = scale * jax.random.normal(ks[6], (num_labels,), jnp.float32)
    return {
        "embedding": emb,
        "w_ih": w_ih,
        "w_hh": w_hh,
        "b": (b_ih + b_hh).reshape(1, -1),
        "w_cls": w_cls,
        "b_cls": b_cls.reshape(1, -1),
    }


def _reference_forward(tokens, params):
    """Pure-JAX f32 reference matching PyTorch LSTM semantics (gate order i,f,g,o)."""
    x = params["embedding"][tokens]          # (B, T, E)
    B, T, _ = x.shape
    H = params["w_hh"].shape[0]
    h = jnp.zeros((B, H), jnp.float32)
    c = jnp.zeros((B, H), jnp.float32)
    for t in range(T):
        gates = x[:, t, :] @ params["w_ih"] + h @ params["w_hh"] + params["b"]
        i = jax.nn.sigmoid(gates[:, 0 * H:1 * H])
        f = jax.nn.sigmoid(gates[:, 1 * H:2 * H])
        g = jnp.tanh(gates[:, 2 * H:3 * H])
        o = jax.nn.sigmoid(gates[:, 3 * H:4 * H])
        c = f * c + i * g
        h = o * jnp.tanh(c)
    return h @ params["w_cls"] + params["b_cls"]


if __name__ == "__main__":
    vocab_size = 100
    emb_size = 32
    rnn_hidden_size = 32
    num_labels = 4
    B, T = 2, 8

    key = jax.random.PRNGKey(0)
    k_tok, k_par = jax.random.split(key)
    tokens = jax.random.randint(k_tok, (B, T), 0, vocab_size, dtype=jnp.int32)
    params = init_params(k_par, vocab_size, emb_size, rnn_hidden_size, num_labels)

    logits = comments_classifier_forward(tokens, params)
    logits = jax.block_until_ready(logits)

    ref = _reference_forward(tokens, params)
    assert logits.shape == (B, num_labels)
    # bf16 matmul operands with f32 accumulation -> slightly looser tolerance vs f32 ref.
    assert jnp.allclose(logits, ref, atol=2e-2, rtol=2e-2), (logits, ref)

    print("KERNEL_OK")
</pallas_src>

<mosaic_0001>
module attributes {stable_mosaic.version = 11 : i64} {
  func.func @_lstm_cls_kernel(%arg0: i32, %arg1: i32, %arg2: memref<8x8x128xbf16, #tpu.memory_space<vmem>>, %arg3: memref<128x512xbf16, #tpu.memory_space<vmem>>, %arg4: memref<128x512xbf16, #tpu.memory_space<vmem>>, %arg5: memref<1x512xf32, #tpu.memory_space<vmem>>, %arg6: memref<128x128xbf16, #tpu.memory_space<vmem>>, %arg7: memref<1x128xf32, #tpu.memory_space<vmem>>, %arg8: memref<8x128xf32, #tpu.memory_space<vmem>>, %arg9: memref<8x128xf32, #tpu.memory_space<vmem>>, %arg10: memref<8x128xf32, #tpu.memory_space<vmem>>) attributes {dimension_semantics = [#tpu.dimension_semantics<parallel>, #tpu.dimension_semantics<arbitrary>], iteration_bounds = array<i64: 1, 1>, scalar_prefetch = 0 : i64, scratch_operands = 2 : i64, tpu.core_type = #tpu.core_type<tc>, window_params = [{transform_indices = @transform_0, window_bounds = array<i64: 8, 8, 128>}, {pipeline_mode = #tpu.pipeline_mode<synchronous>, transform_indices = @transform_1, window_bounds = array<i64: 128, 512>}, {pipeline_mode = #tpu.pipeline_mode<synchronous>, transform_indices = @transform_2, window_bounds = array<i64: 128, 512>}, {pipeline_mode = #tpu.pipeline_mode<synchronous>, transform_indices = @transform_3, window_bounds = array<i64: 1, 512>}, {pipeline_mode = #tpu.pipeline_mode<synchronous>, transform_indices = @transform_4, window_bounds = array<i64: 128, 128>}, {pipeline_mode = #tpu.pipeline_mode<synchronous>, transform_indices = @transform_5, window_bounds = array<i64: 1, 128>}, {transform_indices = @transform_6, window_bounds = array<i64: 8, 128>}]} {
    %c0_i32 = arith.constant 0 : i32
    %0 = arith.cmpi eq, %arg1, %c0_i32 : i32
    %1 = arith.extui %0 : i1 to i32
    %c0_i32_0 = arith.constant 0 : i32
    %2 = arith.cmpi ne, %1, %c0_i32_0 : i32
    scf.if %2 {
      %cst_120 = arith.constant 0.000000e+00 : f32
      %327 = vector.broadcast %cst_120 : f32 to vector<8x128xf32>
      %c0_121 = arith.constant 0 : index
      %c0_122 = arith.constant 0 : index
      %328 = vector.load %arg9[%c0_121, %c0_122] : memref<8x128xf32, #tpu.memory_space<vmem>>, vector<8x128xf32>
      tpu.vector_store %arg9[%c0_121, %c0_122], %327 {strides = array<i32>} : memref<8x128xf32, #tpu.memory_space<vmem>>, vector<8x128xf32>,
      %cst_123 = arith.constant 0.000000e+00 : f32
      %329 = vector.broadcast %cst_123 : f32 to vector<8x128xf32>
      %c0_124 = arith.constant 0 : index
      %c0_125 = arith.constant 0 : index
      %330 = vector.load %arg10[%c0_124, %c0_125] : memref<8x128xf32, #tpu.memory_space<vmem>>, vector<8x128xf32>
      tpu.vector_store %arg10[%c0_124, %c0_125], %329 {strides = array<i32>} : memref<8x128xf32, #tpu.memory_space<vmem>>, vector<8x128xf32>,
    } else {
    }
    %c0 = arith.constant 0 : index
    %c0_1 = arith.constant 0 : index
    %3 = vector.load %arg3[%c0, %c0_1] : memref<128x512xbf16, #tpu.memory_space<vmem>>, vector<128x512xbf16>
    %c0_2 = arith.constant 0 : index
    %c0_3 = arith.constant 0 : index
    %4 = vector.load %arg4[%c0_2, %c0_3] : memref<128x512xbf16, #tpu.memory_space<vmem>>, vector<128x512xbf16>
    %c0_4 = arith.constant 0 : index
    %c0_5 = arith.constant 0 : index
    %5 = vector.load %arg5[%c0_4, %c0_5] : memref<1x512xf32, #tpu.memory_space<vmem>>, vector<1x512xf32>
    %6 = vector.shape_cast %5 : vector<1x512xf32> to vector<1x512xf32>
    %7 = vector.broadcast %6 : vector<1x512xf32> to vector<8x512xf32>
    %c0_6 = arith.constant 0 : index
    %c0_7 = arith.constant 0 : index
    %8 = vector.load %arg9[%c0_6, %c0_7] : memref<8x128xf32, #tpu.memory_space<vmem>>, vector<8x128xf32>
    %c0_8 = arith.constant 0 : index
    %c0_9 = arith.constant 0 : index
    %9 = vector.load %arg10[%c0_8, %c0_9] : memref<8x128xf32, #tpu.memory_space<vmem>>, vector<8x128xf32>
    %c0_i32_10 = arith.constant 0 : i32
    %10 = arith.index_cast %c0_i32_10 : i32 to index
    %c0_11 = arith.constant 0 : index
    %c0_12 = arith.constant 0 : index
    %11 = vector.load %arg2[%10, %c0_11, %c0_12] : memref<8x8x128xbf16, #tpu.memory_space<vmem>>, vector<1x8x128xbf16>
    %12 = vector.shape_cast %11 : vector<1x8x128xbf16> to vector<8x128xbf16>
    %cst = arith.constant dense<0.000000e+00> : vector<8x512xf32>
    %13 = tpu.matmul %12, %3, %cst {dimension_numbers = #tpu.dot_dimension_numbers<[1], [0], [0], [1], [0, 0, 1, 1], [], []>} : vector<8x128xbf16>, vector<128x512xbf16>, vector<8x512xf32> -> vector<8x512xf32>
    %14 = arith.addf %13, %7 : vector<8x512xf32>
    %15 = arith.truncf %8 : vector<8x128xf32> to vector<8x128xbf16>
    %cst_13 = arith.constant dense<0.000000e+00> : vector<8x512xf32>
    %16 = tpu.matmul %15, %4, %cst_13 {dimension_numbers = #tpu.dot_dimension_numbers<[1], [0], [0], [1], [0, 0, 1, 1], [], []>} : vector<8x128xbf16>, vector<128x512xbf16>, vector<8x512xf32> -> vector<8x512xf32>
    %17 = arith.addf %14, %16 : vector<8x512xf32>
    %18 = vector.extract_strided_slice %17 {offsets = [0, 0], sizes = [8, 128], strides = [1, 1]} : vector<8x512xf32> to vector<8x128xf32>
    %cst_14 = arith.constant 5.000000e-01 : f32
    %19 = vector.broadcast %cst_14 : f32 to vector<8x128xf32>
    %20 = arith.mulf %19, %18 : vector<8x128xf32>
    %21 = math.tanh %20 : vector<8x128xf32>
    %cst_15 = arith.constant 5.000000e-01 : f32
    %22 = vector.broadcast %cst_15 : f32 to vector<8x128xf32>
    %23 = arith.mulf %22, %21 : vector<8x128xf32>
    %cst_16 = arith.constant 5.000000e-01 : f32
    %24 = vector.broadcast %cst_16 : f32 to vector<8x128xf32>
    %25 = arith.addf %23, %24 : vector<8x128xf32>
    %26 = vector.extract_strided_slice %17 {offsets = [0, 128], sizes = [8, 128], strides = [1, 1]} : vector<8x512xf32> to vector<8x128xf32>
    %cst_17 = arith.constant 5.000000e-01 : f32
    %27 = vector.broadcast %cst_17 : f32 to vector<8x128xf32>
    %28 = arith.mulf %27, %26 : vector<8x128xf32>
    %29 = math.tanh %28 : vector<8x128xf32>
    %cst_18 = arith.constant 5.000000e-01 : f32
    %30 = vector.broadcast %cst_18 : f32 to vector<8x128xf32>
    %31 = arith.mulf %30, %29 : vector<8x128xf32>
    %cst_19 = arith.constant 5.000000e-01 : f32
    %32 = vector.broadcast %cst_19 : f32 to vector<8x128xf32>
    %33 = arith.addf %31, %32 : vector<8x128xf32>
    %34 = vector.extract_strided_slice %17 {offsets = [0, 256], sizes = [8, 128], strides = [1, 1]} : vector<8x512xf32> to vector<8x128xf32>
    %35 = math.tanh %34 : vector<8x128xf32>
    %36 = vector.extract_strided_slice %17 {offsets = [0, 384], sizes = [8, 128], strides = [1, 1]} : vector<8x512xf32> to vector<8x128xf32>
    %cst_20 = arith.constant 5.000000e-01 : f32
    %37 = vector.broadcast %cst_20 : f32 to vector<8x128xf32>
    %38 = arith.mulf %37, %36 : vector<8x128xf32>
    %39 = math.tanh %38 : vector<8x128xf32>
    %cst_21 = arith.constant 5.000000e-01 : f32
    %40 = vector.broadcast %cst_21 : f32 to vector<8x128xf32>
    %41 = arith.mulf %40, %39 : vector<8x128xf32>
    %cst_22 = arith.constant 5.000000e-01 : f32
    %42 = vector.broadcast %cst_22 : f32 to vector<8x128xf32>
    %43 = arith.addf %41, %42 : vector<8x128xf32>
    %44 = arith.mulf %33, %9 : vector<8x128xf32>
    %45 = arith.mulf %25, %35 : vector<8x128xf32>
    %46 = arith.addf %44, %45 : vector<8x128xf32>
    %47 = math.tanh %46 : vector<8x128xf32>
    %48 = arith.mulf %43, %47 : vector<8x128xf32>
    %c1_i32 = arith.constant 1 : i32
    %49 = arith.index_cast %c1_i32 : i32 to index
    %c0_23 = arith.constant 0 : index
    %c0_24 = arith.constant 0 : index
    %50 = vector.load %arg2[%49, %c0_23, %c0_24] : memref<8x8x128xbf16, #tpu.memory_space<vmem>>, vector<1x8x128xbf16>
    %51 = vector.shape_cast %50 : vector<1x8x128xbf16> to vector<8x128xbf16>
    %cst_25 = arith.constant dense<0.000000e+00> : vector<8x512xf32>
    %52 = tpu.matmul %51, %3, %cst_25 {dimension_numbers = #tpu.dot_dimension_numbers<[1], [0], [0], [1], [0, 0, 1, 1], [], []>} : vector<8x128xbf16>, vector<128x512xbf16>, vector<8x512xf32> -> vector<8x512xf32>
    %53 = arith.addf %52, %7 : vector<8x512xf32>
    %54 = arith.truncf %48 : vector<8x128xf32> to vector<8x128xbf16>
    %cst_26 = arith.constant dense<0.000000e+00> : vector<8x512xf32>
    %55 = tpu.matmul %54, %4, %cst_26 {dimension_numbers = #tpu.dot_dimension_numbers<[1], [0], [0], [1], [0, 0, 1, 1], [], []>} : vector<8x128xbf16>, vector<128x512xbf16>, vector<8x512xf32> -> vector<8x512xf32>
    %56 = arith.addf %53, %55 : vector<8x512xf32>
    %57 = vector.extract_strided_slice %56 {offsets = [0, 0], sizes = [8, 128], strides = [1, 1]} : vector<8x512xf32> to vector<8x128xf32>
    %cst_27 = arith.constant 5.000000e-01 : f32
    %58 = vector.broadcast %cst_27 : f32 to vector<8x128xf32>
    %59 = arith.mulf %58, %57 : vector<8x128xf32>
    %60 = math.tanh %59 : vector<8x128xf32>
    %cst_28 = arith.constant 5.000000e-01 : f32
    %61 = vector.broadcast %cst_28 : f32 to vector<8x128xf32>
    %62 = arith.mulf %61, %60 : vector<8x128xf32>
    %cst_29 = arith.constant 5.000000e-01 : f32
    %63 = vector.broadcast %cst_29 : f32 to vector<8x128xf32>
    %64 = arith.addf %62, %63 : vector<8x128xf32>
    %65 = vector.extract_strided_slice %56 {offsets = [0, 128], sizes = [8, 128], strides = [1, 1]} : vector<8x512xf32> to vector<8x128xf32>
    %cst_30 = arith.constant 5.000000e-01 : f32
    %66 = vector.broadcast %cst_30 : f32 to vector<8x128xf32>
    %67 = arith.mulf %66, %65 : vector<8x128xf32>
    %68 = math.tanh %67 : vector<8x128xf32>
    %cst_31 = arith.constant 5.000000e-01 : f32
    %69 = vector.broadcast %cst_31 : f32 to vector<8x128xf32>
    %70 = arith.mulf %69, %68 : vector<8x128xf32>
    %cst_32 = arith.constant 5.000000e-01 : f32
    %71 = vector.broadcast %cst_32 : f32 to vector<8x128xf32>
    %72 = arith.addf %70, %71 : vector<8x128xf32>
    %73 = vector.extract_strided_slice %56 {offsets = [0, 256], sizes = [8, 128], strides = [1, 1]} : vector<8x512xf32> to vector<8x128xf32>
    %74 = math.tanh %73 : vector<8x128xf32>
    %75 = vector.extract_strided_slice %56 {offsets = [0, 384], sizes = [8, 128], strides = [1, 1]} : vector<8x512xf32> to vector<8x128xf32>
    %cst_33 = arith.constant 5.000000e-01 : f32
    %76 = vector.broadcast %cst_33 : f32 to vector<8x128xf32>
    %77 = arith.mulf %76, %75 : vector<8x128xf32>
    %78 = math.tanh %77 : vector<8x128xf32>
    %cst_34 = arith.constant 5.000000e-01 : f32
    %79 = vector.broadcast %cst_34 : f32 to vector<8x128xf32>
    %80 = arith.mulf %79, %78 : vector<8x128xf32>
    %cst_35 = arith.constant 5.000000e-01 : f32
    %81 = vector.broadcast %cst_35 : f32 to vector<8x128xf32>
    %82 = arith.addf %80, %81 : vector<8x128xf32>
    %83 = arith.mulf %72, %46 : vector<8x128xf32>
    %84 = arith.mulf %64, %74 : vector<8x128xf32>
    %85 = arith.addf %83, %84 : vector<8x128xf32>
    %86 = math.tanh %85 : vector<8x128xf32>
    %87 = arith.mulf %82, %86 : vector<8x128xf32>
    %c2_i32 = arith.constant 2 : i32
    %88 = arith.index_cast %c2_i32 : i32 to index
    %c0_36 = arith.constant 0 : index
    %c0_37 = arith.constant 0 : index
    %89 = vector.load %arg2[%88, %c0_36, %c0_37] : memref<8x8x128xbf16, #tpu.memory_space<vmem>>, vector<1x8x128xbf16>
    %90 = vector.shape_cast %89 : vector<1x8x128xbf16> to vector<8x128xbf16>
    %cst_38 = arith.constant dense<0.000000e+00> : vector<8x512xf32>
    %91 = tpu.matmul %90, %3, %cst_38 {dimension_numbers = #tpu.dot_dimension_numbers<[1], [0], [0], [1], [0, 0, 1, 1], [], []>} : vector<8x128xbf16>, vector<128x512xbf16>, vector<8x512xf32> -> vector<8x512xf32>
    %92 = arith.addf %91, %7 : vector<8x512xf32>
    %93 = arith.truncf %87 : vector<8x128xf32> to vector<8x128xbf16>
    %cst_39 = arith.constant dense<0.000000e+00> : vector<8x512xf32>
    %94 = tpu.matmul %93, %4, %cst_39 {dimension_numbers = #tpu.dot_dimension_numbers<[1], [0], [0], [1], [0, 0, 1, 1], [], []>} : vector<8x128xbf16>, vector<128x512xbf16>, vector<8x512xf32> -> vector<8x512xf32>
    %95 = arith.addf %92, %94 : vector<8x512xf32>
    %96 = vector.extract_strided_slice %95 {offsets = [0, 0], sizes = [8, 128], strides = [1, 1]} : vector<8x512xf32> to vector<8x128xf32>
    %cst_40 = arith.constant 5.000000e-01 : f32
    %97 = vector.broadcast %cst_40 : f32 to vector<8x128xf32>
    %98 = arith.mulf %97, %96 : vector<8x128xf32>
    %99 = math.tanh %98 : vector<8x128xf32>
    %cst_41 = arith.constant 5.000000e-01 : f32
    %100 = vector.broadcast %cst_41 : f32 to vector<8x128xf32>
    %101 = arith.mulf %100, %99 : vector<8x128xf32>
    %cst_42 = arith.constant 5.000000e-01 : f32
    %102 = vector.broadcast %cst_42 : f32 to vector<8x128xf32>
    %103 = arith.addf %101, %102 : vector<8x128xf32>
    %104 = vector.extract_strided_slice %95 {offsets = [0, 128], sizes = [8, 128], strides = [1, 1]} : vector<8x512xf32> to vector<8x128xf32>
    %cst_43 = arith.constant 5.000000e-01 : f32
    %105 = vector.broadcast %cst_43 : f32 to vector<8x128xf32>
    %106 = arith.mulf %105, %104 : vector<8x128xf32>
    %107 = math.tanh %106 : vector<8x128xf32>
    %cst_44 = arith.constant 5.000000e-01 : f32
    %108 = vector.broadcast %cst_44 : f32 to vector<8x128xf32>
    %109 = arith.mulf %108, %107 : vector<8x128xf32>
    %cst_45 = arith.constant 5.000000e-01 : f32
    %110 = vector.broadcast %cst_45 : f32 to vector<8x128xf32>
    %111 = arith.addf %109, %110 : vector<8x128xf32>
    %112 = vector.extract_strided_slice %95 {offsets = [0, 256], sizes = [8, 128], strides = [1, 1]} : vector<8x512xf32> to vector<8x128xf32>
    %113 = math.tanh %112 : vector<8x128xf32>
    %114 = vector.extract_strided_slice %95 {offsets = [0, 384], sizes = [8, 128], strides = [1, 1]} : vector<8x512xf32> to vector<8x128xf32>
    %cst_46 = arith.constant 5.000000e-01 : f32
    %115 = vector.broadcast %cst_46 : f32 to vector<8x128xf32>
    %116 = arith.mulf %115, %114 : vector<8x128xf32>
    %117 = math.tanh %116 : vector<8x128xf32>
    %cst_47 = arith.constant 5.000000e-01 : f32
    %118 = vector.broadcast %cst_47 : f32 to vector<8x128xf32>
    %119 = arith.mulf %118, %117 : vector<8x128xf32>
    %cst_48 = arith.constant 5.000000e-01 : f32
    %120 = vector.broadcast %cst_48 : f32 to vector<8x128xf32>
    %121 = arith.addf %119, %120 : vector<8x128xf32>
    %122 = arith.mulf %111, %85 : vector<8x128xf32>
    %123 = arith.mulf %103, %113 : vector<8x128xf32>
    %124 = arith.addf %122, %123 : vector<8x128xf32>
    %125 = math.tanh %124 : vector<8x128xf32>
    %126 = arith.mulf %121, %125 : vector<8x128xf32>
    %c3_i32 = arith.constant 3 : i32
    %127 = arith.index_cast %c3_i32 : i32 to index
    %c0_49 = arith.constant 0 : index
    %c0_50 = arith.constant 0 : index
    %128 = vector.load %arg2[%127, %c0_49, %c0_50] : memref<8x8x128xbf16, #tpu.memory_space<vmem>>, vector<1x8x128xbf16>
    %129 = vector.shape_cast %128 : vector<1x8x128xbf16> to vector<8x128xbf16>
    %cst_51 = arith.constant dense<0.000000e+00> : vector<8x512xf32>
    %130 = tpu.matmul %129, %3, %cst_51 {dimension_numbers = #tpu.dot_dimension_numbers<[1], [0], [0], [1], [0, 0, 1, 1], [], []>} : vector<8x128xbf16>, vector<128x512xbf16>, vector<8x512xf32> -> vector<8x512xf32>
    %131 = arith.addf %130, %7 : vector<8x512xf32>
    %132 = arith.truncf %126 : vector<8x128xf32> to vector<8x128xbf16>
    %cst_52 = arith.constant dense<0.000000e+00> : vector<8x512xf32>
    %133 = tpu.matmul %132, %4, %cst_52 {dimension_numbers = #tpu.dot_dimension_numbers<[1], [0], [0], [1], [0, 0, 1, 1], [], []>} : vector<8x128xbf16>, vector<128x512xbf16>, vector<8x512xf32> -> vector<8x512xf32>
    %134 = arith.addf %131, %133 : vector<8x512xf32>
    %135 = vector.extract_strided_slice %134 {offsets = [0, 0], sizes = [8, 128], strides = [1, 1]} : vector<8x512xf32> to vector<8x128xf32>
    %cst_53 = arith.constant 5.000000e-01 : f32
    %136 = vector.broadcast %cst_53 : f32 to vector<8x128xf32>
    %137 = arith.mulf %136, %135 : vector<8x128xf32>
    %138 = math.tanh %137 : vector<8x128xf32>
    %cst_54 = arith.constant 5.000000e-01 : f32
    %139 = vector.broadcast %cst_54 : f32 to vector<8x128xf32>
    %140 = arith.mulf %139, %138 : vector<8x128xf32>
    %cst_55 = arith.constant 5.000000e-01 : f32
    %141 = vector.broadcast %cst_55 : f32 to vector<8x128xf32>
    %142 = arith.addf %140, %141 : vector<8x128xf32>
    %143 = vector.extract_strided_slice %134 {offsets = [0, 128], sizes = [8, 128], strides = [1, 1]} : vector<8x512xf32> to vector<8x128xf32>
    %cst_56 = arith.constant 5.000000e-01 : f32
    %144 = vector.broadcast %cst_56 : f32 to vector<8x128xf32>
    %145 = arith.mulf %144, %143 : vector<8x128xf32>
    %146 = math.tanh %145 : vector<8x128xf32>
    %cst_57 = arith.constant 5.000000e-01 : f32
    %147 = vector.broadcast %cst_57 : f32 to vector<8x128xf32>
    %148 = arith.mulf %147, %146 : vector<8x128xf32>
    %cst_58 = arith.constant 5.000000e-01 : f32
    %149 = vector.broadcast %cst_58 : f32 to vector<8x128xf32>
    %150 = arith.addf %148, %149 : vector<8x128xf32>
    %151 = vector.extract_strided_slice %134 {offsets = [0, 256], sizes = [8, 128], strides = [1, 1]} : vector<8x512xf32> to vector<8x128xf32>
    %152 = math.tanh %151 : vector<8x128xf32>
    %153 = vector.extract_strided_slice %134 {offsets = [0, 384], sizes = [8, 128], strides = [1, 1]} : vector<8x512xf32> to vector<8x128xf32>
    %cst_59 = arith.constant 5.000000e-01 : f32
    %154 = vector.broadcast %cst_59 : f32 to vector<8x128xf32>
    %155 = arith.mulf %154, %153 : vector<8x128xf32>
    %156 = math.tanh %155 : vector<8x128xf32>
    %cst_60 = arith.constant 5.000000e-01 : f32
    %157 = vector.broadcast %cst_60 : f32 to vector<8x128xf32>
    %158 = arith.mulf %157, %156 : vector<8x128xf32>
    %cst_61 = arith.constant 5.000000e-01 : f32
    %159 = vector.broadcast %cst_61 : f32 to vector<8x128xf32>
    %160 = arith.addf %158, %159 : vector<8x128xf32>
    %161 = arith.mulf %150, %124 : vector<8x128xf32>
    %162 = arith.mulf %142, %152 : vector<8x128xf32>
    %163 = arith.addf %161, %162 : vector<8x128xf32>
    %164 = math.tanh %163 : vector<8x128xf32>
    %165 = arith.mulf %160, %164 : vector<8x128xf32>
    %c4_i32 = arith.constant 4 : i32
    %166 = arith.index_cast %c4_i32 : i32 to index
    %c0_62 = arith.constant 0 : index
    %c0_63 = arith.constant 0 : index
    %167 = vector.load %arg2[%166, %c0_62, %c0_63] : memref<8x8x128xbf16, #tpu.memory_space<vmem>>, vector<1x8x128xbf16>
    %168 = vector.shape_cast %167 : vector<1x8x128xbf16> to vector<8x128xbf16>
    %cst_64 = arith.constant dense<0.000000e+00> : vector<8x512xf32>
    %169 = tpu.matmul %168, %3, %cst_64 {dimension_numbers = #tpu.dot_dimension_numbers<[1], [0], [0], [1], [0, 0, 1, 1], [], []>} : vector<8x128xbf16>, vector<128x512xbf16>, vector<8x512xf32> -> vector<8x512xf32>
    %170 = arith.addf %169, %7 : vector<8x512xf32>
    %171 = arith.truncf %165 : vector<8x128xf32> to vector<8x128xbf16>
    %cst_65 = arith.constant dense<0.000000e+00> : vector<8x512xf32>
    %172 = tpu.matmul %171, %4, %cst_65 {dimension_numbers = #tpu.dot_dimension_numbers<[1], [0], [0], [1], [0, 0, 1, 1], [], []>} : vector<8x128xbf16>, vector<128x512xbf16>, vector<8x512xf32> -> vector<8x512xf32>
    %173 = arith.addf %170, %172 : vector<8x512xf32>
    %174 = vector.extract_strided_slice %173 {offsets = [0, 0], sizes = [8, 128], strides = [1, 1]} : vector<8x512xf32> to vector<8x128xf32>
    %cst_66 = arith.constant 5.000000e-01 : f32
    %175 = vector.broadcast %cst_66 : f32 to vector<8x128xf32>
    %176 = arith.mulf %175, %174 : vector<8x128xf32>
    %177 = math.tanh %176 : vector<8x128xf32>
    %cst_67 = arith.constant 5.000000e-01 : f32
    %178 = vector.broadcast %cst_67 : f32 to vector<8x128xf32>
    %179 = arith.mulf %178, %177 : vector<8x128xf32>
    %cst_68 = arith.constant 5.000000e-01 : f32
    %180 = vector.broadcast %cst_68 : f32 to vector<8x128xf32>
    %181 = arith.addf %179, %180 : vector<8x128xf32>
    %182 = vector.extract_strided_slice %173 {offsets = [0, 128], sizes = [8, 128], strides = [1, 1]} : vector<8x512xf32> to vector<8x128xf32>
    %cst_69 = arith.constant 5.000000e-01 : f32
    %183 = vector.broadcast %cst_69 : f32 to vector<8x128xf32>
    %184 = arith.mulf %183, %182 : vector<8x128xf32>
    %185 = math.tanh %184 : vector<8x128xf32>
    %cst_70 = arith.constant 5.000000e-01 : f32
    %186 = vector.broadcast %cst_70 : f32 to vector<8x128xf32>
    %187 = arith.mulf %186, %185 : vector<8x128xf32>
    %cst_71 = arith.constant 5.000000e-01 : f32
    %188 = vector.broadcast %cst_71 : f32 to vector<8x128xf32>
    %189 = arith.addf %187, %188 : vector<8x128xf32>
    %190 = vector.extract_strided_slice %173 {offsets = [0, 256], sizes = [8, 128], strides = [1, 1]} : vector<8x512xf32> to vector<8x128xf32>
    %191 = math.tanh %190 : vector<8x128xf32>
    %192 = vector.extract_strided_slice %173 {offsets = [0, 384], sizes = [8, 128], strides = [1, 1]} : vector<8x512xf32> to vector<8x128xf32>
    %cst_72 = arith.constant 5.000000e-01 : f32
    %193 = vector.broadcast %cst_72 : f32 to vector<8x128xf32>
    %194 = arith.mulf %193, %192 : vector<8x128xf32>
    %195 = math.tanh %194 : vector<8x128xf32>
    %cst_73 = arith.constant 5.000000e-01 : f32
    %196 = vector.broadcast %cst_73 : f32 to vector<8x128xf32>
    %197 = arith.mulf %196, %195 : vector<8x128xf32>
    %cst_74 = arith.constant 5.000000e-01 : f32
    %198 = vector.broadcast %cst_74 : f32 to vector<8x128xf32>
    %199 = arith.addf %197, %198 : vector<8x128xf32>
    %200 = arith.mulf %189, %163 : vector<8x128xf32>
    %201 = arith.mulf %181, %191 : vector<8x128xf32>
    %202 = arith.addf %200, %201 : vector<8x128xf32>
    %203 = math.tanh %202 : vector<8x128xf32>
    %204 = arith.mulf %199, %203 : vector<8x128xf32>
    %c5_i32 = arith.constant 5 : i32
    %205 = arith.index_cast %c5_i32 : i32 to index
    %c0_75 = arith.constant 0 : index
    %c0_76 = arith.constant 0 : index
    %206 = vector.load %arg2[%205, %c0_75, %c0_76] : memref<8x8x128xbf16, #tpu.memory_space<vmem>>, vector<1x8x128xbf16>
    %207 = vector.shape_cast %206 : vector<1x8x128xbf16> to vector<8x128xbf16>
    %cst_77 = arith.constant dense<0.000000e+00> : vector<8x512xf32>
    %208 = tpu.matmul %207, %3, %cst_77 {dimension_numbers = #tpu.dot_dimension_numbers<[1], [0], [0], [1], [0, 0, 1, 1], [], []>} : vector<8x128xbf16>, vector<128x512xbf16>, vector<8x512xf32> -> vector<8x512xf32>
    %209 = arith.addf %208, %7 : vector<8x512xf32>
    %210 = arith.truncf %204 : vector<8x128xf32> to vector<8x128xbf16>
    %cst_78 = arith.constant dense<0.000000e+00> : vector<8x512xf32>
    %211 = tpu.matmul %210, %4, %cst_78 {dimension_numbers = #tpu.dot_dimension_numbers<[1], [0], [0], [1], [0, 0, 1, 1], [], []>} : vector<8x128xbf16>, vector<128x512xbf16>, vector<8x512xf32> -> vector<8x512xf32>
    %212 = arith.addf %209, %211 : vector<8x512xf32>
    %213 = vector.extract_strided_slice %212 {offsets = [0, 0], sizes = [8, 128], strides = [1, 1]} : vector<8x512xf32> to vector<8x128xf32>
    %cst_79 = arith.constant 5.000000e-01 : f32
    %214 = vector.broadcast %cst_79 : f32 to vector<8x128xf32>
    %215 = arith.mulf %214, %213 : vector<8x128xf32>
    %216 = math.tanh %215 : vector<8x128xf32>
    %cst_80 = arith.constant 5.000000e-01 : f32
    %217 = vector.broadcast %cst_80 : f32 to vector<8x128xf32>
    %218 = arith.mulf %217, %216 : vector<8x128xf32>
    %cst_81 = arith.constant 5.000000e-01 : f32
    %219 = vector.broadcast %cst_81 : f32 to vector<8x128xf32>
    %220 = arith.addf %218, %219 : vector<8x128xf32>
    %221 = vector.extract_strided_slice %212 {offsets = [0, 128], sizes = [8, 128], strides = [1, 1]} : vector<8x512xf32> to vector<8x128xf32>
    %cst_82 = arith.constant 5.000000e-01 : f32
    %222 = vector.broadcast %cst_82 : f32 to vector<8x128xf32>
    %223 = arith.mulf %222, %221 : vector<8x128xf32>
    %224 = math.tanh %223 : vector<8x128xf32>
    %cst_83 = arith.constant 5.000000e-01 : f32
    %225 = vector.broadcast %cst_83 : f32 to vector<8x128xf32>
    %226 = arith.mulf %225, %224 : vector<8x128xf32>
    %cst_84 = arith.constant 5.000000e-01 : f32
    %227 = vector.broadcast %cst_84 : f32 to vector<8x128xf32>
    %228 = arith.addf %226, %227 : vector<8x128xf32>
    %229 = vector.extract_strided_slice %212 {offsets = [0, 256], sizes = [8, 128], strides = [1, 1]} : vector<8x512xf32> to vector<8x128xf32>
    %230 = math.tanh %229 : vector<8x128xf32>
    %231 = vector.extract_strided_slice %212 {offsets = [0, 384], sizes = [8, 128], strides = [1, 1]} : vector<8x512xf32> to vector<8x128xf32>
    %cst_85 = arith.constant 5.000000e-01 : f32
    %232 = vector.broadcast %cst_85 : f32 to vector<8x128xf32>
    %233 = arith.mulf %232, %231 : vector<8x128xf32>
    %234 = math.tanh %233 : vector<8x128xf32>
    %cst_86 = arith.constant 5.000000e-01 : f32
    %235 = vector.broadcast %cst_86 : f32 to vector<8x128xf32>
    %236 = arith.mulf %235, %234 : vector<8x128xf32>
    %cst_87 = arith.constant 5.000000e-01 : f32
    %237 = vector.broadcast %cst_87 : f32 to vector<8x128xf32>
    %238 = arith.addf %236, %237 : vector<8x128xf32>
    %239 = arith.mulf %228, %202 : vector<8x128xf32>
    %240 = arith.mulf %220, %230 : vector<8x128xf32>
    %241 = arith.addf %239, %240 : vector<8x128xf32>
    %242 = math.tanh %241 : vector<8x128xf32>
    %243 = arith.mulf %238, %242 : vector<8x128xf32>
    %c6_i32 = arith.constant 6 : i32
    %244 = arith.index_cast %c6_i32 : i32 to index
    %c0_88 = arith.constant 0 : index
    %c0_89 = arith.constant 0 : index
    %245 = vector.load %arg2[%244, %c0_88, %c0_89] : memref<8x8x128xbf16, #tpu.memory_space<vmem>>, vector<1x8x128xbf16>
    %246 = vector.shape_cast %245 : vector<1x8x128xbf16> to vector<8x128xbf16>
    %cst_90 = arith.constant dense<0.000000e+00> : vector<8x512xf32>
    %247 = tpu.matmul %246, %3, %cst_90 {dimension_numbers = #tpu.dot_dimension_numbers<[1], [0], [0], [1], [0, 0, 1, 1], [], []>} : vector<8x128xbf16>, vector<128x512xbf16>, vector<8x512xf32> -> vector<8x512xf32>
    %248 = arith.addf %247, %7 : vector<8x512xf32>
    %249 = arith.truncf %243 : vector<8x128xf32> to vector<8x128xbf16>
    %cst_91 = arith.constant dense<0.000000e+00> : vector<8x512xf32>
    %250 = tpu.matmul %249, %4, %cst_91 {dimension_numbers = #tpu.dot_dimension_numbers<[1], [0], [0], [1], [0, 0, 1, 1], [], []>} : vector<8x128xbf16>, vector<128x512xbf16>, vector<8x512xf32> -> vector<8x512xf32>
    %251 = arith.addf %248, %250 : vector<8x512xf32>
    %252 = vector.extract_strided_slice %251 {offsets = [0, 0], sizes = [8, 128], strides = [1, 1]} : vector<8x512xf32> to vector<8x128xf32>
    %cst_92 = arith.constant 5.000000e-01 : f32
    %253 = vector.broadcast %cst_92 : f32 to vector<8x128xf32>
    %254 = arith.mulf %253, %252 : vector<8x128xf32>
    %255 = math.tanh %254 : vector<8x128xf32>
    %cst_93 = arith.constant 5.000000e-01 : f32
    %256 = vector.broadcast %cst_93 : f32 to vector<8x128xf32>
    %257 = arith.mulf %256, %255 : vector<8x128xf32>
    %cst_94 = arith.constant 5.000000e-01 : f32
    %258 = vector.broadcast %cst_94 : f32 to vector<8x128xf32>
    %259 = arith.addf %257, %258 : vector<8x128xf32>
    %260 = vector.extract_strided_slice %251 {offsets = [0, 128], sizes = [8, 128], strides = [1, 1]} : vector<8x512xf32> to vector<8x128xf32>
    %cst_95 = arith.constant 5.000000e-01 : f32
    %261 = vector.broadcast %cst_95 : f32 to vector<8x128xf32>
    %262 = arith.mulf %261, %260 : vector<8x128xf32>
    %263 = math.tanh %262 : vector<8x128xf32>
    %cst_96 = arith.constant 5.000000e-01 : f32
    %264 = vector.broadcast %cst_96 : f32 to vector<8x128xf32>
    %265 = arith.mulf %264, %263 : vector<8x128xf32>
    %cst_97 = arith.constant 5.000000e-01 : f32
    %266 = vector.broadcast %cst_97 : f32 to vector<8x128xf32>
    %267 = arith.addf %265, %266 : vector<8x128xf32>
    %268 = vector.extract_strided_slice %251 {offsets = [0, 256], sizes = [8, 128], strides = [1, 1]} : vector<8x512xf32> to vector<8x128xf32>
    %269 = math.tanh %268 : vector<8x128xf32>
    %270 = vector.extract_strided_slice %251 {offsets = [0, 384], sizes = [8, 128], strides = [1, 1]} : vector<8x512xf32> to vector<8x128xf32>
    %cst_98 = arith.constant 5.000000e-01 : f32
    %271 = vector.broadcast %cst_98 : f32 to vector<8x128xf32>
    %272 = arith.mulf %271, %270 : vector<8x128xf32>
    %273 = math.tanh %272 : vector<8x128xf32>
    %cst_99 = arith.constant 5.000000e-01 : f32
    %274 = vector.broadcast %cst_99 : f32 to vector<8x128xf32>
    %275 = arith.mulf %274, %273 : vector<8x128xf32>
    %cst_100 = arith.constant 5.000000e-01 : f32
    %276 = vector.broadcast %cst_100 : f32 to vector<8x128xf32>
    %277 = arith.addf %275, %276 : vector<8x128xf32>
    %278 = arith.mulf %267, %241 : vector<8x128xf32>
    %279 = arith.mulf %259, %269 : vector<8x128xf32>
    %280 = arith.addf %278, %279 : vector<8x128xf32>
    %281 = math.tanh %280 : vector<8x128xf32>
    %282 = arith.mulf %277, %281 : vector<8x128xf32>
    %c7_i32 = arith.constant 7 : i32
    %283 = arith.index_cast %c7_i32 : i32 to index
    %c0_101 = arith.constant 0 : index
    %c0_102 = arith.constant 0 : index
    %284 = vector.load %arg2[%283, %c0_101, %c0_102] : memref<8x8x128xbf16, #tpu.memory_space<vmem>>, vector<1x8x128xbf16>
    %285 = vector.shape_cast %284 : vector<1x8x128xbf16> to vector<8x128xbf16>
    %cst_103 = arith.constant dense<0.000000e+00> : vector<8x512xf32>
    %286 = tpu.matmul %285, %3, %cst_103 {dimension_numbers = #tpu.dot_dimension_numbers<[1], [0], [0], [1], [0, 0, 1, 1], [], []>} : vector<8x128xbf16>, vector<128x512xbf16>, vector<8x512xf32> -> vector<8x512xf32>
    %287 = arith.addf %286, %7 : vector<8x512xf32>
    %288 = arith.truncf %282 : vector<8x128xf32> to vector<8x128xbf16>
    %cst_104 = arith.constant dense<0.000000e+00> : vector<8x512xf32>
    %289 = tpu.matmul %288, %4, %cst_104 {dimension_numbers = #tpu.dot_dimension_numbers<[1], [0], [0], [1], [0, 0, 1, 1], [], []>} : vector<8x128xbf16>, vector<128x512xbf16>, vector<8x512xf32> -> vector<8x512xf32>
    %290 = arith.addf %287, %289 : vector<8x512xf32>
    %291 = vector.extract_strided_slice %290 {offsets = [0, 0], sizes = [8, 128], strides = [1, 1]} : vector<8x512xf32> to vector<8x128xf32>
    %cst_105 = arith.constant 5.000000e-01 : f32
    %292 = vector.broadcast %cst_105 : f32 to vector<8x128xf32>
    %293 = arith.mulf %292, %291 : vector<8x128xf32>
    %294 = math.tanh %293 : vector<8x128xf32>
    %cst_106 = arith.constant 5.000000e-01 : f32
    %295 = vector.broadcast %cst_106 : f32 to vector<8x128xf32>
    %296 = arith.mulf %295, %294 : vector<8x128xf32>
    %cst_107 = arith.constant 5.000000e-01 : f32
    %297 = vector.broadcast %cst_107 : f32 to vector<8x128xf32>
    %298 = arith.addf %296, %297 : vector<8x128xf32>
    %299 = vector.extract_strided_slice %290 {offsets = [0, 128], sizes = [8, 128], strides = [1, 1]} : vector<8x512xf32> to vector<8x128xf32>
    %cst_108 = arith.constant 5.000000e-01 : f32
    %300 = vector.broadcast %cst_108 : f32 to vector<8x128xf32>
    %301 = arith.mulf %300, %299 : vector<8x128xf32>
    %302 = math.tanh %301 : vector<8x128xf32>
    %cst_109 = arith.constant 5.000000e-01 : f32
    %303 = vector.broadcast %cst_109 : f32 to vector<8x128xf32>
    %304 = arith.mulf %303, %302 : vector<8x128xf32>
    %cst_110 = arith.constant 5.000000e-01 : f32
    %305 = vector.broadcast %cst_110 : f32 to vector<8x128xf32>
    %306 = arith.addf %304, %305 : vector<8x128xf32>
    %307 = vector.extract_strided_slice %290 {offsets = [0, 256], sizes = [8, 128], strides = [1, 1]} : vector<8x512xf32> to vector<8x128xf32>
    %308 = math.tanh %307 : vector<8x128xf32>
    %309 = vector.extract_strided_slice %290 {offsets = [0, 384], sizes = [8, 128], strides = [1, 1]} : vector<8x512xf32> to vector<8x128xf32>
    %cst_111 = arith.constant 5.000000e-01 : f32
    %310 = vector.broadcast %cst_111 : f32 to vector<8x128xf32>
    %311 = arith.mulf %310, %309 : vector<8x128xf32>
    %312 = math.tanh %311 : vector<8x128xf32>
    %cst_112 = arith.constant 5.000000e-01 : f32
    %313 = vector.broadcast %cst_112 : f32 to vector<8x128xf32>
    %314 = arith.mulf %313, %312 : vector<8x128xf32>
    %cst_113 = arith.constant 5.000000e-01 : f32
    %315 = vector.broadcast %cst_113 : f32 to vector<8x128xf32>
    %316 = arith.addf %314, %315 : vector<8x128xf32>
    %317 = arith.mulf %306, %280 : vector<8x128xf32>
    %318 = arith.mulf %298, %308 : vector<8x128xf32>
    %319 = arith.addf %317, %318 : vector<8x128xf32>
    %320 = math.tanh %319 : vector<8x128xf32>
    %321 = arith.mulf %316, %320 : vector<8x128xf32>
    %c8_i32 = arith.constant 8 : i32
    %c0_114 = arith.constant 0 : index
    %c0_115 = arith.constant 0 : index
    %322 = vector.load %arg9[%c0_114, %c0_115] : memref<8x128xf32, #tpu.memory_space<vmem>>, vector<8x128xf32>
    tpu.vector_store %arg9[%c0_114, %c0_115], %321 {strides = array<i32>} : memref<8x128xf32, #tpu.memory_space<vmem>>, vector<8x128xf32>,
    %c0_116 = arith.constant 0 : index
    %c0_117 = arith.constant 0 : index
    %323 = vector.load %arg10[%c0_116, %c0_117] : memref<8x128xf32, #tpu.memory_space<vmem>>, vector<8x128xf32>
    tpu.vector_store %arg10[%c0_116, %c0_117], %319 {strides = array<i32>} : memref<8x128xf32, #tpu.memory_space<vmem>>, vector<8x128xf32>,
    %c0_i32_118 = arith.constant 0 : i32
    %324 = arith.cmpi eq, %arg1, %c0_i32_118 : i32
    %325 = arith.extui %324 : i1 to i32
    %c0_i32_119 = arith.constant 0 : i32
    %326 = arith.cmpi ne, %325, %c0_i32_119 : i32
    scf.if %326 {
      %c0_120 = arith.constant 0 : index
      %c0_121 = arith.constant 0 : index
      %327 = vector.load %arg9[%c0_120, %c0_121] : memref<8x128xf32, #tpu.memory_space<vmem>>, vector<8x128xf32>
      %328 = arith.truncf %327 : vector<8x128xf32> to vector<8x128xbf16>
      %c0_122 = arith.constant 0 : index
      %c0_123 = arith.constant 0 : index
      %329 = vector.load %arg6[%c0_122, %c0_123] : memref<128x128xbf16, #tpu.memory_space<vmem>>, vector<128x128xbf16>
      %cst_124 = arith.constant dense<0.000000e+00> : vector<8x128xf32>
      %330 = tpu.matmul %328, %329, %cst_124 {dimension_numbers = #tpu.dot_dimension_numbers<[1], [0], [0], [1], [0, 0, 1, 1], [], []>} : vector<8x128xbf16>, vector<128x128xbf16>, vector<8x128xf32> -> vector<8x128xf32>
      %c0_125 = arith.constant 0 : index
      %c0_126 = arith.constant 0 : index
      %331 = vector.load %arg7[%c0_125, %c0_126] : memref<1x128xf32, #tpu.memory_space<vmem>>, vector<1x128xf32>
      %332 = vector.broadcast %331 : vector<1x128xf32> to vector<8x128xf32>
      %333 = arith.addf %330, %332 : vector<8x128xf32>
      %c0_127 = arith.constant 0 : index
      %c0_128 = arith.constant 0 : index
      %334 = vector.load %arg8[%c0_127, %c0_128] : memref<8x128xf32, #tpu.memory_space<vmem>>, vector<8x128xf32>
      tpu.vector_store %arg8[%c0_127, %c0_128], %333 {strides = array<i32>} : memref<8x128xf32, #tpu.memory_space<vmem>>, vector<8x128xf32>,
    } else {
    }
    return
  }
  func.func @transform_0(%arg0: i32, %arg1: i32) -> (i32, i32, i32) {
    %c0_i32 = arith.constant 0 : i32
    %c0_i32_0 = arith.constant 0 : i32
    return %arg1, %arg0, %c0_i32 : i32, i32, i32
  }
  func.func @transform_1(%arg0: i32, %arg1: i32) -> (i32, i32) {
    %c0_i32 = arith.constant 0 : i32
    %c0_i32_0 = arith.constant 0 : i32
    %c0_i32_1 = arith.constant 0 : i32
    return %c0_i32, %c0_i32_0 : i32, i32
  }
  func.func @transform_2(%arg0: i32, %arg1: i32) -> (i32, i32) {
    %c0_i32 = arith.constant 0 : i32
    %c0_i32_0 = arith.constant 0 : i32
    %c0_i32_1 = arith.constant 0 : i32
    return %c0_i32, %c0_i32_0 : i32, i32
  }
  func.func @transform_3(%arg0: i32, %arg1: i32) -> (i32, i32) {
    %c0_i32 = arith.constant 0 : i32
    %c0_i32_0 = arith.constant 0 : i32
    %c0_i32_1 = arith.constant 0 : i32
    return %c0_i32, %c0_i32_0 : i32, i32
  }
  func.func @transform_4(%arg0: i32, %arg1: i32) -> (i32, i32) {
    %c0_i32 = arith.constant 0 : i32
    %c0_i32_0 = arith.constant 0 : i32
    %c0_i32_1 = arith.constant 0 : i32
    return %c0_i32, %c0_i32_0 : i32, i32
  }
  func.func @transform_5(%arg0: i32, %arg1: i32) -> (i32, i32) {
    %c0_i32 = arith.constant 0 : i32
    %c0_i32_0 = arith.constant 0 : i32
    %c0_i32_1 = arith.constant 0 : i32
    return %c0_i32, %c0_i32_0 : i32, i32
  }
  func.func @transform_6(%arg0: i32, %arg1: i32) -> (i32, i32) {
    %c0_i32 = arith.constant 0 : i32
    %c0_i32_0 = arith.constant 0 : i32
    return %arg0, %c0_i32 : i32, i32
  }
}

module attributes {stable_mosaic.version = 11 : i64} {
  func.func @_lstm_cls_kernel(%arg0: i32, %arg1: i32, %arg2: memref<8x8x128xbf16, #tpu.memory_space<vmem>>, %arg3: memref<128x512xbf16, #tpu.memory_space<vmem>>, %arg4: memref<128x512xbf16, #tpu.memory_space<vmem>>, %arg5: memref<1x512xf32, #tpu.memory_space<vmem>>, %arg6: memref<128x128xbf16, #tpu.memory_space<vmem>>, %arg7: memref<1x128xf32, #tpu.memory_space<vmem>>, %arg8: memref<8x128xf32, #tpu.memory_space<vmem>>, %arg9: memref<8x128xf32, #tpu.memory_space<vmem>>, %arg10: memref<8x128xf32, #tpu.memory_space<vmem>>) attributes {dimension_semantics = [#tpu.dimension_semantics<parallel>, #tpu.dimension_semantics<arbitrary>], iteration_bounds = array<i64: 1, 1>, scalar_prefetch = 0 : i64, scratch_operands = 2 : i64, tpu.core_type = #tpu.core_type<tc>, window_params = [{transform_indices = @transform_0, window_bounds = array<i64: 8, 8, 128>}, {pipeline_mode = #tpu.pipeline_mode<synchronous>, transform_indices = @transform_1, window_bounds = array<i64: 128, 512>}, {pipeline_mode = #tpu.pipeline_mode<synchronous>, transform_indices = @transform_2, window_bounds = array<i64: 128, 512>}, {pipeline_mode = #tpu.pipeline_mode<synchronous>, transform_indices = @transform_3, window_bounds = array<i64: 1, 512>}, {pipeline_mode = #tpu.pipeline_mode<synchronous>, transform_indices = @transform_4, window_bounds = array<i64: 128, 128>}, {pipeline_mode = #tpu.pipeline_mode<synchronous>, transform_indices = @transform_5, window_bounds = array<i64: 1, 128>}, {transform_indices = @transform_6, window_bounds = array<i64: 8, 128>}]} {
    %c0_i32 = arith.constant 0 : i32
    %0 = arith.cmpi eq, %arg1, %c0_i32 : i32
    %1 = arith.extui %0 : i1 to i32
    %c0_i32_0 = arith.constant 0 : i32
    %2 = arith.cmpi ne, %1, %c0_i32_0 : i32
    scf.if %2 {
      %cst_120 = arith.constant 0.000000e+00 : f32
      %327 = vector.broadcast %cst_120 : f32 to vector<8x128xf32>
      %c0_121 = arith.constant 0 : index
      %c0_122 = arith.constant 0 : index
      %328 = vector.load %arg9[%c0_121, %c0_122] : memref<8x128xf32, #tpu.memory_space<vmem>>, vector<8x128xf32>
      tpu.vector_store %arg9[%c0_121, %c0_122], %327 {strides = array<i32>} : memref<8x128xf32, #tpu.memory_space<vmem>>, vector<8x128xf32>,
      %cst_123 = arith.constant 0.000000e+00 : f32
      %329 = vector.broadcast %cst_123 : f32 to vector<8x128xf32>
      %c0_124 = arith.constant 0 : index
      %c0_125 = arith.constant 0 : index
      %330 = vector.load %arg10[%c0_124, %c0_125] : memref<8x128xf32, #tpu.memory_space<vmem>>, vector<8x128xf32>
      tpu.vector_store %arg10[%c0_124, %c0_125], %329 {strides = array<i32>} : memref<8x128xf32, #tpu.memory_space<vmem>>, vector<8x128xf32>,
    } else {
    }
    %c0 = arith.constant 0 : index
    %c0_1 = arith.constant 0 : index
    %3 = vector.load %arg3[%c0, %c0_1] : memref<128x512xbf16, #tpu.memory_space<vmem>>, vector<128x512xbf16>
    %c0_2 = arith.constant 0 : index
    %c0_3 = arith.constant 0 : index
    %4 = vector.load %arg4[%c0_2, %c0_3] : memref<128x512xbf16, #tpu.memory_space<vmem>>, vector<128x512xbf16>
    %c0_4 = arith.constant 0 : index
    %c0_5 = arith.constant 0 : index
    %5 = vector.load %arg5[%c0_4, %c0_5] : memref<1x512xf32, #tpu.memory_space<vmem>>, vector<1x512xf32>
    %6 = vector.shape_cast %5 : vector<1x512xf32> to vector<1x512xf32>
    %7 = vector.broadcast %6 : vector<1x512xf32> to vector<8x512xf32>
    %c0_6 = arith.constant 0 : index
    %c0_7 = arith.constant 0 : index
    %8 = vector.load %arg9[%c0_6, %c0_7] : memref<8x128xf32, #tpu.memory_space<vmem>>, vector<8x128xf32>
    %c0_8 = arith.constant 0 : index
    %c0_9 = arith.constant 0 : index
    %9 = vector.load %arg10[%c0_8, %c0_9] : memref<8x128xf32, #tpu.memory_space<vmem>>, vector<8x128xf32>
    %c0_i32_10 = arith.constant 0 : i32
    %10 = arith.index_cast %c0_i32_10 : i32 to index
    %c0_11 = arith.constant 0 : index
    %c0_12 = arith.constant 0 : index
    %11 = vector.load %arg2[%10, %c0_11, %c0_12] : memref<8x8x128xbf16, #tpu.memory_space<vmem>>, vector<1x8x128xbf16>
    %12 = vector.shape_cast %11 : vector<1x8x128xbf16> to vector<8x128xbf16>
    %cst = arith.constant dense<0.000000e+00> : vector<8x512xf32>
    %13 = tpu.matmul %12, %3, %cst {dimension_numbers = #tpu.dot_dimension_numbers<[1], [0], [0], [1], [0, 0, 1, 1], [], []>} : vector<8x128xbf16>, vector<128x512xbf16>, vector<8x512xf32> -> vector<8x512xf32>
    %14 = arith.addf %13, %7 : vector<8x512xf32>
    %15 = arith.truncf %8 : vector<8x128xf32> to vector<8x128xbf16>
    %cst_13 = arith.constant dense<0.000000e+00> : vector<8x512xf32>
    %16 = tpu.matmul %15, %4, %cst_13 {dimension_numbers = #tpu.dot_dimension_numbers<[1], [0], [0], [1], [0, 0, 1, 1], [], []>} : vector<8x128xbf16>, vector<128x512xbf16>, vector<8x512xf32> -> vector<8x512xf32>
    %17 = arith.addf %14, %16 : vector<8x512xf32>
    %18 = vector.extract_strided_slice %17 {offsets = [0, 0], sizes = [8, 128], strides = [1, 1]} : vector<8x512xf32> to vector<8x128xf32>
    %cst_14 = arith.constant 5.000000e-01 : f32
    %19 = vector.broadcast %cst_14 : f32 to vector<8x128xf32>
    %20 = arith.mulf %19, %18 : vector<8x128xf32>
    %21 = math.tanh %20 : vector<8x128xf32>
    %cst_15 = arith.constant 5.000000e-01 : f32
    %22 = vector.broadcast %cst_15 : f32 to vector<8x128xf32>
    %23 = arith.mulf %22, %21 : vector<8x128xf32>
    %cst_16 = arith.constant 5.000000e-01 : f32
    %24 = vector.broadcast %cst_16 : f32 to vector<8x128xf32>
    %25 = arith.addf %23, %24 : vector<8x128xf32>
    %26 = vector.extract_strided_slice %17 {offsets = [0, 128], sizes = [8, 128], strides = [1, 1]} : vector<8x512xf32> to vector<8x128xf32>
    %cst_17 = arith.constant 5.000000e-01 : f32
    %27 = vector.broadcast %cst_17 : f32 to vector<8x128xf32>
    %28 = arith.mulf %27, %26 : vector<8x128xf32>
    %29 = math.tanh %28 : vector<8x128xf32>
    %cst_18 = arith.constant 5.000000e-01 : f32
    %30 = vector.broadcast %cst_18 : f32 to vector<8x128xf32>
    %31 = arith.mulf %30, %29 : vector<8x128xf32>
    %cst_19 = arith.constant 5.000000e-01 : f32
    %32 = vector.broadcast %cst_19 : f32 to vector<8x128xf32>
    %33 = arith.addf %31, %32 : vector<8x128xf32>
    %34 = vector.extract_strided_slice %17 {offsets = [0, 256], sizes = [8, 128], strides = [1, 1]} : vector<8x512xf32> to vector<8x128xf32>
    %35 = math.tanh %34 : vector<8x128xf32>
    %36 = vector.extract_strided_slice %17 {offsets = [0, 384], sizes = [8, 128], strides = [1, 1]} : vector<8x512xf32> to vector<8x128xf32>
    %cst_20 = arith.constant 5.000000e-01 : f32
    %37 = vector.broadcast %cst_20 : f32 to vector<8x128xf32>
    %38 = arith.mulf %37, %36 : vector<8x128xf32>
    %39 = math.tanh %38 : vector<8x128xf32>
    %cst_21 = arith.constant 5.000000e-01 : f32
    %40 = vector.broadcast %cst_21 : f32 to vector<8x128xf32>
    %41 = arith.mulf %40, %39 : vector<8x128xf32>
    %cst_22 = arith.constant 5.000000e-01 : f32
    %42 = vector.broadcast %cst_22 : f32 to vector<8x128xf32>
    %43 = arith.addf %41, %42 : vector<8x128xf32>
    %44 = arith.mulf %33, %9 : vector<8x128xf32>
    %45 = arith.mulf %25, %35 : vector<8x128xf32>
    %46 = arith.addf %44, %45 : vector<8x128xf32>
    %47 = math.tanh %46 : vector<8x128xf32>
    %48 = arith.mulf %43, %47 : vector<8x128xf32>
    %c1_i32 = arith.constant 1 : i32
    %49 = arith.index_cast %c1_i32 : i32 to index
    %c0_23 = arith.constant 0 : index
    %c0_24 = arith.constant 0 : index
    %50 = vector.load %arg2[%49, %c0_23, %c0_24] : memref<8x8x128xbf16, #tpu.memory_space<vmem>>, vector<1x8x128xbf16>
    %51 = vector.shape_cast %50 : vector<1x8x128xbf16> to vector<8x128xbf16>
    %cst_25 = arith.constant dense<0.000000e+00> : vector<8x512xf32>
    %52 = tpu.matmul %51, %3, %cst_25 {dimension_numbers = #tpu.dot_dimension_numbers<[1], [0], [0], [1], [0, 0, 1, 1], [], []>} : vector<8x128xbf16>, vector<128x512xbf16>, vector<8x512xf32> -> vector<8x512xf32>
    %53 = arith.addf %52, %7 : vector<8x512xf32>
    %54 = arith.truncf %48 : vector<8x128xf32> to vector<8x128xbf16>
    %cst_26 = arith.constant dense<0.000000e+00> : vector<8x512xf32>
    %55 = tpu.matmul %54, %4, %cst_26 {dimension_numbers = #tpu.dot_dimension_numbers<[1], [0], [0], [1], [0, 0, 1, 1], [], []>} : vector<8x128xbf16>, vector<128x512xbf16>, vector<8x512xf32> -> vector<8x512xf32>
    %56 = arith.addf %53, %55 : vector<8x512xf32>
    %57 = vector.extract_strided_slice %56 {offsets = [0, 0], sizes = [8, 128], strides = [1, 1]} : vector<8x512xf32> to vector<8x128xf32>
    %cst_27 = arith.constant 5.000000e-01 : f32
    %58 = vector.broadcast %cst_27 : f32 to vector<8x128xf32>
    %59 = arith.mulf %58, %57 : vector<8x128xf32>
    %60 = math.tanh %59 : vector<8x128xf32>
    %cst_28 = arith.constant 5.000000e-01 : f32
    %61 = vector.broadcast %cst_28 : f32 to vector<8x128xf32>
    %62 = arith.mulf %61, %60 : vector<8x128xf32>
    %cst_29 = arith.constant 5.000000e-01 : f32
    %63 = vector.broadcast %cst_29 : f32 to vector<8x128xf32>
    %64 = arith.addf %62, %63 : vector<8x128xf32>
    %65 = vector.extract_strided_slice %56 {offsets = [0, 128], sizes = [8, 128], strides = [1, 1]} : vector<8x512xf32> to vector<8x128xf32>
    %cst_30 = arith.constant 5.000000e-01 : f32
    %66 = vector.broadcast %cst_30 : f32 to vector<8x128xf32>
    %67 = arith.mulf %66, %65 : vector<8x128xf32>
    %68 = math.tanh %67 : vector<8x128xf32>
    %cst_31 = arith.constant 5.000000e-01 : f32
    %69 = vector.broadcast %cst_31 : f32 to vector<8x128xf32>
    %70 = arith.mulf %69, %68 : vector<8x128xf32>
    %cst_32 = arith.constant 5.000000e-01 : f32
    %71 = vector.broadcast %cst_32 : f32 to vector<8x128xf32>
    %72 = arith.addf %70, %71 : vector<8x128xf32>
    %73 = vector.extract_strided_slice %56 {offsets = [0, 256], sizes = [8, 128], strides = [1, 1]} : vector<8x512xf32> to vector<8x128xf32>
    %74 = math.tanh %73 : vector<8x128xf32>
    %75 = vector.extract_strided_slice %56 {offsets = [0, 384], sizes = [8, 128], strides = [1, 1]} : vector<8x512xf32> to vector<8x128xf32>
    %cst_33 = arith.constant 5.000000e-01 : f32
    %76 = vector.broadcast %cst_33 : f32 to vector<8x128xf32>
    %77 = arith.mulf %76, %75 : vector<8x128xf32>
    %78 = math.tanh %77 : vector<8x128xf32>
    %cst_34 = arith.constant 5.000000e-01 : f32
    %79 = vector.broadcast %cst_34 : f32 to vector<8x128xf32>
    %80 = arith.mulf %79, %78 : vector<8x128xf32>
    %cst_35 = arith.constant 5.000000e-01 : f32
    %81 = vector.broadcast %cst_35 : f32 to vector<8x128xf32>
    %82 = arith.addf %80, %81 : vector<8x128xf32>
    %83 = arith.mulf %72, %46 : vector<8x128xf32>
    %84 = arith.mulf %64, %74 : vector<8x128xf32>
    %85 = arith.addf %83, %84 : vector<8x128xf32>
    %86 = math.tanh %85 : vector<8x128xf32>
    %87 = arith.mulf %82, %86 : vector<8x128xf32>
    %c2_i32 = arith.constant 2 : i32
    %88 = arith.index_cast %c2_i32 : i32 to index
    %c0_36 = arith.constant 0 : index
    %c0_37 = arith.constant 0 : index
    %89 = vector.load %arg2[%88, %c0_36, %c0_37] : memref<8x8x128xbf16, #tpu.memory_space<vmem>>, vector<1x8x128xbf16>
    %90 = vector.shape_cast %89 : vector<1x8x128xbf16> to vector<8x128xbf16>
    %cst_38 = arith.constant dense<0.000000e+00> : vector<8x512xf32>
    %91 = tpu.matmul %90, %3, %cst_38 {dimension_numbers = #tpu.dot_dimension_numbers<[1], [0], [0], [1], [0, 0, 1, 1], [], []>} : vector<8x128xbf16>, vector<128x512xbf16>, vector<8x512xf32> -> vector<8x512xf32>
    %92 = arith.addf %91, %7 : vector<8x512xf32>
    %93 = arith.truncf %87 : vector<8x128xf32> to vector<8x128xbf16>
    %cst_39 = arith.constant dense<0.000000e+00> : vector<8x512xf32>
    %94 = tpu.matmul %93, %4, %cst_39 {dimension_numbers = #tpu.dot_dimension_numbers<[1], [0], [0], [1], [0, 0, 1, 1], [], []>} : vector<8x128xbf16>, vector<128x512xbf16>, vector<8x512xf32> -> vector<8x512xf32>
    %95 = arith.addf %92, %94 : vector<8x512xf32>
    %96 = vector.extract_strided_slice %95 {offsets = [0, 0], sizes = [8, 128], strides = [1, 1]} : vector<8x512xf32> to vector<8x128xf32>
    %cst_40 = arith.constant 5.000000e-01 : f32
    %97 = vector.broadcast %cst_40 : f32 to vector<8x128xf32>
    %98 = arith.mulf %97, %96 : vector<8x128xf32>
    %99 = math.tanh %98 : vector<8x128xf32>
    %cst_41 = arith.constant 5.000000e-01 : f32
    %100 = vector.broadcast %cst_41 : f32 to vector<8x128xf32>
    %101 = arith.mulf %100, %99 : vector<8x128xf32>
    %cst_42 = arith.constant 5.000000e-01 : f32
    %102 = vector.broadcast %cst_42 : f32 to vector<8x128xf32>
    %103 = arith.addf %101, %102 : vector<8x128xf32>
    %104 = vector.extract_strided_slice %95 {offsets = [0, 128], sizes = [8, 128], strides = [1, 1]} : vector<8x512xf32> to vector<8x128xf32>
    %cst_43 = arith.constant 5.000000e-01 : f32
    %105 = vector.broadcast %cst_43 : f32 to vector<8x128xf32>
    %106 = arith.mulf %105, %104 : vector<8x128xf32>
    %107 = math.tanh %106 : vector<8x128xf32>
    %cst_44 = arith.constant 5.000000e-01 : f32
    %108 = vector.broadcast %cst_44 : f32 to vector<8x128xf32>
    %109 = arith.mulf %108, %107 : vector<8x128xf32>
    %cst_45 = arith.constant 5.000000e-01 : f32
    %110 = vector.broadcast %cst_45 : f32 to vector<8x128xf32>
    %111 = arith.addf %109, %110 : vector<8x128xf32>
    %112 = vector.extract_strided_slice %95 {offsets = [0, 256], sizes = [8, 128], strides = [1, 1]} : vector<8x512xf32> to vector<8x128xf32>
    %113 = math.tanh %112 : vector<8x128xf32>
    %114 = vector.extract_strided_slice %95 {offsets = [0, 384], sizes = [8, 128], strides = [1, 1]} : vector<8x512xf32> to vector<8x128xf32>
    %cst_46 = arith.constant 5.000000e-01 : f32
    %115 = vector.broadcast %cst_46 : f32 to vector<8x128xf32>
    %116 = arith.mulf %115, %114 : vector<8x128xf32>
    %117 = math.tanh %116 : vector<8x128xf32>
    %cst_47 = arith.constant 5.000000e-01 : f32
    %118 = vector.broadcast %cst_47 : f32 to vector<8x128xf32>
    %119 = arith.mulf %118, %117 : vector<8x128xf32>
    %cst_48 = arith.constant 5.000000e-01 : f32
    %120 = vector.broadcast %cst_48 : f32 to vector<8x128xf32>
    %121 = arith.addf %119, %120 : vector<8x128xf32>
    %122 = arith.mulf %111, %85 : vector<8x128xf32>
    %123 = arith.mulf %103, %113 : vector<8x128xf32>
    %124 = arith.addf %122, %123 : vector<8x128xf32>
    %125 = math.tanh %124 : vector<8x128xf32>
    %126 = arith.mulf %121, %125 : vector<8x128xf32>
    %c3_i32 = arith.constant 3 : i32
    %127 = arith.index_cast %c3_i32 : i32 to index
    %c0_49 = arith.constant 0 : index
    %c0_50 = arith.constant 0 : index
    %128 = vector.load %arg2[%127, %c0_49, %c0_50] : memref<8x8x128xbf16, #tpu.memory_space<vmem>>, vector<1x8x128xbf16>
    %129 = vector.shape_cast %128 : vector<1x8x128xbf16> to vector<8x128xbf16>
    %cst_51 = arith.constant dense<0.000000e+00> : vector<8x512xf32>
    %130 = tpu.matmul %129, %3, %cst_51 {dimension_numbers = #tpu.dot_dimension_numbers<[1], [0], [0], [1], [0, 0, 1, 1], [], []>} : vector<8x128xbf16>, vector<128x512xbf16>, vector<8x512xf32> -> vector<8x512xf32>
    %131 = arith.addf %130, %7 : vector<8x512xf32>
    %132 = arith.truncf %126 : vector<8x128xf32> to vector<8x128xbf16>
    %cst_52 = arith.constant dense<0.000000e+00> : vector<8x512xf32>
    %133 = tpu.matmul %132, %4, %cst_52 {dimension_numbers = #tpu.dot_dimension_numbers<[1], [0], [0], [1], [0, 0, 1, 1], [], []>} : vector<8x128xbf16>, vector<128x512xbf16>, vector<8x512xf32> -> vector<8x512xf32>
    %134 = arith.addf %131, %133 : vector<8x512xf32>
    %135 = vector.extract_strided_slice %134 {offsets = [0, 0], sizes = [8, 128], strides = [1, 1]} : vector<8x512xf32> to vector<8x128xf32>
    %cst_53 = arith.constant 5.000000e-01 : f32
    %136 = vector.broadcast %cst_53 : f32 to vector<8x128xf32>
    %137 = arith.mulf %136, %135 : vector<8x128xf32>
    %138 = math.tanh %137 : vector<8x128xf32>
    %cst_54 = arith.constant 5.000000e-01 : f32
    %139 = vector.broadcast %cst_54 : f32 to vector<8x128xf32>
    %140 = arith.mulf %139, %138 : vector<8x128xf32>
    %cst_55 = arith.constant 5.000000e-01 : f32
    %141 = vector.broadcast %cst_55 : f32 to vector<8x128xf32>
    %142 = arith.addf %140, %141 : vector<8x128xf32>
    %143 = vector.extract_strided_slice %134 {offsets = [0, 128], sizes = [8, 128], strides = [1, 1]} : vector<8x512xf32> to vector<8x128xf32>
    %cst_56 = arith.constant 5.000000e-01 : f32
    %144 = vector.broadcast %cst_56 : f32 to vector<8x128xf32>
    %145 = arith.mulf %144, %143 : vector<8x128xf32>
    %146 = math.tanh %145 : vector<8x128xf32>
    %cst_57 = arith.constant 5.000000e-01 : f32
    %147 = vector.broadcast %cst_57 : f32 to vector<8x128xf32>
    %148 = arith.mulf %147, %146 : vector<8x128xf32>
    %cst_58 = arith.constant 5.000000e-01 : f32
    %149 = vector.broadcast %cst_58 : f32 to vector<8x128xf32>
    %150 = arith.addf %148, %149 : vector<8x128xf32>
    %151 = vector.extract_strided_slice %134 {offsets = [0, 256], sizes = [8, 128], strides = [1, 1]} : vector<8x512xf32> to vector<8x128xf32>
    %152 = math.tanh %151 : vector<8x128xf32>
    %153 = vector.extract_strided_slice %134 {offsets = [0, 384], sizes = [8, 128], strides = [1, 1]} : vector<8x512xf32> to vector<8x128xf32>
    %cst_59 = arith.constant 5.000000e-01 : f32
    %154 = vector.broadcast %cst_59 : f32 to vector<8x128xf32>
    %155 = arith.mulf %154, %153 : vector<8x128xf32>
    %156 = math.tanh %155 : vector<8x128xf32>
    %cst_60 = arith.constant 5.000000e-01 : f32
    %157 = vector.broadcast %cst_60 : f32 to vector<8x128xf32>
    %158 = arith.mulf %157, %156 : vector<8x128xf32>
    %cst_61 = arith.constant 5.000000e-01 : f32
    %159 = vector.broadcast %cst_61 : f32 to vector<8x128xf32>
    %160 = arith.addf %158, %159 : vector<8x128xf32>
    %161 = arith.mulf %150, %124 : vector<8x128xf32>
    %162 = arith.mulf %142, %152 : vector<8x128xf32>
    %163 = arith.addf %161, %162 : vector<8x128xf32>
    %164 = math.tanh %163 : vector<8x128xf32>
    %165 = arith.mulf %160, %164 : vector<8x128xf32>
    %c4_i32 = arith.constant 4 : i32
    %166 = arith.index_cast %c4_i32 : i32 to index
    %c0_62 = arith.constant 0 : index
    %c0_63 = arith.constant 0 : index
    %167 = vector.load %arg2[%166, %c0_62, %c0_63] : memref<8x8x128xbf16, #tpu.memory_space<vmem>>, vector<1x8x128xbf16>
    %168 = vector.shape_cast %167 : vector<1x8x128xbf16> to vector<8x128xbf16>
    %cst_64 = arith.constant dense<0.000000e+00> : vector<8x512xf32>
    %169 = tpu.matmul %168, %3, %cst_64 {dimension_numbers = #tpu.dot_dimension_numbers<[1], [0], [0], [1], [0, 0, 1, 1], [], []>} : vector<8x128xbf16>, vector<128x512xbf16>, vector<8x512xf32> -> vector<8x512xf32>
    %170 = arith.addf %169, %7 : vector<8x512xf32>
    %171 = arith.truncf %165 : vector<8x128xf32> to vector<8x128xbf16>
    %cst_65 = arith.constant dense<0.000000e+00> : vector<8x512xf32>
    %172 = tpu.matmul %171, %4, %cst_65 {dimension_numbers = #tpu.dot_dimension_numbers<[1], [0], [0], [1], [0, 0, 1, 1], [], []>} : vector<8x128xbf16>, vector<128x512xbf16>, vector<8x512xf32> -> vector<8x512xf32>
    %173 = arith.addf %170, %172 : vector<8x512xf32>
    %174 = vector.extract_strided_slice %173 {offsets = [0, 0], sizes = [8, 128], strides = [1, 1]} : vector<8x512xf32> to vector<8x128xf32>
    %cst_66 = arith.constant 5.000000e-01 : f32
    %175 = vector.broadcast %cst_66 : f32 to vector<8x128xf32>
    %176 = arith.mulf %175, %174 : vector<8x128xf32>
    %177 = math.tanh %176 : vector<8x128xf32>
    %cst_67 = arith.constant 5.000000e-01 : f32
    %178 = vector.broadcast %cst_67 : f32 to vector<8x128xf32>
    %179 = arith.mulf %178, %177 : vector<8x128xf32>
    %cst_68 = arith.constant 5.000000e-01 : f32
    %180 = vector.broadcast %cst_68 : f32 to vector<8x128xf32>
    %181 = arith.addf %179, %180 : vector<8x128xf32>
    %182 = vector.extract_strided_slice %173 {offsets = [0, 128], sizes = [8, 128], strides = [1, 1]} : vector<8x512xf32> to vector<8x128xf32>
    %cst_69 = arith.constant 5.000000e-01 : f32
    %183 = vector.broadcast %cst_69 : f32 to vector<8x128xf32>
    %184 = arith.mulf %183, %182 : vector<8x128xf32>
    %185 = math.tanh %184 : vector<8x128xf32>
    %cst_70 = arith.constant 5.000000e-01 : f32
    %186 = vector.broadcast %cst_70 : f32 to vector<8x128xf32>
    %187 = arith.mulf %186, %185 : vector<8x128xf32>
    %cst_71 = arith.constant 5.000000e-01 : f32
    %188 = vector.broadcast %cst_71 : f32 to vector<8x128xf32>
    %189 = arith.addf %187, %188 : vector<8x128xf32>
    %190 = vector.extract_strided_slice %173 {offsets = [0, 256], sizes = [8, 128], strides = [1, 1]} : vector<8x512xf32> to vector<8x128xf32>
    %191 = math.tanh %190 : vector<8x128xf32>
    %192 = vector.extract_strided_slice %173 {offsets = [0, 384], sizes = [8, 128], strides = [1, 1]} : vector<8x512xf32> to vector<8x128xf32>
    %cst_72 = arith.constant 5.000000e-01 : f32
    %193 = vector.broadcast %cst_72 : f32 to vector<8x128xf32>
    %194 = arith.mulf %193, %192 : vector<8x128xf32>
    %195 = math.tanh %194 : vector<8x128xf32>
    %cst_73 = arith.constant 5.000000e-01 : f32
    %196 = vector.broadcast %cst_73 : f32 to vector<8x128xf32>
    %197 = arith.mulf %196, %195 : vector<8x128xf32>
    %cst_74 = arith.constant 5.000000e-01 : f32
    %198 = vector.broadcast %cst_74 : f32 to vector<8x128xf32>
    %199 = arith.addf %197, %198 : vector<8x128xf32>
    %200 = arith.mulf %189, %163 : vector<8x128xf32>
    %201 = arith.mulf %181, %191 : vector<8x128xf32>
    %202 = arith.addf %200, %201 : vector<8x128xf32>
    %203 = math.tanh %202 : vector<8x128xf32>
    %204 = arith.mulf %199, %203 : vector<8x128xf32>
    %c5_i32 = arith.constant 5 : i32
    %205 = arith.index_cast %c5_i32 : i32 to index
    %c0_75 = arith.constant 0 : index
    %c0_76 = arith.constant 0 : index
    %206 = vector.load %arg2[%205, %c0_75, %c0_76] : memref<8x8x128xbf16, #tpu.memory_space<vmem>>, vector<1x8x128xbf16>
    %207 = vector.shape_cast %206 : vector<1x8x128xbf16> to vector<8x128xbf16>
    %cst_77 = arith.constant dense<0.000000e+00> : vector<8x512xf32>
    %208 = tpu.matmul %207, %3, %cst_77 {dimension_numbers = #tpu.dot_dimension_numbers<[1], [0], [0], [1], [0, 0, 1, 1], [], []>} : vector<8x128xbf16>, vector<128x512xbf16>, vector<8x512xf32> -> vector<8x512xf32>
    %209 = arith.addf %208, %7 : vector<8x512xf32>
    %210 = arith.truncf %204 : vector<8x128xf32> to vector<8x128xbf16>
    %cst_78 = arith.constant dense<0.000000e+00> : vector<8x512xf32>
    %211 = tpu.matmul %210, %4, %cst_78 {dimension_numbers = #tpu.dot_dimension_numbers<[1], [0], [0], [1], [0, 0, 1, 1], [], []>} : vector<8x128xbf16>, vector<128x512xbf16>, vector<8x512xf32> -> vector<8x512xf32>
    %212 = arith.addf %209, %211 : vector<8x512xf32>
    %213 = vector.extract_strided_slice %212 {offsets = [0, 0], sizes = [8, 128], strides = [1, 1]} : vector<8x512xf32> to vector<8x128xf32>
    %cst_79 = arith.constant 5.000000e-01 : f32
    %214 = vector.broadcast %cst_79 : f32 to vector<8x128xf32>
    %215 = arith.mulf %214, %213 : vector<8x128xf32>
    %216 = math.tanh %215 : vector<8x128xf32>
    %cst_80 = arith.constant 5.000000e-01 : f32
    %217 = vector.broadcast %cst_80 : f32 to vector<8x128xf32>
    %218 = arith.mulf %217, %216 : vector<8x128xf32>
    %cst_81 = arith.constant 5.000000e-01 : f32
    %219 = vector.broadcast %cst_81 : f32 to vector<8x128xf32>
    %220 = arith.addf %218, %219 : vector<8x128xf32>
    %221 = vector.extract_strided_slice %212 {offsets = [0, 128], sizes = [8, 128], strides = [1, 1]} : vector<8x512xf32> to vector<8x128xf32>
    %cst_82 = arith.constant 5.000000e-01 : f32
    %222 = vector.broadcast %cst_82 : f32 to vector<8x128xf32>
    %223 = arith.mulf %222, %221 : vector<8x128xf32>
    %224 = math.tanh %223 : vector<8x128xf32>
    %cst_83 = arith.constant 5.000000e-01 : f32
    %225 = vector.broadcast %cst_83 : f32 to vector<8x128xf32>
    %226 = arith.mulf %225, %224 : vector<8x128xf32>
    %cst_84 = arith.constant 5.000000e-01 : f32
    %227 = vector.broadcast %cst_84 : f32 to vector<8x128xf32>
    %228 = arith.addf %226, %227 : vector<8x128xf32>
    %229 = vector.extract_strided_slice %212 {offsets = [0, 256], sizes = [8, 128], strides = [1, 1]} : vector<8x512xf32> to vector<8x128xf32>
    %230 = math.tanh %229 : vector<8x128xf32>
    %231 = vector.extract_strided_slice %212 {offsets = [0, 384], sizes = [8, 128], strides = [1, 1]} : vector<8x512xf32> to vector<8x128xf32>
    %cst_85 = arith.constant 5.000000e-01 : f32
    %232 = vector.broadcast %cst_85 : f32 to vector<8x128xf32>
    %233 = arith.mulf %232, %231 : vector<8x128xf32>
    %234 = math.tanh %233 : vector<8x128xf32>
    %cst_86 = arith.constant 5.000000e-01 : f32
    %235 = vector.broadcast %cst_86 : f32 to vector<8x128xf32>
    %236 = arith.mulf %235, %234 : vector<8x128xf32>
    %cst_87 = arith.constant 5.000000e-01 : f32
    %237 = vector.broadcast %cst_87 : f32 to vector<8x128xf32>
    %238 = arith.addf %236, %237 : vector<8x128xf32>
    %239 = arith.mulf %228, %202 : vector<8x128xf32>
    %240 = arith.mulf %220, %230 : vector<8x128xf32>
    %241 = arith.addf %239, %240 : vector<8x128xf32>
    %242 = math.tanh %241 : vector<8x128xf32>
    %243 = arith.mulf %238, %242 : vector<8x128xf32>
    %c6_i32 = arith.constant 6 : i32
    %244 = arith.index_cast %c6_i32 : i32 to index
    %c0_88 = arith.constant 0 : index
    %c0_89 = arith.constant 0 : index
    %245 = vector.load %arg2[%244, %c0_88, %c0_89] : memref<8x8x128xbf16, #tpu.memory_space<vmem>>, vector<1x8x128xbf16>
    %246 = vector.shape_cast %245 : vector<1x8x128xbf16> to vector<8x128xbf16>
    %cst_90 = arith.constant dense<0.000000e+00> : vector<8x512xf32>
    %247 = tpu.matmul %246, %3, %cst_90 {dimension_numbers = #tpu.dot_dimension_numbers<[1], [0], [0], [1], [0, 0, 1, 1], [], []>} : vector<8x128xbf16>, vector<128x512xbf16>, vector<8x512xf32> -> vector<8x512xf32>
    %248 = arith.addf %247, %7 : vector<8x512xf32>
    %249 = arith.truncf %243 : vector<8x128xf32> to vector<8x128xbf16>
    %cst_91 = arith.constant dense<0.000000e+00> : vector<8x512xf32>
    %250 = tpu.matmul %249, %4, %cst_91 {dimension_numbers = #tpu.dot_dimension_numbers<[1], [0], [0], [1], [0, 0, 1, 1], [], []>} : vector<8x128xbf16>, vector<128x512xbf16>, vector<8x512xf32> -> vector<8x512xf32>
    %251 = arith.addf %248, %250 : vector<8x512xf32>
    %252 = vector.extract_strided_slice %251 {offsets = [0, 0], sizes = [8, 128], strides = [1, 1]} : vector<8x512xf32> to vector<8x128xf32>
    %cst_92 = arith.constant 5.000000e-01 : f32
    %253 = vector.broadcast %cst_92 : f32 to vector<8x128xf32>
    %254 = arith.mulf %253, %252 : vector<8x128xf32>
    %255 = math.tanh %254 : vector<8x128xf32>
    %cst_93 = arith.constant 5.000000e-01 : f32
    %256 = vector.broadcast %cst_93 : f32 to vector<8x128xf32>
    %257 = arith.mulf %256, %255 : vector<8x128xf32>
    %cst_94 = arith.constant 5.000000e-01 : f32
    %258 = vector.broadcast %cst_94 : f32 to vector<8x128xf32>
    %259 = arith.addf %257, %258 : vector<8x128xf32>
    %260 = vector.extract_strided_slice %251 {offsets = [0, 128], sizes = [8, 128], strides = [1, 1]} : vector<8x512xf32> to vector<8x128xf32>
    %cst_95 = arith.constant 5.000000e-01 : f32
    %261 = vector.broadcast %cst_95 : f32 to vector<8x128xf32>
    %262 = arith.mulf %261, %260 : vector<8x128xf32>
    %263 = math.tanh %262 : vector<8x128xf32>
    %cst_96 = arith.constant 5.000000e-01 : f32
    %264 = vector.broadcast %cst_96 : f32 to vector<8x128xf32>
    %265 = arith.mulf %264, %263 : vector<8x128xf32>
    %cst_97 = arith.constant 5.000000e-01 : f32
    %266 = vector.broadcast %cst_97 : f32 to vector<8x128xf32>
    %267 = arith.addf %265, %266 : vector<8x128xf32>
    %268 = vector.extract_strided_slice %251 {offsets = [0, 256], sizes = [8, 128], strides = [1, 1]} : vector<8x512xf32> to vector<8x128xf32>
    %269 = math.tanh %268 : vector<8x128xf32>
    %270 = vector.extract_strided_slice %251 {offsets = [0, 384], sizes = [8, 128], strides = [1, 1]} : vector<8x512xf32> to vector<8x128xf32>
    %cst_98 = arith.constant 5.000000e-01 : f32
    %271 = vector.broadcast %cst_98 : f32 to vector<8x128xf32>
    %272 = arith.mulf %271, %270 : vector<8x128xf32>
    %273 = math.tanh %272 : vector<8x128xf32>
    %cst_99 = arith.constant 5.000000e-01 : f32
    %274 = vector.broadcast %cst_99 : f32 to vector<8x128xf32>
    %275 = arith.mulf %274, %273 : vector<8x128xf32>
    %cst_100 = arith.constant 5.000000e-01 : f32
    %276 = vector.broadcast %cst_100 : f32 to vector<8x128xf32>
    %277 = arith.addf %275, %276 : vector<8x128xf32>
    %278 = arith.mulf %267, %241 : vector<8x128xf32>
    %279 = arith.mulf %259, %269 : vector<8x128xf32>
    %280 = arith.addf %278, %279 : vector<8x128xf32>
    %281 = math.tanh %280 : vector<8x128xf32>
    %282 = arith.mulf %277, %281 : vector<8x128xf32>
    %c7_i32 = arith.constant 7 : i32
    %283 = arith.index_cast %c7_i32 : i32 to index
    %c0_101 = arith.constant 0 : index
    %c0_102 = arith.constant 0 : index
    %284 = vector.load %arg2[%283, %c0_101, %c0_102] : memref<8x8x128xbf16, #tpu.memory_space<vmem>>, vector<1x8x128xbf16>
    %285 = vector.shape_cast %284 : vector<1x8x128xbf16> to vector<8x128xbf16>
    %cst_103 = arith.constant dense<0.000000e+00> : vector<8x512xf32>
    %286 = tpu.matmul %285, %3, %cst_103 {dimension_numbers = #tpu.dot_dimension_numbers<[1], [0], [0], [1], [0, 0, 1, 1], [], []>} : vector<8x128xbf16>, vector<128x512xbf16>, vector<8x512xf32> -> vector<8x512xf32>
    %287 = arith.addf %286, %7 : vector<8x512xf32>
    %288 = arith.truncf %282 : vector<8x128xf32> to vector<8x128xbf16>
    %cst_104 = arith.constant dense<0.000000e+00> : vector<8x512xf32>
    %289 = tpu.matmul %288, %4, %cst_104 {dimension_numbers = #tpu.dot_dimension_numbers<[1], [0], [0], [1], [0, 0, 1, 1], [], []>} : vector<8x128xbf16>, vector<128x512xbf16>, vector<8x512xf32> -> vector<8x512xf32>
    %290 = arith.addf %287, %289 : vector<8x512xf32>
    %291 = vector.extract_strided_slice %290 {offsets = [0, 0], sizes = [8, 128], strides = [1, 1]} : vector<8x512xf32> to vector<8x128xf32>
    %cst_105 = arith.constant 5.000000e-01 : f32
    %292 = vector.broadcast %cst_105 : f32 to vector<8x128xf32>
    %293 = arith.mulf %292, %291 : vector<8x128xf32>
    %294 = math.tanh %293 : vector<8x128xf32>
    %cst_106 = arith.constant 5.000000e-01 : f32
    %295 = vector.broadcast %cst_106 : f32 to vector<8x128xf32>
    %296 = arith.mulf %295, %294 : vector<8x128xf32>
    %cst_107 = arith.constant 5.000000e-01 : f32
    %297 = vector.broadcast %cst_107 : f32 to vector<8x128xf32>
    %298 = arith.addf %296, %297 : vector<8x128xf32>
    %299 = vector.extract_strided_slice %290 {offsets = [0, 128], sizes = [8, 128], strides = [1, 1]} : vector<8x512xf32> to vector<8x128xf32>
    %cst_108 = arith.constant 5.000000e-01 : f32
    %300 = vector.broadcast %cst_108 : f32 to vector<8x128xf32>
    %301 = arith.mulf %300, %299 : vector<8x128xf32>
    %302 = math.tanh %301 : vector<8x128xf32>
    %cst_109 = arith.constant 5.000000e-01 : f32
    %303 = vector.broadcast %cst_109 : f32 to vector<8x128xf32>
    %304 = arith.mulf %303, %302 : vector<8x128xf32>
    %cst_110 = arith.constant 5.000000e-01 : f32
    %305 = vector.broadcast %cst_110 : f32 to vector<8x128xf32>
    %306 = arith.addf %304, %305 : vector<8x128xf32>
    %307 = vector.extract_strided_slice %290 {offsets = [0, 256], sizes = [8, 128], strides = [1, 1]} : vector<8x512xf32> to vector<8x128xf32>
    %308 = math.tanh %307 : vector<8x128xf32>
    %309 = vector.extract_strided_slice %290 {offsets = [0, 384], sizes = [8, 128], strides = [1, 1]} : vector<8x512xf32> to vector<8x128xf32>
    %cst_111 = arith.constant 5.000000e-01 : f32
    %310 = vector.broadcast %cst_111 : f32 to vector<8x128xf32>
    %311 = arith.mulf %310, %309 : vector<8x128xf32>
    %312 = math.tanh %311 : vector<8x128xf32>
    %cst_112 = arith.constant 5.000000e-01 : f32
    %313 = vector.broadcast %cst_112 : f32 to vector<8x128xf32>
    %314 = arith.mulf %313, %312 : vector<8x128xf32>
    %cst_113 = arith.constant 5.000000e-01 : f32
    %315 = vector.broadcast %cst_113 : f32 to vector<8x128xf32>
    %316 = arith.addf %314, %315 : vector<8x128xf32>
    %317 = arith.mulf %306, %280 : vector<8x128xf32>
    %318 = arith.mulf %298, %308 : vector<8x128xf32>
    %319 = arith.addf %317, %318 : vector<8x128xf32>
    %320 = math.tanh %319 : vector<8x128xf32>
    %321 = arith.mulf %316, %320 : vector<8x128xf32>
    %c8_i32 = arith.constant 8 : i32
    %c0_114 = arith.constant 0 : index
    %c0_115 = arith.constant 0 : index
    %322 = vector.load %arg9[%c0_114, %c0_115] : memref<8x128xf32, #tpu.memory_space<vmem>>, vector<8x128xf32>
    tpu.vector_store %arg9[%c0_114, %c0_115], %321 {strides = array<i32>} : memref<8x128xf32, #tpu.memory_space<vmem>>, vector<8x128xf32>,
    %c0_116 = arith.constant 0 : index
    %c0_117 = arith.constant 0 : index
    %323 = vector.load %arg10[%c0_116, %c0_117] : memref<8x128xf32, #tpu.memory_space<vmem>>, vector<8x128xf32>
    tpu.vector_store %arg10[%c0_116, %c0_117], %319 {strides = array<i32>} : memref<8x128xf32, #tpu.memory_space<vmem>>, vector<8x128xf32>,
    %c0_i32_118 = arith.constant 0 : i32
    %324 = arith.cmpi eq, %arg1, %c0_i32_118 : i32
    %325 = arith.extui %324 : i1 to i32
    %c0_i32_119 = arith.constant 0 : i32
    %326 = arith.cmpi ne, %325, %c0_i32_119 : i32
    scf.if %326 {
      %c0_120 = arith.constant 0 : index
      %c0_121 = arith.constant 0 : index
      %327 = vector.load %arg9[%c0_120, %c0_121] : memref<8x128xf32, #tpu.memory_space<vmem>>, vector<8x128xf32>
      %328 = arith.truncf %327 : vector<8x128xf32> to vector<8x128xbf16>
      %c0_122 = arith.constant 0 : index
      %c0_123 = arith.constant 0 : index
      %329 = vector.load %arg6[%c0_122, %c0_123] : memref<128x128xbf16, #tpu.memory_space<vmem>>, vector<128x128xbf16>
      %cst_124 = arith.constant dense<0.000000e+00> : vector<8x128xf32>
      %330 = tpu.matmul %328, %329, %cst_124 {dimension_numbers = #tpu.dot_dimension_numbers<[1], [0], [0], [1], [0, 0, 1, 1], [], []>} : vector<8x128xbf16>, vector<128x128xbf16>, vector<8x128xf32> -> vector<8x128xf32>
      %c0_125 = arith.constant 0 : index
      %c0_126 = arith.constant 0 : index
      %331 = vector.load %arg7[%c0_125, %c0_126] : memref<1x128xf32, #tpu.memory_space<vmem>>, vector<1x128xf32>
      %332 = vector.broadcast %331 : vector<1x128xf32> to vector<8x128xf32>
      %333 = arith.addf %330, %332 : vector<8x128xf32>
      %c0_127 = arith.constant 0 : index
      %c0_128 = arith.constant 0 : index
      %334 = vector.load %arg8[%c0_127, %c0_128] : memref<8x128xf32, #tpu.memory_space<vmem>>, vector<8x128xf32>
      tpu.vector_store %arg8[%c0_127, %c0_128], %333 {strides = array<i32>} : memref<8x128xf32, #tpu.memory_space<vmem>>, vector<8x128xf32>,
    } else {
    }
    return
  }
  func.func @transform_0(%arg0: i32, %arg1: i32) -> (i32, i32, i32) {
    %c0_i32 = arith.constant 0 : i32
    %c0_i32_0 = arith.constant 0 : i32
    return %arg1, %arg0, %c0_i32 : i32, i32, i32
  }
  func.func @transform_1(%arg0: i32, %arg1: i32) -> (i32, i32) {
    %c0_i32 = arith.constant 0 : i32
    %c0_i32_0 = arith.constant 0 : i32
    %c0_i32_1 = arith.constant 0 : i32
    return %c0_i32, %c0_i32_0 : i32, i32
  }
  func.func @transform_2(%arg0: i32, %arg1: i32) -> (i32, i32) {
    %c0_i32 = arith.constant 0 : i32
    %c0_i32_0 = arith.constant 0 : i32
    %c0_i32_1 = arith.constant 0 : i32
    return %c0_i32, %c0_i32_0 : i32, i32
  }
  func.func @transform_3(%arg0: i32, %arg1: i32) -> (i32, i32) {
    %c0_i32 = arith.constant 0 : i32
    %c0_i32_0 = arith.constant 0 : i32
    %c0_i32_1 = arith.constant 0 : i32
    return %c0_i32, %c0_i32_0 : i32, i32
  }
  func.func @transform_4(%arg0: i32, %arg1: i32) -> (i32, i32) {
    %c0_i32 = arith.constant 0 : i32
    %c0_i32_0 = arith.constant 0 : i32
    %c0_i32_1 = arith.constant 0 : i32
    return %c0_i32, %c0_i32_0 : i32, i32
  }
  func.func @transform_5(%arg0: i32, %arg1: i32) -> (i32, i32) {
    %c0_i32 = arith.constant 0 : i32
    %c0_i32_0 = arith.constant 0 : i32
    %c0_i32_1 = arith.constant 0 : i32
    return %c0_i32, %c0_i32_0 : i32, i32
  }
  func.func @transform_6(%arg0: i32, %arg1: i32) -> (i32, i32) {
    %c0_i32 = arith.constant 0 : i32
    %c0_i32_0 = arith.constant 0 : i32
    return %arg0, %c0_i32 : i32, i32
  }
}

</mosaic_0001>

<llo_original>
// kernel: tpu_custom_call.1
$region0: #{tpu_custom_call.1}
  #allocation0 [shape = 'u32[]', space=smem, size = 0x4, offset = 0x4, fixed_abs, tag = 'smem constant byte address 0x4 - core index']
  #allocation1 [shape = 'u32[144,128]{1,0:T(1,128)}', space=vmem, size = 0x12000, scoped, tag = 'internal scratch']
  #allocation2 [shape = 'f32[8,128]{1,0:T(8,128)}', space=vmem, size = 0x1000, scoped, tag = 'scratch operand']
  #allocation3 [shape = 'f32[8,128]{1,0:T(8,128)}', space=vmem, size = 0x1000, scoped, tag = 'scratch operand']
  %s0 = inlined_call_operand.hbm [shape: bf16[8,8,128], index: 0, kind: input, shape index: {}]
  %s1 = inlined_call_operand.hbm [shape: bf16[128,512], index: 1, kind: input, shape index: {}]
  %s2 = inlined_call_operand.hbm [shape: bf16[128,512], index: 2, kind: input, shape index: {}]
  %s3 = inlined_call_operand.vmem [shape: f32[1,512], index: 3, kind: input, shape index: {}]
  %s4 = inlined_call_operand.hbm [shape: bf16[128,128], index: 4, kind: input, shape index: {}]
  %s5 = inlined_call_operand.vmem [shape: f32[1,128], index: 5, kind: input, shape index: {}]
  %s6 = inlined_call_operand.hbm [shape: f32[8,128], index: 6, kind: output, shape index: {}]
  %s7 = sld [smem:[#allocation0]]
  $region58: #{tpu_custom_call.1} parent=0
    _
  %s9 = ssub.s32 1, %s7
  %s10 = scalar_select 0, %s9, %s7
  $region1: #{tpu_custom_call.1} parent=0
    #allocation4 [shape = 'u8[16384]{0}', space=vmem, size = 0x4000, scoped, tag = 'input window, operand 0, single buffered']
    #allocation5 [shape = 's32[1]{0}', space=sflag, size = 0x4, scoped, tag = 'scoped memory for tpu_custom_call.1']
    #allocation6 [shape = 's32[1]{0}', space=sflag, size = 0x4, scoped, tag = 'scoped memory for tpu_custom_call.1']
    #allocation7 [shape = 'u8[131072]{0}', space=vmem, size = 0x20000, scoped, tag = 'input window, operand 1, single buffered']
    #allocation8 [shape = 's32[1]{0}', space=sflag, size = 0x4, scoped, tag = 'scoped memory for tpu_custom_call.1']
    #allocation9 [shape = 'u8[131072]{0}', space=vmem, size = 0x20000, scoped, tag = 'input window, operand 2, single buffered']
    #allocation10 [shape = 'u8[32768]{0}', space=vmem, size = 0x8000, scoped, tag = 'input window, operand 4, single buffered']
    #allocation11 [shape = 's32[1]{0}', space=sflag, size = 0x4, scoped, tag = 'scoped memory for tpu_custom_call.1']
    #allocation12 [shape = 'u8[4096]{0}', space=vmem, size = 0x1000, scoped, tag = 'output window, operand 0, single buffered']
    %11 = vsyncpa [#allocation5], 0
    %12 = vsyncpa [#allocation8], 0
    %13 = vsyncpa [#allocation11], 0
    %14 = vsyncpa [#allocation6], 0
    // Predicated region
    $region2: #{tpu_custom_call.1} parent=1 // pred_check
      _
    $region3: #{tpu_custom_call.1} parent=1 // pred_check_branch
      %16 = sbr.rel (0) target = $region5
    $region4: #{tpu_custom_call.1} parent=1 // pred_region
      %s18 = ssub.s32 512, 512
      %19 = vsyncadd [#allocation5], %s18
      %s20 = sshll.u32 [#allocation4], 4
      %s21 = int_to_ptr.vmem [resolvable:$true] %s20
      %26 = dma.hbm_to_vmem [thread:$0]  %s0, 512, %s21, [#allocation5], 64, 64, 4
    $region5: #{tpu_custom_call.1} parent=1 // pred_fallthru
      _
    // Predicated region
    $region6: #{tpu_custom_call.1} parent=1 // pred_check
      _
    $region7: #{tpu_custom_call.1} parent=1 // pred_check_branch
      %28 = sbr.rel (0) target = $region9
    $region8: #{tpu_custom_call.1} parent=1 // pred_region
      %s30 = ssub.s32 4096, 4096
      %31 = vsyncadd [#allocation8], %s30
      %s32 = sshll.u32 [#allocation7], 4
      %s33 = int_to_ptr.vmem [resolvable:$true] %s32
      %38 = dma.hbm_to_vmem [thread:$0]  %s1, 4096, %s33, [#allocation8], 256, 256, 16
    $region9: #{tpu_custom_call.1} parent=1 // pred_fallthru
      _
    // Predicated region
    $region10: #{tpu_custom_call.1} parent=1 // pred_check
      _
    $region11: #{tpu_custom_call.1} parent=1 // pred_check_branch
      %40 = sbr.rel (0) target = $region13
    $region12: #{tpu_custom_call.1} parent=1 // pred_region
      %s42 = ssub.s32 4096, 4096
      %43 = vsyncadd [#allocation8], %s42
      %s44 = sshll.u32 [#allocation9], 4
      %s45 = int_to_ptr.vmem [resolvable:$true] %s44
      %50 = dma.hbm_to_vmem [thread:$0]  %s2, 4096, %s45, [#allocation8], 256, 256, 16
    $region13: #{tpu_custom_call.1} parent=1 // pred_fallthru
      _
    // Predicated region
    $region14: #{tpu_custom_call.1} parent=1 // pred_check
      _
    $region15: #{tpu_custom_call.1} parent=1 // pred_check_branch
      %52 = sbr.rel (0) target = $region17
    $region16: #{tpu_custom_call.1} parent=1 // pred_region
      _
    $region17: #{tpu_custom_call.1} parent=1 // pred_fallthru
      _
    // Predicated region
    $region18: #{tpu_custom_call.1} parent=1 // pred_check
      _
    $region19: #{tpu_custom_call.1} parent=1 // pred_check_branch
      %54 = sbr.rel (0) target = $region21
    $region20: #{tpu_custom_call.1} parent=1 // pred_region
      %s56 = ssub.s32 1024, 1024
      %57 = vsyncadd [#allocation11], %s56
      %s58 = sshll.u32 [#allocation10], 4
      %s59 = int_to_ptr.vmem [resolvable:$true] %s58
      %64 = dma.hbm_to_vmem [thread:$0]  %s4, 1024, %s59, [#allocation11], 64, 64, 4
    $region21: #{tpu_custom_call.1} parent=1 // pred_fallthru
      _
    // Predicated region
    $region22: #{tpu_custom_call.1} parent=1 // pred_check
      _
    $region23: #{tpu_custom_call.1} parent=1 // pred_check_branch
      %66 = sbr.rel (0) target = $region25
    $region24: #{tpu_custom_call.1} parent=1 // pred_region
      _
    $region25: #{tpu_custom_call.1} parent=1 // pred_fallthru
      _
    // Predicated region
    $region26: #{tpu_custom_call.1} parent=1 // pred_check
      _
    $region27: #{tpu_custom_call.1} parent=1 // pred_check_branch
      %68 = sbr.rel (0) target = $region29
    $region28: #{tpu_custom_call.1} parent=1 // pred_region
      %69 = dma.done [#allocation5], 512
    $region29: #{tpu_custom_call.1} parent=1 // pred_fallthru
      _
    // Predicated region
    $region30: #{tpu_custom_call.1} parent=1 // pred_check
      _
    $region31: #{tpu_custom_call.1} parent=1 // pred_check_branch
      %71 = sbr.rel (0) target = $region33
    $region32: #{tpu_custom_call.1} parent=1 // pred_region
      %72 = dma.done [#allocation8], 4096
    $region33: #{tpu_custom_call.1} parent=1 // pred_fallthru
      _
    // Predicated region
    $region34: #{tpu_custom_call.1} parent=1 // pred_check
      _
    $region35: #{tpu_custom_call.1} parent=1 // pred_check_branch
      %74 = sbr.rel (0) target = $region37
    $region36: #{tpu_custom_call.1} parent=1 // pred_region
      %75 = dma.done [#allocation8], 4096
    $region37: #{tpu_custom_call.1} parent=1 // pred_fallthru
      _
    // Predicated region
    $region38: #{tpu_custom_call.1} parent=1 // pred_check
      _
    $region39: #{tpu_custom_call.1} parent=1 // pred_check_branch
      %77 = sbr.rel (0) target = $region41
    $region40: #{tpu_custom_call.1} parent=1 // pred_region
      %78 = dma.done [#allocation11], 1024
    $region41: #{tpu_custom_call.1} parent=1 // pred_fallthru
      _
    %p80 = scmp.eq.s32.totalorder 0, 0
    // Predicated region
    $region42: #{tpu_custom_call.1} parent=1 // pred_check
      %p81 = pneg %p80
    $region43: #{tpu_custom_call.1} parent=1 // pred_check_branch
      %83 = sbr.rel (%p81) target = $region45
    $region44: #{tpu_custom_call.1} parent=1 // pred_region
      %84 = vst [vmem:[#allocation2] sm:$0xff] 0.0
      %85 = vst [vmem:[#allocation3] sm:$0xff] 0.0
    $region45: #{tpu_custom_call.1} parent=1 // pred_fallthru
      _
    %v86 = vld [vmem:[#allocation7] sm:$0xff]
    %v87 = vld [vmem:[#allocation7 + $0x8] sm:$0xff]
    %v88 = vld [vmem:[#allocation7 + $0x10] sm:$0xff]
    %v89 = vld [vmem:[#allocation7 + $0x18] sm:$0xff]
    %v90 = vld [vmem:[#allocation7 + $0x20] sm:$0xff]
    %v91 = vld [vmem:[#allocation7 + $0x28] sm:$0xff]
    %v92 = vld [vmem:[#allocation7 + $0x30] sm:$0xff]
    %v93 = vld [vmem:[#allocation7 + $0x38] sm:$0xff]
    %v94 = vld [vmem:[#allocation7 + $0x40] sm:$0xff]
    %v95 = vld [vmem:[#allocation7 + $0x48] sm:$0xff]
    %v96 = vld [vmem:[#allocation7 + $0x50] sm:$0xff]
    %v97 = vld [vmem:[#allocation7 + $0x58] sm:$0xff]
    %v98 = vld [vmem:[#allocation7 + $0x60] sm:$0xff]
    %v99 = vld [vmem:[#allocation7 + $0x68] sm:$0xff]
    %v100 = vld [vmem:[#allocation7 + $0x70] sm:$0xff]
    %v101 = vld [vmem:[#allocation7 + $0x78] sm:$0xff]
    %v102 = vld [vmem:[#allocation7 + $0x80] sm:$0xff]
    %v103 = vld [vmem:[#allocation7 + $0x88] sm:$0xff]
    %v104 = vld [vmem:[#allocation7 + $0x90] sm:$0xff]
    %v105 = vld [vmem:[#allocation7 + $0x98] sm:$0xff]
    %v106 = vld [vmem:[#allocation7 + $0xa0] sm:$0xff]
    %v107 = vld [vmem:[#allocation7 + $0xa8] sm:$0xff]
    %v108 = vld [vmem:[#allocation7 + $0xb0] sm:$0xff]
    %v109 = vld [vmem:[#allocation7 + $0xb8] sm:$0xff]
    %v110 = vld [vmem:[#allocation7 + $0xc0] sm:$0xff]
    %v111 = vld [vmem:[#allocation7 + $0xc8] sm:$0xff]
    %v112 = vld [vmem:[#allocation7 + $0xd0] sm:$0xff]
    %v113 = vld [vmem:[#allocation7 + $0xd8] sm:$0xff]
    %v114 = vld [vmem:[#allocation7 + $0xe0] sm:$0xff]
    %v115 = vld [vmem:[#allocation7 + $0xe8] sm:$0xff]
    %v116 = vld [vmem:[#allocation7 + $0xf0] sm:$0xff]
    %v117 = vld [vmem:[#allocation7 + $0xf8] sm:$0xff]
    %v118 = vld [vmem:[#allocation9] sm:$0xff]
    %v119 = vld [vmem:[#allocation9 + $0x8] sm:$0xff]
    %v120 = vld [vmem:[#allocation9 + $0x10] sm:$0xff]
    %v121 = vld [vmem:[#allocation9 + $0x18] sm:$0xff]
    %v122 = vld [vmem:[#allocation9 + $0x20] sm:$0xff]
    %v123 = vld [vmem:[#allocation9 + $0x28] sm:$0xff]
    %v124 = vld [vmem:[#allocation9 + $0x30] sm:$0xff]
    %v125 = vld [vmem:[#allocation9 + $0x38] sm:$0xff]
    %v126 = vld [vmem:[#allocation9 + $0x40] sm:$0xff]
    %v127 = vld [vmem:[#allocation9 + $0x48] sm:$0xff]
    %v128 = vld [vmem:[#allocation9 + $0x50] sm:$0xff]
    %v129 = vld [vmem:[#allocation9 + $0x58] sm:$0xff]
    %v130 = vld [vmem:[#allocation9 + $0x60] sm:$0xff]
    %v131 = vld [vmem:[#allocation9 + $0x68] sm:$0xff]
    %v132 = vld [vmem:[#allocation9 + $0x70] sm:$0xff]
    %v133 = vld [vmem:[#allocation9 + $0x78] sm:$0xff]
    %v134 = vld [vmem:[#allocation9 + $0x80] sm:$0xff]
    %v135 = vld [vmem:[#allocation9 + $0x88] sm:$0xff]
    %v136 = vld [vmem:[#allocation9 + $0x90] sm:$0xff]
    %v137 = vld [vmem:[#allocation9 + $0x98] sm:$0xff]
    %v138 = vld [vmem:[#allocation9 + $0xa0] sm:$0xff]
    %v139 = vld [vmem:[#allocation9 + $0xa8] sm:$0xff]
    %v140 = vld [vmem:[#allocation9 + $0xb0] sm:$0xff]
    %v141 = vld [vmem:[#allocation9 + $0xb8] sm:$0xff]
    %v142 = vld [vmem:[#allocation9 + $0xc0] sm:$0xff]
    %v143 = vld [vmem:[#allocation9 + $0xc8] sm:$0xff]
    %v144 = vld [vmem:[#allocation9 + $0xd0] sm:$0xff]
    %v145 = vld [vmem:[#allocation9 + $0xd8] sm:$0xff]
    %v146 = vld [vmem:[#allocation9 + $0xe0] sm:$0xff]
    %v147 = vld [vmem:[#allocation9 + $0xe8] sm:$0xff]
    %v148 = vld [vmem:[#allocation9 + $0xf0] sm:$0xff]
    %v149 = vld [vmem:[#allocation9 + $0xf8] sm:$0xff]
    %v150 = vld [vmem:[%s3] sm:$0xf]
    %v152 = vlaneseq
    %v153 = vshrl.u32 %v152, 7
    %v154 = vsub.s32 0, %v153
    %v155 = vrot.slane %v150, %v154
    %v156 = vlaneseq
    %v157 = vshrl.u32 %v156, 7
    %v158 = vsub.s32 1, %v157
    %v159 = vrot.slane %v150, %v158
    %v160 = vlaneseq
    %v161 = vshrl.u32 %v160, 7
    %v162 = vsub.s32 2, %v161
    %v163 = vrot.slane %v150, %v162
    %v164 = vlaneseq
    %v165 = vshrl.u32 %v164, 7
    %v166 = vsub.s32 3, %v165
    %v167 = vrot.slane %v150, %v166
    %v172 = vld [vmem:[#allocation2] sm:$0xff]
    %v173 = vld [vmem:[#allocation3] sm:$0xff]
    %v174 = vld [vmem:[#allocation4] sm:$0xf]
    %v207 = vunpack.c.l.b16 %v86
    %v208 = vunpack.c.h.b16 %v86
    %v209 = vunpack.c.l.b16 %v87
    %v210 = vunpack.c.h.b16 %v87
    %v211 = vunpack.c.l.b16 %v88
    %v212 = vunpack.c.h.b16 %v88
    %v213 = vunpack.c.l.b16 %v89
    %v214 = vunpack.c.h.b16 %v89
    %v215 = vunpack.c.l.b16 %v90
    %v216 = vunpack.c.h.b16 %v90
    %v217 = vunpack.c.l.b16 %v91
    %v218 = vunpack.c.h.b16 %v91
    %v219 = vunpack.c.l.b16 %v92
    %v220 = vunpack.c.h.b16 %v92
    %v221 = vunpack.c.l.b16 %v93
    %v222 = vunpack.c.h.b16 %v93
    %v223 = vunpack.c.l.b16 %v94
    %v224 = vunpack.c.h.b16 %v94
    %v225 = vunpack.c.l.b16 %v95
    %v226 = vunpack.c.h.b16 %v95
    %v227 = vunpack.c.l.b16 %v96
    %v228 = vunpack.c.h.b16 %v96
    %v229 = vunpack.c.l.b16 %v97
    %v230 = vunpack.c.h.b16 %v97
    %v231 = vunpack.c.l.b16 %v98
    %v232 = vunpack.c.h.b16 %v98
    %v233 = vunpack.c.l.b16 %v99
    %v234 = vunpack.c.h.b16 %v99
    %v235 = vunpack.c.l.b16 %v100
    %v236 = vunpack.c.h.b16 %v100
    %v237 = vunpack.c.l.b16 %v101
    %v238 = vunpack.c.h.b16 %v101
    %v239 = vunpack.c.l.b16 %v102
    %v240 = vunpack.c.h.b16 %v102
    %v241 = vunpack.c.l.b16 %v103
    %v242 = vunpack.c.h.b16 %v103
    %v243 = vunpack.c.l.b16 %v104
    %v244 = vunpack.c.h.b16 %v104
    %v245 = vunpack.c.l.b16 %v105
    %v246 = vunpack.c.h.b16 %v105
    %v247 = vunpack.c.l.b16 %v106
    %v248 = vunpack.c.h.b16 %v106
    %v249 = vunpack.c.l.b16 %v107
    %v250 = vunpack.c.h.b16 %v107
    %v251 = vunpack.c.l.b16 %v108
    %v252 = vunpack.c.h.b16 %v108
    %v253 = vunpack.c.l.b16 %v109
    %v254 = vunpack.c.h.b16 %v109
    %v255 = vunpack.c.l.b16 %v110
    %v256 = vunpack.c.h.b16 %v110
    %v257 = vunpack.c.l.b16 %v111
    %v258 = vunpack.c.h.b16 %v111
    %v259 = vunpack.c.l.b16 %v112
    %v260 = vunpack.c.h.b16 %v112
    %v261 = vunpack.c.l.b16 %v113
    %v262 = vunpack.c.h.b16 %v113
    %v263 = vunpack.c.l.b16 %v114
    %v264 = vunpack.c.h.b16 %v114
    %v265 = vunpack.c.l.b16 %v115
    %v266 = vunpack.c.h.b16 %v115
    %v267 = vunpack.c.l.b16 %v116
    %v268 = vunpack.c.h.b16 %v116
    %v269 = vunpack.c.l.b16 %v117
    %v270 = vunpack.c.h.b16 %v117
    %v271 = vpack.c.b16 %v211, %v207
    %v272 = vpack.c.b16 %v212, %v208
    %v273 = vpack.c.b16 %v213, %v209
    %v274 = vpack.c.b16 %v214, %v210
    %v275 = vpack.c.b16 %v219, %v215
    %v276 = vpack.c.b16 %v220, %v216
    %v277 = vpack.c.b16 %v221, %v217
    %v278 = vpack.c.b16 %v222, %v218
    %v279 = vpack.c.b16 %v227, %v223
    %v280 = vpack.c.b16 %v228, %v224
    %v281 = vpack.c.b16 %v229, %v225
    %v282 = vpack.c.b16 %v230, %v226
    %v283 = vpack.c.b16 %v235, %v231
    %v284 = vpack.c.b16 %v236, %v232
    %v285 = vpack.c.b16 %v237, %v233
    %v286 = vpack.c.b16 %v238, %v234
    %v287 = vpack.c.b16 %v243, %v239
    %v288 = vpack.c.b16 %v244, %v240
    %v289 = vpack.c.b16 %v245, %v241
    %v290 = vpack.c.b16 %v246, %v242
    %v291 = vpack.c.b16 %v251, %v247
    %v292 = vpack.c.b16 %v252, %v248
    %v293 = vpack.c.b16 %v253, %v249
    %v294 = vpack.c.b16 %v254, %v250
    %v295 = vpack.c.b16 %v259, %v255
    %v296 = vpack.c.b16 %v260, %v256
    %v297 = vpack.c.b16 %v261, %v257
    %v298 = vpack.c.b16 %v262, %v258
    %v299 = vpack.c.b16 %v267, %v263
    %v300 = vpack.c.b16 %v268, %v264
    %v301 = vpack.c.b16 %v269, %v265
    %v302 = vpack.c.b16 %v270, %v266
    %335 = vmatprep.subr.bf16.mxu0 %v300
    %336 = vmatpush1.bf16.msra.mxu0 %v299
    %337 = vmatprep.subr.bf16.mxu0 %v296
    %338 = vmatpush1.bf16.msra.mxu0 %v295
    %339 = vmatprep.subr.bf16.mxu0 %v292
    %340 = vmatpush1.bf16.msra.mxu0 %v291
    %341 = vmatprep.subr.bf16.mxu0 %v288
    %342 = vmatpush1.bf16.msra.mxu0 %v287
    %343 = vmatprep.subr.bf16.mxu0 %v284
    %344 = vmatpush1.bf16.msra.mxu0 %v283
    %345 = vmatprep.subr.bf16.mxu0 %v280
    %346 = vmatpush1.bf16.msra.mxu0 %v279
    %347 = vmatprep.subr.bf16.mxu0 %v276
    %348 = vmatpush1.bf16.msra.mxu0 %v275
    %349 = vmatprep.subr.bf16.mxu0 %v272
    %350 = vmatpush1.bf16.msra.mxu0 %v271
    %351 = vmatprep.subr.bf16.mxu0 0
    %352 = vmatpush2.bf16.msra.mxu0 0
    %353 = vmatprep.subr.bf16.mxu0 0
    %354 = vmatpush2.bf16.msra.mxu0 0
    %355 = vmatprep.subr.bf16.mxu0 0
    %356 = vmatpush2.bf16.msra.mxu0 0
    %357 = vmatprep.subr.bf16.mxu0 0
    %358 = vmatpush2.bf16.msra.mxu0 0
    %359 = vmatprep.subr.bf16.mxu0 0
    %360 = vmatpush2.bf16.msra.mxu0 0
    %361 = vmatprep.subr.bf16.mxu0 0
    %362 = vmatpush2.bf16.msra.mxu0 0
    %363 = vmatprep.subr.bf16.mxu0 0
    %364 = vmatpush2.bf16.msra.mxu0 0
    %365 = vmatprep.subr.bf16.mxu0 0
    %366 = vmatpush2.bf16.msra.mxu0 0
    %367 = vmatprep.mubr.bf16.mxu0 0
    %368 = vmatmul.mubr.bf16.gmra.mxu0 %v174
    %v369 = vpop.f32.mrf.mxu0
    %v370 = vadd.f32 %v155, %v369
    %v371 = vpop.f32.mrf.mxu0
    %v372 = vadd.f32 %v159, %v371
    %v373 = vpop.f32.mrf.mxu0
    %v374 = vpop.f32.mrf.mxu0
    %375 = vdwg.mxu0
    %376 = vmatprep.subr.bf16.mxu0 %v302
    %377 = vmatpush1.bf16.msra.mxu0 %v301
    %378 = vmatprep.subr.bf16.mxu0 %v298
    %379 = vmatpush1.bf16.msra.mxu0 %v297
    %380 = vmatprep.subr.bf16.mxu0 %v294
    %381 = vmatpush1.bf16.msra.mxu0 %v293
    %382 = vmatprep.subr.bf16.mxu0 %v290
    %383 = vmatpush1.bf16.msra.mxu0 %v289
    %384 = vmatprep.subr.bf16.mxu0 %v286
    %385 = vmatpush1.bf16.msra.mxu0 %v285
    %386 = vmatprep.subr.bf16.mxu0 %v282
    %387 = vmatpush1.bf16.msra.mxu0 %v281
    %388 = vmatprep.subr.bf16.mxu0 %v278
    %389 = vmatpush1.bf16.msra.mxu0 %v277
    %390 = vmatprep.subr.bf16.mxu0 %v274
    %391 = vmatpush1.bf16.msra.mxu0 %v273
    %392 = vmatprep.subr.bf16.mxu0 0
    %393 = vmatpush2.bf16.msra.mxu0 0
    %394 = vmatprep.subr.bf16.mxu0 0
    %395 = vmatpush2.bf16.msra.mxu0 0
    %396 = vmatprep.subr.bf16.mxu0 0
    %397 = vmatpush2.bf16.msra.mxu0 0
    %398 = vmatprep.subr.bf16.mxu0 0
    %399 = vmatpush2.bf16.msra.mxu0 0
    %400 = vmatprep.subr.bf16.mxu0 0
    %401 = vmatpush2.bf16.msra.mxu0 0
    %402 = vmatprep.subr.bf16.mxu0 0
    %403 = vmatpush2.bf16.msra.mxu0 0
    %404 = vmatprep.subr.bf16.mxu0 0
    %405 = vmatpush2.bf16.msra.mxu0 0
    %406 = vmatprep.subr.bf16.mxu0 0
    %407 = vmatpush2.bf16.msra.mxu0 0
    %408 = vmatprep.mubr.bf16.mxu0 0
    %409 = vmatmul.mubr.bf16.gmra.mxu0 %v174
    %v410 = vpop.f32.mrf.mxu0
    %v411 = vadd.f32 %v163, %v410
    %v412 = vpop.f32.mrf.mxu0
    %v413 = vadd.f32 %v167, %v412
    %v414 = vpop.f32.mrf.mxu0
    %v415 = vpop.f32.mrf.mxu0
    %416 = vdwg.mxu0
    %v417 = vpack.c.bf16 %v172, %v172
    %v450 = vunpack.c.l.b16 %v118
    %v451 = vunpack.c.h.b16 %v118
    %v452 = vunpack.c.l.b16 %v119
    %v453 = vunpack.c.h.b16 %v119
    %v454 = vunpack.c.l.b16 %v120
    %v455 = vunpack.c.h.b16 %v120
    %v456 = vunpack.c.l.b16 %v121
    %v457 = vunpack.c.h.b16 %v121
    %v458 = vunpack.c.l.b16 %v122
    %v459 = vunpack.c.h.b16 %v122
    %v460 = vunpack.c.l.b16 %v123
    %v461 = vunpack.c.h.b16 %v123
    %v462 = vunpack.c.l.b16 %v124
    %v463 = vunpack.c.h.b16 %v124
    %v464 = vunpack.c.l.b16 %v125
    %v465 = vunpack.c.h.b16 %v125
    %v466 = vunpack.c.l.b16 %v126
    %v467 = vunpack.c.h.b16 %v126
    %v468 = vunpack.c.l.b16 %v127
    %v469 = vunpack.c.h.b16 %v127
    %v470 = vunpack.c.l.b16 %v128
    %v471 = vunpack.c.h.b16 %v128
    %v472 = vunpack.c.l.b16 %v129
    %v473 = vunpack.c.h.b16 %v129
    %v474 = vunpack.c.l.b16 %v130
    %v475 = vunpack.c.h.b16 %v130
    %v476 = vunpack.c.l.b16 %v131
    %v477 = vunpack.c.h.b16 %v131
    %v478 = vunpack.c.l.b16 %v132
    %v479 = vunpack.c.h.b16 %v132
    %v480 = vunpack.c.l.b16 %v133
    %v481 = vunpack.c.h.b16 %v133
    %v482 = vunpack.c.l.b16 %v134
    %v483 = vunpack.c.h.b16 %v134
    %v484 = vunpack.c.l.b16 %v135
    %v485 = vunpack.c.h.b16 %v135
    %v486 = vunpack.c.l.b16 %v136
    %v487 = vunpack.c.h.b16 %v136
    %v488 = vunpack.c.l.b16 %v137
    %v489 = vunpack.c.h.b16 %v137
    %v490 = vunpack.c.l.b16 %v138
    %v491 = vunpack.c.h.b16 %v138
    %v492 = vunpack.c.l.b16 %v139
    %v493 = vunpack.c.h.b16 %v139
    %v494 = vunpack.c.l.b16 %v140
    %v495 = vunpack.c.h.b16 %v140
    %v496 = vunpack.c.l.b16 %v141
    %v497 = vunpack.c.h.b16 %v141
    %v498 = vunpack.c.l.b16 %v142
    %v499 = vunpack.c.h.b16 %v142
    %v500 = vunpack.c.l.b16 %v143
    %v501 = vunpack.c.h.b16 %v143
    %v502 = vunpack.c.l.b16 %v144
    %v503 = vunpack.c.h.b16 %v144
    %v504 = vunpack.c.l.b16 %v145
    %v505 = vunpack.c.h.b16 %v145
    %v506 = vunpack.c.l.b16 %v146
    %v507 = vunpack.c.h.b16 %v146
    %v508 = vunpack.c.l.b16 %v147
    %v509 = vunpack.c.h.b16 %v147
    %v510 = vunpack.c.l.b16 %v148
    %v511 = vunpack.c.h.b16 %v148
    %v512 = vunpack.c.l.b16 %v149
    %v513 = vunpack.c.h.b16 %v149
    %v514 = vpack.c.b16 %v454, %v450
    %v515 = vpack.c.b16 %v455, %v451
    %v516 = vpack.c.b16 %v456, %v452
    %v517 = vpack.c.b16 %v457, %v453
    %v518 = vpack.c.b16 %v462, %v458
    %v519 = vpack.c.b16 %v463, %v459
    %v520 = vpack.c.b16 %v464, %v460
    %v521 = vpack.c.b16 %v465, %v461
    %v522 = vpack.c.b16 %v470, %v466
    %v523 = vpack.c.b16 %v471, %v467
    %v524 = vpack.c.b16 %v472, %v468
    %v525 = vpack.c.b16 %v473, %v469
    %v526 = vpack.c.b16 %v478, %v474
    %v527 = vpack.c.b16 %v479, %v475
    %v528 = vpack.c.b16 %v480, %v476
    %v529 = vpack.c.b16 %v481, %v477
    %v530 = vpack.c.b16 %v486, %v482
    %v531 = vpack.c.b16 %v487, %v483
    %v532 = vpack.c.b16 %v488, %v484
    %v533 = vpack.c.b16 %v489, %v485
    %v534 = vpack.c.b16 %v494, %v490
    %v535 = vpack.c.b16 %v495, %v491
    %v536 = vpack.c.b16 %v496, %v492
    %v537 = vpack.c.b16 %v497, %v493
    %v538 = vpack.c.b16 %v502, %v498
    %v539 = vpack.c.b16 %v503, %v499
    %v540 = vpack.c.b16 %v504, %v500
    %v541 = vpack.c.b16 %v505, %v501
    %v542 = vpack.c.b16 %v510, %v506
    %v543 = vpack.c.b16 %v511, %v507
    %v544 = vpack.c.b16 %v512, %v508
    %v545 = vpack.c.b16 %v513, %v509
    %578 = vmatprep.subr.bf16.mxu0 %v543
    %579 = vmatpush1.bf16.msra.mxu0 %v542
    %580 = vmatprep.subr.bf16.mxu0 %v539
    %581 = vmatpush1.bf16.msra.mxu0 %v538
    %582 = vmatprep.subr.bf16.mxu0 %v535
    %583 = vmatpush1.bf16.msra.mxu0 %v534
    %584 = vmatprep.subr.bf16.mxu0 %v531
    %585 = vmatpush1.bf16.msra.mxu0 %v530
    %586 = vmatprep.subr.bf16.mxu0 %v527
    %587 = vmatpush1.bf16.msra.mxu0 %v526
    %588 = vmatprep.subr.bf16.mxu0 %v523
    %589 = vmatpush1.bf16.msra.mxu0 %v522
    %590 = vmatprep.subr.bf16.mxu0 %v519
    %591 = vmatpush1.bf16.msra.mxu0 %v518
    %592 = vmatprep.subr.bf16.mxu0 %v515
    %593 = vmatpush1.bf16.msra.mxu0 %v514
    %594 = vmatprep.subr.bf16.mxu0 0
    %595 = vmatpush2.bf16.msra.mxu0 0
    %596 = vmatprep.subr.bf16.mxu0 0
    %597 = vmatpush2.bf16.msra.mxu0 0
    %598 = vmatprep.subr.bf16.mxu0 0
    %599 = vmatpush2.bf16.msra.mxu0 0
    %600 = vmatprep.subr.bf16.mxu0 0
    %601 = vmatpush2.bf16.msra.mxu0 0
    %602 = vmatprep.subr.bf16.mxu0 0
    %603 = vmatpush2.bf16.msra.mxu0 0
    %604 = vmatprep.subr.bf16.mxu0 0
    %605 = vmatpush2.bf16.msra.mxu0 0
    %606 = vmatprep.subr.bf16.mxu0 0
    %607 = vmatpush2.bf16.msra.mxu0 0
    %608 = vmatprep.subr.bf16.mxu0 0
    %609 = vmatpush2.bf16.msra.mxu0 0
    %610 = vmatprep.mubr.bf16.mxu0 0
    %611 = vmatmul.mubr.bf16.gmra.mxu0 %v417
    %v612 = vpop.f32.mrf.mxu0
    %v613 = vadd.f32 0.0, %v612
    %v614 = vpop.f32.mrf.mxu0
    %v615 = vadd.f32 0.0, %v614
    %v616 = vpop.f32.mrf.mxu0
    %v617 = vpop.f32.mrf.mxu0
    %618 = vdwg.mxu0
    %619 = vmatprep.subr.bf16.mxu0 %v545
    %620 = vmatpush1.bf16.msra.mxu0 %v544
    %621 = vmatprep.subr.bf16.mxu0 %v541
    %622 = vmatpush1.bf16.msra.mxu0 %v540
    %623 = vmatprep.subr.bf16.mxu0 %v537
    %624 = vmatpush1.bf16.msra.mxu0 %v536
    %625 = vmatprep.subr.bf16.mxu0 %v533
    %626 = vmatpush1.bf16.msra.mxu0 %v532
    %627 = vmatprep.subr.bf16.mxu0 %v529
    %628 = vmatpush1.bf16.msra.mxu0 %v528
    %629 = vmatprep.subr.bf16.mxu0 %v525
    %630 = vmatpush1.bf16.msra.mxu0 %v524
    %631 = vmatprep.subr.bf16.mxu0 %v521
    %632 = vmatpush1.bf16.msra.mxu0 %v520
    %633 = vmatprep.subr.bf16.mxu0 %v517
    %634 = vmatpush1.bf16.msra.mxu0 %v516
    %635 = vmatprep.subr.bf16.mxu0 0
    %636 = vmatpush2.bf16.msra.mxu0 0
    %637 = vmatprep.subr.bf16.mxu0 0
    %638 = vmatpush2.bf16.msra.mxu0 0
    %639 = vmatprep.subr.bf16.mxu0 0
    %640 = vmatpush2.bf16.msra.mxu0 0
    %641 = vmatprep.subr.bf16.mxu0 0
    %642 = vmatpush2.bf16.msra.mxu0 0
    %643 = vmatprep.subr.bf16.mxu0 0
    %644 = vmatpush2.bf16.msra.mxu0 0
    %645 = vmatprep.subr.bf16.mxu0 0
    %646 = vmatpush2.bf16.msra.mxu0 0
    %647 = vmatprep.subr.bf16.mxu0 0
    %648 = vmatpush2.bf16.msra.mxu0 0
    %649 = vmatprep.subr.bf16.mxu0 0
    %650 = vmatpush2.bf16.msra.mxu0 0
    %651 = vmatprep.mubr.bf16.mxu0 0
    %652 = vmatmul.mubr.bf16.gmra.mxu0 %v417
    %v653 = vpop.f32.mrf.mxu0
    %v654 = vadd.f32 0.0, %v653
    %v655 = vpop.f32.mrf.mxu0
    %v656 = vadd.f32 0.0, %v655
    %v657 = vpop.f32.mrf.mxu0
    %v658 = vpop.f32.mrf.mxu0
    %659 = vdwg.mxu0
    %v660 = vadd.f32 %v370, %v613
    %v661 = vadd.f32 %v372, %v615
    %v662 = vadd.f32 %v411, %v654
    %v663 = vadd.f32 %v413, %v656
    %v664 = vmul.f32 %v660, 0.5
    %v665 = vtanh.pop %v664
    %v666 = vmul.f32 %v665, 0.5
    %v667 = vadd.f32 %v666, 0.5
    %v668 = vmul.f32 %v661, 0.5
    %v669 = vtanh.pop %v668
    %v670 = vmul.f32 %v669, 0.5
    %v671 = vadd.f32 %v670, 0.5
    %v672 = vtanh.pop %v662
    %v673 = vmul.f32 %v663, 0.5
    %v674 = vtanh.pop %v673
    %v675 = vmul.f32 %v674, 0.5
    %v676 = vadd.f32 %v675, 0.5
    %v677 = vmul.f32 %v671, %v173
    %v678 = vmul.f32 %v667, %v672
    %v679 = vadd.f32 %v677, %v678
    %v680 = vtanh.pop %v679
    %v681 = vmul.f32 %v676, %v680
    %s682 = scalar_lea.vmem [#allocation4], 4
    %v683 = vld [vmem:[%s682] sm:$0xf]
    %684 = vmatprep.subr.bf16.mxu0 %v300
    %685 = vmatpush1.bf16.msra.mxu0 %v299
    %686 = vmatprep.subr.bf16.mxu0 %v296
    %687 = vmatpush1.bf16.msra.mxu0 %v295
    %688 = vmatprep.subr.bf16.mxu0 %v292
    %689 = vmatpush1.bf16.msra.mxu0 %v291
    %690 = vmatprep.subr.bf16.mxu0 %v288
    %691 = vmatpush1.bf16.msra.mxu0 %v287
    %692 = vmatprep.subr.bf16.mxu0 %v284
    %693 = vmatpush1.bf16.msra.mxu0 %v283
    %694 = vmatprep.subr.bf16.mxu0 %v280
    %695 = vmatpush1.bf16.msra.mxu0 %v279
    %696 = vmatprep.subr.bf16.mxu0 %v276
    %697 = vmatpush1.bf16.msra.mxu0 %v275
    %698 = vmatprep.subr.bf16.mxu0 %v272
    %699 = vmatpush1.bf16.msra.mxu0 %v271
    %700 = vmatprep.subr.bf16.mxu0 0
    %701 = vmatpush2.bf16.msra.mxu0 0
    %702 = vmatprep.subr.bf16.mxu0 0
    %703 = vmatpush2.bf16.msra.mxu0 0
    %704 = vmatprep.subr.bf16.mxu0 0
    %705 = vmatpush2.bf16.msra.mxu0 0
    %706 = vmatprep.subr.bf16.mxu0 0
    %707 = vmatpush2.bf16.msra.mxu0 0
    %708 = vmatprep.subr.bf16.mxu0 0
    %709 = vmatpush2.bf16.msra.mxu0 0
    %710 = vmatprep.subr.bf16.mxu0 0
    %711 = vmatpush2.bf16.msra.mxu0 0
    %712 = vmatprep.subr.bf16.mxu0 0
    %713 = vmatpush2.bf16.msra.mxu0 0
    %714 = vmatprep.subr.bf16.mxu0 0
    %715 = vmatpush2.bf16.msra.mxu0 0
    %716 = vmatprep.mubr.bf16.mxu0 0
    %717 = vmatmul.mubr.bf16.gmra.mxu0 %v683
    %v718 = vpop.f32.mrf.mxu0
    %v719 = vadd.f32 %v155, %v718
    %v720 = vpop.f32.mrf.mxu0
    %v721 = vadd.f32 %v159, %v720
    %v722 = vpop.f32.mrf.mxu0
    %v723 = vpop.f32.mrf.mxu0
    %724 = vdwg.mxu0
    %725 = vmatprep.subr.bf16.mxu0 %v302
    %726 = vmatpush1.bf16.msra.mxu0 %v301
    %727 = vmatprep.subr.bf16.mxu0 %v298
    %728 = vmatpush1.bf16.msra.mxu0 %v297
    %729 = vmatprep.subr.bf16.mxu0 %v294
    %730 = vmatpush1.bf16.msra.mxu0 %v293
    %731 = vmatprep.subr.bf16.mxu0 %v290
    %732 = vmatpush1.bf16.msra.mxu0 %v289
    %733 = vmatprep.subr.bf16.mxu0 %v286
    %734 = vmatpush1.bf16.msra.mxu0 %v285
    %735 = vmatprep.subr.bf16.mxu0 %v282
    %736 = vmatpush1.bf16.msra.mxu0 %v281
    %737 = vmatprep.subr.bf16.mxu0 %v278
    %738 = vmatpush1.bf16.msra.mxu0 %v277
    %739 = vmatprep.subr.bf16.mxu0 %v274
    %740 = vmatpush1.bf16.msra.mxu0 %v273
    %741 = vmatprep.subr.bf16.mxu0 0
    %742 = vmatpush2.bf16.msra.mxu0 0
    %743 = vmatprep.subr.bf16.mxu0 0
    %744 = vmatpush2.bf16.msra.mxu0 0
    %745 = vmatprep.subr.bf16.mxu0 0
    %746 = vmatpush2.bf16.msra.mxu0 0
    %747 = vmatprep.subr.bf16.mxu0 0
    %748 = vmatpush2.bf16.msra.mxu0 0
    %749 = vmatprep.subr.bf16.mxu0 0
    %750 = vmatpush2.bf16.msra.mxu0 0
    %751 = vmatprep.subr.bf16.mxu0 0
    %752 = vmatpush2.bf16.msra.mxu0 0
    %753 = vmatprep.subr.bf16.mxu0 0
    %754 = vmatpush2.bf16.msra.mxu0 0
    %755 = vmatprep.subr.bf16.mxu0 0
    %756 = vmatpush2.bf16.msra.mxu0 0
    %757 = vmatprep.mubr.bf16.mxu0 0
    %758 = vmatmul.mubr.bf16.gmra.mxu0 %v683
    %v759 = vpop.f32.mrf.mxu0
    %v760 = vadd.f32 %v163, %v759
    %v761 = vpop.f32.mrf.mxu0
    %v762 = vadd.f32 %v167, %v761
    %v763 = vpop.f32.mrf.mxu0
    %v764 = vpop.f32.mrf.mxu0
    %765 = vdwg.mxu0
    %v766 = vpack.c.bf16 %v681, %v681
    %767 = vmatprep.subr.bf16.mxu0 %v543
    %768 = vmatpush1.bf16.msra.mxu0 %v542
    %769 = vmatprep.subr.bf16.mxu0 %v539
    %770 = vmatpush1.bf16.msra.mxu0 %v538
    %771 = vmatprep.subr.bf16.mxu0 %v535
    %772 = vmatpush1.bf16.msra.mxu0 %v534
    %773 = vmatprep.subr.bf16.mxu0 %v531
    %774 = vmatpush1.bf16.msra.mxu0 %v530
    %775 = vmatprep.subr.bf16.mxu0 %v527
    %776 = vmatpush1.bf16.msra.mxu0 %v526
    %777 = vmatprep.subr.bf16.mxu0 %v523
    %778 = vmatpush1.bf16.msra.mxu0 %v522
    %779 = vmatprep.subr.bf16.mxu0 %v519
    %780 = vmatpush1.bf16.msra.mxu0 %v518
    %781 = vmatprep.subr.bf16.mxu0 %v515
    %782 = vmatpush1.bf16.msra.mxu0 %v514
    %783 = vmatprep.subr.bf16.mxu0 0
    %784 = vmatpush2.bf16.msra.mxu0 0
    %785 = vmatprep.subr.bf16.mxu0 0
    %786 = vmatpush2.bf16.msra.mxu0 0
    %787 = vmatprep.subr.bf16.mxu0 0
    %788 = vmatpush2.bf16.msra.mxu0 0
    %789 = vmatprep.subr.bf16.mxu0 0
    %790 = vmatpush2.bf16.msra.mxu0 0
    %791 = vmatprep.subr.bf16.mxu0 0
    %792 = vmatpush2.bf16.msra.mxu0 0
    %793 = vmatprep.subr.bf16.mxu0 0
    %794 = vmatpush2.bf16.msra.mxu0 0
    %795 = vmatprep.subr.bf16.mxu0 0
    %796 = vmatpush2.bf16.msra.mxu0 0
    %797 = vmatprep.subr.bf16.mxu0 0
    %798 = vmatpush2.bf16.msra.mxu0 0
    %799 = vmatprep.mubr.bf16.mxu0 0
    %800 = vmatmul.mubr.bf16.gmra.mxu0 %v766
    %v801 = vpop.f32.mrf.mxu0
    %v802 = vadd.f32 0.0, %v801
    %v803 = vpop.f32.mrf.mxu0
    %v804 = vadd.f32 0.0, %v803
    %v805 = vpop.f32.mrf.mxu0
    %v806 = vpop.f32.mrf.mxu0
    %807 = vdwg.mxu0
    %808 = vmatprep.subr.bf16.mxu0 %v545
    %809 = vmatpush1.bf16.msra.mxu0 %v544
    %810 = vmatprep.subr.bf16.mxu0 %v541
    %811 = vmatpush1.bf16.msra.mxu0 %v540
    %812 = vmatprep.subr.bf16.mxu0 %v537
    %813 = vmatpush1.bf16.msra.mxu0 %v536
    %814 = vmatprep.subr.bf16.mxu0 %v533
    %815 = vmatpush1.bf16.msra.mxu0 %v532
    %816 = vmatprep.subr.bf16.mxu0 %v529
    %817 = vmatpush1.bf16.msra.mxu0 %v528
    %818 = vmatprep.subr.bf16.mxu0 %v525
    %819 = vmatpush1.bf16.msra.mxu0 %v524
    %820 = vmatprep.subr.bf16.mxu0 %v521
    %821 = vmatpush1.bf16.msra.mxu0 %v520
    %822 = vmatprep.subr.bf16.mxu0 %v517
    %823 = vmatpush1.bf16.msra.mxu0 %v516
    %824 = vmatprep.subr.bf16.mxu0 0
    %825 = vmatpush2.bf16.msra.mxu0 0
    %826 = vmatprep.subr.bf16.mxu0 0
    %827 = vmatpush2.bf16.msra.mxu0 0
    %828 = vmatprep.subr.bf16.mxu0 0
    %829 = vmatpush2.bf16.msra.mxu0 0
    %830 = vmatprep.subr.bf16.mxu0 0
    %831 = vmatpush2.bf16.msra.mxu0 0
    %832 = vmatprep.subr.bf16.mxu0 0
    %833 = vmatpush2.bf16.msra.mxu0 0
    %834 = vmatprep.subr.bf16.mxu0 0
    %835 = vmatpush2.bf16.msra.mxu0 0
    %836 = vmatprep.subr.bf16.mxu0 0
    %837 = vmatpush2.bf16.msra.mxu0 0
    %838 = vmatprep.subr.bf16.mxu0 0
    %839 = vmatpush2.bf16.msra.mxu0 0
    %840 = vmatprep.mubr.bf16.mxu0 0
    %841 = vmatmul.mubr.bf16.gmra.mxu0 %v766
    %v842 = vpop.f32.mrf.mxu0
    %v843 = vadd.f32 0.0, %v842
    %v844 = vpop.f32.mrf.mxu0
    %v845 = vadd.f32 0.0, %v844
    %v846 = vpop.f32.mrf.mxu0
    %v847 = vpop.f32.mrf.mxu0
    %848 = vdwg.mxu0
    %v849 = vadd.f32 %v719, %v802
    %v850 = vadd.f32 %v721, %v804
    %v851 = vadd.f32 %v760, %v843
    %v852 = vadd.f32 %v762, %v845
    %v853 = vmul.f32 %v849, 0.5
    %v854 = vtanh.pop %v853
    %v855 = vmul.f32 %v854, 0.5
    %v856 = vadd.f32 %v855, 0.5
    %v857 = vmul.f32 %v850, 0.5
    %v858 = vtanh.pop %v857
    %v859 = vmul.f32 %v858, 0.5
    %v860 = vadd.f32 %v859, 0.5
    %v861 = vtanh.pop %v851
    %v862 = vmul.f32 %v852, 0.5
    %v863 = vtanh.pop %v862
    %v864 = vmul.f32 %v863, 0.5
    %v865 = vadd.f32 %v864, 0.5
    %v866 = vmul.f32 %v860, %v679
    %v867 = vmul.f32 %v856, %v861
    %v868 = vadd.f32 %v866, %v867
    %v869 = vtanh.pop %v868
    %v870 = vmul.f32 %v865, %v869
    %s871 = scalar_lea.vmem [#allocation4], 8
    %v872 = vld [vmem:[%s871] sm:$0xf]
    %873 = vmatprep.subr.bf16.mxu0 %v300
    %874 = vmatpush1.bf16.msra.mxu0 %v299
    %875 = vmatprep.subr.bf16.mxu0 %v296
    %876 = vmatpush1.bf16.msra.mxu0 %v295
    %877 = vmatprep.subr.bf16.mxu0 %v292
    %878 = vmatpush1.bf16.msra.mxu0 %v291
    %879 = vmatprep.subr.bf16.mxu0 %v288
    %880 = vmatpush1.bf16.msra.mxu0 %v287
    %881 = vmatprep.subr.bf16.mxu0 %v284
    %882 = vmatpush1.bf16.msra.mxu0 %v283
    %883 = vmatprep.subr.bf16.mxu0 %v280
    %884 = vmatpush1.bf16.msra.mxu0 %v279
    %885 = vmatprep.subr.bf16.mxu0 %v276
    %886 = vmatpush1.bf16.msra.mxu0 %v275
    %887 = vmatprep.subr.bf16.mxu0 %v272
    %888 = vmatpush1.bf16.msra.mxu0 %v271
    %889 = vmatprep.subr.bf16.mxu0 0
    %890 = vmatpush2.bf16.msra.mxu0 0
    %891 = vmatprep.subr.bf16.mxu0 0
    %892 = vmatpush2.bf16.msra.mxu0 0
    %893 = vmatprep.subr.bf16.mxu0 0
    %894 = vmatpush2.bf16.msra.mxu0 0
    %895 = vmatprep.subr.bf16.mxu0 0
    %896 = vmatpush2.bf16.msra.mxu0 0
    %897 = vmatprep.subr.bf16.mxu0 0
    %898 = vmatpush2.bf16.msra.mxu0 0
    %899 = vmatprep.subr.bf16.mxu0 0
    %900 = vmatpush2.bf16.msra.mxu0 0
    %901 = vmatprep.subr.bf16.mxu0 0
    %902 = vmatpush2.bf16.msra.mxu0 0
    %903 = vmatprep.subr.bf16.mxu0 0
    %904 = vmatpush2.bf16.msra.mxu0 0
    %905 = vmatprep.mubr.bf16.mxu0 0
    %906 = vmatmul.mubr.bf16.gmra.mxu0 %v872
    %v907 = vpop.f32.mrf.mxu0
    %v908 = vadd.f32 %v155, %v907
    %v909 = vpop.f32.mrf.mxu0
    %v910 = vadd.f32 %v159, %v909
    %v911 = vpop.f32.mrf.mxu0
    %v912 = vpop.f32.mrf.mxu0
    %913 = vdwg.mxu0
    %914 = vmatprep.subr.bf16.mxu0 %v302
    %915 = vmatpush1.bf16.msra.mxu0 %v301
    %916 = vmatprep.subr.bf16.mxu0 %v298
    %917 = vmatpush1.bf16.msra.mxu0 %v297
    %918 = vmatprep.subr.bf16.mxu0 %v294
    %919 = vmatpush1.bf16.msra.mxu0 %v293
    %920 = vmatprep.subr.bf16.mxu0 %v290
    %921 = vmatpush1.bf16.msra.mxu0 %v289
    %922 = vmatprep.subr.bf16.mxu0 %v286
    %923 = vmatpush1.bf16.msra.mxu0 %v285
    %924 = vmatprep.subr.bf16.mxu0 %v282
    %925 = vmatpush1.bf16.msra.mxu0 %v281
    %926 = vmatprep.subr.bf16.mxu0 %v278
    %927 = vmatpush1.bf16.msra.mxu0 %v277
    %928 = vmatprep.subr.bf16.mxu0 %v274
    %929 = vmatpush1.bf16.msra.mxu0 %v273
    %930 = vmatprep.subr.bf16.mxu0 0
    %931 = vmatpush2.bf16.msra.mxu0 0
    %932 = vmatprep.subr.bf16.mxu0 0
    %933 = vmatpush2.bf16.msra.mxu0 0
    %934 = vmatprep.subr.bf16.mxu0 0
    %935 = vmatpush2.bf16.msra.mxu0 0
    %936 = vmatprep.subr.bf16.mxu0 0
    %937 = vmatpush2.bf16.msra.mxu0 0
    %938 = vmatprep.subr.bf16.mxu0 0
    %939 = vmatpush2.bf16.msra.mxu0 0
    %940 = vmatprep.subr.bf16.mxu0 0
    %941 = vmatpush2.bf16.msra.mxu0 0
    %942 = vmatprep.subr.bf16.mxu0 0
    %943 = vmatpush2.bf16.msra.mxu0 0
    %944 = vmatprep.subr.bf16.mxu0 0
    %945 = vmatpush2.bf16.msra.mxu0 0
    %946 = vmatprep.mubr.bf16.mxu0 0
    %947 = vmatmul.mubr.bf16.gmra.mxu0 %v872
    %v948 = vpop.f32.mrf.mxu0
    %v949 = vadd.f32 %v163, %v948
    %v950 = vpop.f32.mrf.mxu0
    %v951 = vadd.f32 %v167, %v950
    %v952 = vpop.f32.mrf.mxu0
    %v953 = vpop.f32.mrf.mxu0
    %954 = vdwg.mxu0
    %v955 = vpack.c.bf16 %v870, %v870
    %956 = vmatprep.subr.bf16.mxu0 %v543
    %957 = vmatpush1.bf16.msra.mxu0 %v542
    %958 = vmatprep.subr.bf16.mxu0 %v539
    %959 = vmatpush1.bf16.msra.mxu0 %v538
    %960 = vmatprep.subr.bf16.mxu0 %v535
    %961 = vmatpush1.bf16.msra.mxu0 %v534
    %962 = vmatprep.subr.bf16.mxu0 %v531
    %963 = vmatpush1.bf16.msra.mxu0 %v530
    %964 = vmatprep.subr.bf16.mxu0 %v527
    %965 = vmatpush1.bf16.msra.mxu0 %v526
    %966 = vmatprep.subr.bf16.mxu0 %v523
    %967 = vmatpush1.bf16.msra.mxu0 %v522
    %968 = vmatprep.subr.bf16.mxu0 %v519
    %969 = vmatpush1.bf16.msra.mxu0 %v518
    %970 = vmatprep.subr.bf16.mxu0 %v515
    %971 = vmatpush1.bf16.msra.mxu0 %v514
    %972 = vmatprep.subr.bf16.mxu0 0
    %973 = vmatpush2.bf16.msra.mxu0 0
    %974 = vmatprep.subr.bf16.mxu0 0
    %975 = vmatpush2.bf16.msra.mxu0 0
    %976 = vmatprep.subr.bf16.mxu0 0
    %977 = vmatpush2.bf16.msra.mxu0 0
    %978 = vmatprep.subr.bf16.mxu0 0
    %979 = vmatpush2.bf16.msra.mxu0 0
    %980 = vmatprep.subr.bf16.mxu0 0
    %981 = vmatpush2.bf16.msra.mxu0 0
    %982 = vmatprep.subr.bf16.mxu0 0
    %983 = vmatpush2.bf16.msra.mxu0 0
    %984 = vmatprep.subr.bf16.mxu0 0
    %985 = vmatpush2.bf16.msra.mxu0 0
    %986 = vmatprep.subr.bf16.mxu0 0
    %987 = vmatpush2.bf16.msra.mxu0 0
    %988 = vmatprep.mubr.bf16.mxu0 0
    %989 = vmatmul.mubr.bf16.gmra.mxu0 %v955
    %v990 = vpop.f32.mrf.mxu0
    %v991 = vadd.f32 0.0, %v990
    %v992 = vpop.f32.mrf.mxu0
    %v993 = vadd.f32 0.0, %v992
    %v994 = vpop.f32.mrf.mxu0
    %v995 = vpop.f32.mrf.mxu0
    %996 = vdwg.mxu0
    %997 = vmatprep.subr.bf16.mxu0 %v545
    %998 = vmatpush1.bf16.msra.mxu0 %v544
    %999 = vmatprep.subr.bf16.mxu0 %v541
    %1000 = vmatpush1.bf16.msra.mxu0 %v540
    %1001 = vmatprep.subr.bf16.mxu0 %v537
    %1002 = vmatpush1.bf16.msra.mxu0 %v536
    %1003 = vmatprep.subr.bf16.mxu0 %v533
    %1004 = vmatpush1.bf16.msra.mxu0 %v532
    %1005 = vmatprep.subr.bf16.mxu0 %v529
    %1006 = vmatpush1.bf16.msra.mxu0 %v528
    %1007 = vmatprep.subr.bf16.mxu0 %v525
    %1008 = vmatpush1.bf16.msra.mxu0 %v524
    %1009 = vmatprep.subr.bf16.mxu0 %v521
    %1010 = vmatpush1.bf16.msra.mxu0 %v520
    %1011 = vmatprep.subr.bf16.mxu0 %v517
    %1012 = vmatpush1.bf16.msra.mxu0 %v516
    %1013 = vmatprep.subr.bf16.mxu0 0
    %1014 = vmatpush2.bf16.msra.mxu0 0
    %1015 = vmatprep.subr.bf16.mxu0 0
    %1016 = vmatpush2.bf16.msra.mxu0 0
    %1017 = vmatprep.subr.bf16.mxu0 0
    %1018 = vmatpush2.bf16.msra.mxu0 0
    %1019 = vmatprep.subr.bf16.mxu0 0
    %1020 = vmatpush2.bf16.msra.mxu0 0
    %1021 = vmatprep.subr.bf16.mxu0 0
    %1022 = vmatpush2.bf16.msra.mxu0 0
    %1023 = vmatprep.subr.bf16.mxu0 0
    %1024 = vmatpush2.bf16.msra.mxu0 0
    %1025 = vmatprep.subr.bf16.mxu0 0
    %1026 = vmatpush2.bf16.msra.mxu0 0
    %1027 = vmatprep.subr.bf16.mxu0 0
    %1028 = vmatpush2.bf16.msra.mxu0 0
    %1029 = vmatprep.mubr.bf16.mxu0 0
    %1030 = vmatmul.mubr.bf16.gmra.mxu0 %v955
    %v1031 = vpop.f32.mrf.mxu0
    %v1032 = vadd.f32 0.0, %v1031
    %v1033 = vpop.f32.mrf.mxu0
    %v1034 = vadd.f32 0.0, %v1033
    %v1035 = vpop.f32.mrf.mxu0
    %v1036 = vpop.f32.mrf.mxu0
    %1037 = vdwg.mxu0
    %v1038 = vadd.f32 %v908, %v991
    %v1039 = vadd.f32 %v910, %v993
    %v1040 = vadd.f32 %v949, %v1032
    %v1041 = vadd.f32 %v951, %v1034
    %v1042 = vmul.f32 %v1038, 0.5
    %v1043 = vtanh.pop %v1042
    %v1044 = vmul.f32 %v1043, 0.5
    %v1045 = vadd.f32 %v1044, 0.5
    %v1046 = vmul.f32 %v1039, 0.5
    %v1047 = vtanh.pop %v1046
    %v1048 = vmul.f32 %v1047, 0.5
    %v1049 = vadd.f32 %v1048, 0.5
    %v1050 = vtanh.pop %v1040
    %v1051 = vmul.f32 %v1041, 0.5
    %v1052 = vtanh.pop %v1051
    %v1053 = vmul.f32 %v1052, 0.5
    %v1054 = vadd.f32 %v1053, 0.5
    %v1055 = vmul.f32 %v1049, %v868
    %v1056 = vmul.f32 %v1045, %v1050
    %v1057 = vadd.f32 %v1055, %v1056
    %v1058 = vtanh.pop %v1057
    %v1059 = vmul.f32 %v1054, %v1058
    %s1060 = scalar_lea.vmem [#allocation4], 12
    %v1061 = vld [vmem:[%s1060] sm:$0xf]
    %1062 = vmatprep.subr.bf16.mxu0 %v300
    %1063 = vmatpush1.bf16.msra.mxu0 %v299
    %1064 = vmatprep.subr.bf16.mxu0 %v296
    %1065 = vmatpush1.bf16.msra.mxu0 %v295
    %1066 = vmatprep.subr.bf16.mxu0 %v292
    %1067 = vmatpush1.bf16.msra.mxu0 %v291
    %1068 = vmatprep.subr.bf16.mxu0 %v288
    %1069 = vmatpush1.bf16.msra.mxu0 %v287
    %1070 = vmatprep.subr.bf16.mxu0 %v284
    %1071 = vmatpush1.bf16.msra.mxu0 %v283
    %1072 = vmatprep.subr.bf16.mxu0 %v280
    %1073 = vmatpush1.bf16.msra.mxu0 %v279
    %1074 = vmatprep.subr.bf16.mxu0 %v276
    %1075 = vmatpush1.bf16.msra.mxu0 %v275
    %1076 = vmatprep.subr.bf16.mxu0 %v272
    %1077 = vmatpush1.bf16.msra.mxu0 %v271
    %1078 = vmatprep.subr.bf16.mxu0 0
    %1079 = vmatpush2.bf16.msra.mxu0 0
    %1080 = vmatprep.subr.bf16.mxu0 0
    %1081 = vmatpush2.bf16.msra.mxu0 0
    %1082 = vmatprep.subr.bf16.mxu0 0
    %1083 = vmatpush2.bf16.msra.mxu0 0
    %1084 = vmatprep.subr.bf16.mxu0 0
    %1085 = vmatpush2.bf16.msra.mxu0 0
    %1086 = vmatprep.subr.bf16.mxu0 0
    %1087 = vmatpush2.bf16.msra.mxu0 0
    %1088 = vmatprep.subr.bf16.mxu0 0
    %1089 = vmatpush2.bf16.msra.mxu0 0
    %1090 = vmatprep.subr.bf16.mxu0 0
    %1091 = vmatpush2.bf16.msra.mxu0 0
    %1092 = vmatprep.subr.bf16.mxu0 0
    %1093 = vmatpush2.bf16.msra.mxu0 0
    %1094 = vmatprep.mubr.bf16.mxu0 0
    %1095 = vmatmul.mubr.bf16.gmra.mxu0 %v1061
    %v1096 = vpop.f32.mrf.mxu0
    %v1097 = vadd.f32 %v155, %v1096
    %v1098 = vpop.f32.mrf.mxu0
    %v1099 = vadd.f32 %v159, %v1098
    %v1100 = vpop.f32.mrf.mxu0
    %v1101 = vpop.f32.mrf.mxu0
    %1102 = vdwg.mxu0
    %1103 = vmatprep.subr.bf16.mxu0 %v302
    %1104 = vmatpush1.bf16.msra.mxu0 %v301
    %1105 = vmatprep.subr.bf16.mxu0 %v298
    %1106 = vmatpush1.bf16.msra.mxu0 %v297
    %1107 = vmatprep.subr.bf16.mxu0 %v294
    %1108 = vmatpush1.bf16.msra.mxu0 %v293
    %1109 = vmatprep.subr.bf16.mxu0 %v290
    %1110 = vmatpush1.bf16.msra.mxu0 %v289
    %1111 = vmatprep.subr.bf16.mxu0 %v286
    %1112 = vmatpush1.bf16.msra.mxu0 %v285
    %1113 = vmatprep.subr.bf16.mxu0 %v282
    %1114 = vmatpush1.bf16.msra.mxu0 %v281
    %1115 = vmatprep.subr.bf16.mxu0 %v278
    %1116 = vmatpush1.bf16.msra.mxu0 %v277
    %1117 = vmatprep.subr.bf16.mxu0 %v274
    %1118 = vmatpush1.bf16.msra.mxu0 %v273
    %1119 = vmatprep.subr.bf16.mxu0 0
    %1120 = vmatpush2.bf16.msra.mxu0 0
    %1121 = vmatprep.subr.bf16.mxu0 0
    %1122 = vmatpush2.bf16.msra.mxu0 0
    %1123 = vmatprep.subr.bf16.mxu0 0
    %1124 = vmatpush2.bf16.msra.mxu0 0
    %1125 = vmatprep.subr.bf16.mxu0 0
    %1126 = vmatpush2.bf16.msra.mxu0 0
    %1127 = vmatprep.subr.bf16.mxu0 0
    %1128 = vmatpush2.bf16.msra.mxu0 0
    %1129 = vmatprep.subr.bf16.mxu0 0
    %1130 = vmatpush2.bf16.msra.mxu0 0
    %1131 = vmatprep.subr.bf16.mxu0 0
    %1132 = vmatpush2.bf16.msra.mxu0 0
    %1133 = vmatprep.subr.bf16.mxu0 0
    %1134 = vmatpush2.bf16.msra.mxu0 0
    %1135 = vmatprep.mubr.bf16.mxu0 0
    %1136 = vmatmul.mubr.bf16.gmra.mxu0 %v1061
    %v1137 = vpop.f32.mrf.mxu0
    %v1138 = vadd.f32 %v163, %v1137
    %v1139 = vpop.f32.mrf.mxu0
    %v1140 = vadd.f32 %v167, %v1139
    %v1141 = vpop.f32.mrf.mxu0
    %v1142 = vpop.f32.mrf.mxu0
    %1143 = vdwg.mxu0
    %v1144 = vpack.c.bf16 %v1059, %v1059
    %1145 = vmatprep.subr.bf16.mxu0 %v543
    %1146 = vmatpush1.bf16.msra.mxu0 %v542
    %1147 = vmatprep.subr.bf16.mxu0 %v539
    %1148 = vmatpush1.bf16.msra.mxu0 %v538
    %1149 = vmatprep.subr.bf16.mxu0 %v535
    %1150 = vmatpush1.bf16.msra.mxu0 %v534
    %1151 = vmatprep.subr.bf16.mxu0 %v531
    %1152 = vmatpush1.bf16.msra.mxu0 %v530
    %1153 = vmatprep.subr.bf16.mxu0 %v527
    %1154 = vmatpush1.bf16.msra.mxu0 %v526
    %1155 = vmatprep.subr.bf16.mxu0 %v523
    %1156 = vmatpush1.bf16.msra.mxu0 %v522
    %1157 = vmatprep.subr.bf16.mxu0 %v519
    %1158 = vmatpush1.bf16.msra.mxu0 %v518
    %1159 = vmatprep.subr.bf16.mxu0 %v515
    %1160 = vmatpush1.bf16.msra.mxu0 %v514
    %1161 = vmatprep.subr.bf16.mxu0 0
    %1162 = vmatpush2.bf16.msra.mxu0 0
    %1163 = vmatprep.subr.bf16.mxu0 0
    %1164 = vmatpush2.bf16.msra.mxu0 0
    %1165 = vmatprep.subr.bf16.mxu0 0
    %1166 = vmatpush2.bf16.msra.mxu0 0
    %1167 = vmatprep.subr.bf16.mxu0 0
    %1168 = vmatpush2.bf16.msra.mxu0 0
    %1169 = vmatprep.subr.bf16.mxu0 0
    %1170 = vmatpush2.bf16.msra.mxu0 0
    %1171 = vmatprep.subr.bf16.mxu0 0
    %1172 = vmatpush2.bf16.msra.mxu0 0
    %1173 = vmatprep.subr.bf16.mxu0 0
    %1174 = vmatpush2.bf16.msra.mxu0 0
    %1175 = vmatprep.subr.bf16.mxu0 0
    %1176 = vmatpush2.bf16.msra.mxu0 0
    %1177 = vmatprep.mubr.bf16.mxu0 0
    %1178 = vmatmul.mubr.bf16.gmra.mxu0 %v1144
    %v1179 = vpop.f32.mrf.mxu0
    %v1180 = vadd.f32 0.0, %v1179
    %v1181 = vpop.f32.mrf.mxu0
    %v1182 = vadd.f32 0.0, %v1181
    %v1183 = vpop.f32.mrf.mxu0
    %v1184 = vpop.f32.mrf.mxu0
    %1185 = vdwg.mxu0
    %1186 = vmatprep.subr.bf16.mxu0 %v545
    %1187 = vmatpush1.bf16.msra.mxu0 %v544
    %1188 = vmatprep.subr.bf16.mxu0 %v541
    %1189 = vmatpush1.bf16.msra.mxu0 %v540
    %1190 = vmatprep.subr.bf16.mxu0 %v537
    %1191 = vmatpush1.bf16.msra.mxu0 %v536
    %1192 = vmatprep.subr.bf16.mxu0 %v533
    %1193 = vmatpush1.bf16.msra.mxu0 %v532
    %1194 = vmatprep.subr.bf16.mxu0 %v529
    %1195 = vmatpush1.bf16.msra.mxu0 %v528
    %1196 = vmatprep.subr.bf16.mxu0 %v525
    %1197 = vmatpush1.bf16.msra.mxu0 %v524
    %1198 = vmatprep.subr.bf16.mxu0 %v521
    %1199 = vmatpush1.bf16.msra.mxu0 %v520
    %1200 = vmatprep.subr.bf16.mxu0 %v517
    %1201 = vmatpush1.bf16.msra.mxu0 %v516
    %1202 = vmatprep.subr.bf16.mxu0 0
    %1203 = vmatpush2.bf16.msra.mxu0 0
    %1204 = vmatprep.subr.bf16.mxu0 0
    %1205 = vmatpush2.bf16.msra.mxu0 0
    %1206 = vmatprep.subr.bf16.mxu0 0
    %1207 = vmatpush2.bf16.msra.mxu0 0
    %1208 = vmatprep.subr.bf16.mxu0 0
    %1209 = vmatpush2.bf16.msra.mxu0 0
    %1210 = vmatprep.subr.bf16.mxu0 0
    %1211 = vmatpush2.bf16.msra.mxu0 0
    %1212 = vmatprep.subr.bf16.mxu0 0
    %1213 = vmatpush2.bf16.msra.mxu0 0
    %1214 = vmatprep.subr.bf16.mxu0 0
    %1215 = vmatpush2.bf16.msra.mxu0 0
    %1216 = vmatprep.subr.bf16.mxu0 0
    %1217 = vmatpush2.bf16.msra.mxu0 0
    %1218 = vmatprep.mubr.bf16.mxu0 0
    %1219 = vmatmul.mubr.bf16.gmra.mxu0 %v1144
    %v1220 = vpop.f32.mrf.mxu0
    %v1221 = vadd.f32 0.0, %v1220
    %v1222 = vpop.f32.mrf.mxu0
    %v1223 = vadd.f32 0.0, %v1222
    %v1224 = vpop.f32.mrf.mxu0
    %v1225 = vpop.f32.mrf.mxu0
    %1226 = vdwg.mxu0
    %v1227 = vadd.f32 %v1097, %v1180
    %v1228 = vadd.f32 %v1099, %v1182
    %v1229 = vadd.f32 %v1138, %v1221
    %v1230 = vadd.f32 %v1140, %v1223
    %v1231 = vmul.f32 %v1227, 0.5
    %v1232 = vtanh.pop %v1231
    %v1233 = vmul.f32 %v1232, 0.5
    %v1234 = vadd.f32 %v1233, 0.5
    %v1235 = vmul.f32 %v1228, 0.5
    %v1236 = vtanh.pop %v1235
    %v1237 = vmul.f32 %v1236, 0.5
    %v1238 = vadd.f32 %v1237, 0.5
    %v1239 = vtanh.pop %v1229
    %v1240 = vmul.f32 %v1230, 0.5
    %v1241 = vtanh.pop %v1240
    %v1242 = vmul.f32 %v1241, 0.5
    %v1243 = vadd.f32 %v1242, 0.5
    %v1244 = vmul.f32 %v1238, %v1057
    %v1245 = vmul.f32 %v1234, %v1239
    %v1246 = vadd.f32 %v1244, %v1245
    %v1247 = vtanh.pop %v1246
    %v1248 = vmul.f32 %v1243, %v1247
    %s1249 = scalar_lea.vmem [#allocation4], 16
    %v1250 = vld [vmem:[%s1249] sm:$0xf]
    %1251 = vmatprep.subr.bf16.mxu0 %v300
    %1252 = vmatpush1.bf16.msra.mxu0 %v299
    %1253 = vmatprep.subr.bf16.mxu0 %v296
    %1254 = vmatpush1.bf16.msra.mxu0 %v295
    %1255 = vmatprep.subr.bf16.mxu0 %v292
    %1256 = vmatpush1.bf16.msra.mxu0 %v291
    %1257 = vmatprep.subr.bf16.mxu0 %v288
    %1258 = vmatpush1.bf16.msra.mxu0 %v287
    %1259 = vmatprep.subr.bf16.mxu0 %v284
    %1260 = vmatpush1.bf16.msra.mxu0 %v283
    %1261 = vmatprep.subr.bf16.mxu0 %v280
    %1262 = vmatpush1.bf16.msra.mxu0 %v279
    %1263 = vmatprep.subr.bf16.mxu0 %v276
    %1264 = vmatpush1.bf16.msra.mxu0 %v275
    %1265 = vmatprep.subr.bf16.mxu0 %v272
    %1266 = vmatpush1.bf16.msra.mxu0 %v271
    %1267 = vmatprep.subr.bf16.mxu0 0
    %1268 = vmatpush2.bf16.msra.mxu0 0
    %1269 = vmatprep.subr.bf16.mxu0 0
    %1270 = vmatpush2.bf16.msra.mxu0 0
    %1271 = vmatprep.subr.bf16.mxu0 0
    %1272 = vmatpush2.bf16.msra.mxu0 0
    %1273 = vmatprep.subr.bf16.mxu0 0
    %1274 = vmatpush2.bf16.msra.mxu0 0
    %1275 = vmatprep.subr.bf16.mxu0 0
    %1276 = vmatpush2.bf16.msra.mxu0 0
    %1277 = vmatprep.subr.bf16.mxu0 0
    %1278 = vmatpush2.bf16.msra.mxu0 0
    %1279 = vmatprep.subr.bf16.mxu0 0
    %1280 = vmatpush2.bf16.msra.mxu0 0
    %1281 = vmatprep.subr.bf16.mxu0 0
    %1282 = vmatpush2.bf16.msra.mxu0 0
    %1283 = vmatprep.mubr.bf16.mxu0 0
    %1284 = vmatmul.mubr.bf16.gmra.mxu0 %v1250
    %v1285 = vpop.f32.mrf.mxu0
    %v1286 = vadd.f32 %v155, %v1285
    %v1287 = vpop.f32.mrf.mxu0
    %v1288 = vadd.f32 %v159, %v1287
    %v1289 = vpop.f32.mrf.mxu0
    %v1290 = vpop.f32.mrf.mxu0
    %1291 = vdwg.mxu0
    %1292 = vmatprep.subr.bf16.mxu0 %v302
    %1293 = vmatpush1.bf16.msra.mxu0 %v301
    %1294 = vmatprep.subr.bf16.mxu0 %v298
    %1295 = vmatpush1.bf16.msra.mxu0 %v297
    %1296 = vmatprep.subr.bf16.mxu0 %v294
    %1297 = vmatpush1.bf16.msra.mxu0 %v293
    %1298 = vmatprep.subr.bf16.mxu0 %v290
    %1299 = vmatpush1.bf16.msra.mxu0 %v289
    %1300 = vmatprep.subr.bf16.mxu0 %v286
    %1301 = vmatpush1.bf16.msra.mxu0 %v285
    %1302 = vmatprep.subr.bf16.mxu0 %v282
    %1303 = vmatpush1.bf16.msra.mxu0 %v281
    %1304 = vmatprep.subr.bf16.mxu0 %v278
    %1305 = vmatpush1.bf16.msra.mxu0 %v277
    %1306 = vmatprep.subr.bf16.mxu0 %v274
    %1307 = vmatpush1.bf16.msra.mxu0 %v273
    %1308 = vmatprep.subr.bf16.mxu0 0
    %1309 = vmatpush2.bf16.msra.mxu0 0
    %1310 = vmatprep.subr.bf16.mxu0 0
    %1311 = vmatpush2.bf16.msra.mxu0 0
    %1312 = vmatprep.subr.bf16.mxu0 0
    %1313 = vmatpush2.bf16.msra.mxu0 0
    %1314 = vmatprep.subr.bf16.mxu0 0
    %1315 = vmatpush2.bf16.msra.mxu0 0
    %1316 = vmatprep.subr.bf16.mxu0 0
    %1317 = vmatpush2.bf16.msra.mxu0 0
    %1318 = vmatprep.subr.bf16.mxu0 0
    %1319 = vmatpush2.bf16.msra.mxu0 0
    %1320 = vmatprep.subr.bf16.mxu0 0
    %1321 = vmatpush2.bf16.msra.mxu0 0
    %1322 = vmatprep.subr.bf16.mxu0 0
    %1323 = vmatpush2.bf16.msra.mxu0 0
    %1324 = vmatprep.mubr.bf16.mxu0 0
    %1325 = vmatmul.mubr.bf16.gmra.mxu0 %v1250
    %v1326 = vpop.f32.mrf.mxu0
    %v1327 = vadd.f32 %v163, %v1326
    %v1328 = vpop.f32.mrf.mxu0
    %v1329 = vadd.f32 %v167, %v1328
    %v1330 = vpop.f32.mrf.mxu0
    %v1331 = vpop.f32.mrf.mxu0
    %1332 = vdwg.mxu0
    %v1333 = vpack.c.bf16 %v1248, %v1248
    %1334 = vmatprep.subr.bf16.mxu0 %v543
    %1335 = vmatpush1.bf16.msra.mxu0 %v542
    %1336 = vmatprep.subr.bf16.mxu0 %v539
    %1337 = vmatpush1.bf16.msra.mxu0 %v538
    %1338 = vmatprep.subr.bf16.mxu0 %v535
    %1339 = vmatpush1.bf16.msra.mxu0 %v534
    %1340 = vmatprep.subr.bf16.mxu0 %v531
    %1341 = vmatpush1.bf16.msra.mxu0 %v530
    %1342 = vmatprep.subr.bf16.mxu0 %v527
    %1343 = vmatpush1.bf16.msra.mxu0 %v526
    %1344 = vmatprep.subr.bf16.mxu0 %v523
    %1345 = vmatpush1.bf16.msra.mxu0 %v522
    %1346 = vmatprep.subr.bf16.mxu0 %v519
    %1347 = vmatpush1.bf16.msra.mxu0 %v518
    %1348 = vmatprep.subr.bf16.mxu0 %v515
    %1349 = vmatpush1.bf16.msra.mxu0 %v514
    %1350 = vmatprep.subr.bf16.mxu0 0
    %1351 = vmatpush2.bf16.msra.mxu0 0
    %1352 = vmatprep.subr.bf16.mxu0 0
    %1353 = vmatpush2.bf16.msra.mxu0 0
    %1354 = vmatprep.subr.bf16.mxu0 0
    %1355 = vmatpush2.bf16.msra.mxu0 0
    %1356 = vmatprep.subr.bf16.mxu0 0
    %1357 = vmatpush2.bf16.msra.mxu0 0
    %1358 = vmatprep.subr.bf16.mxu0 0
    %1359 = vmatpush2.bf16.msra.mxu0 0
    %1360 = vmatprep.subr.bf16.mxu0 0
    %1361 = vmatpush2.bf16.msra.mxu0 0
    %1362 = vmatprep.subr.bf16.mxu0 0
    %1363 = vmatpush2.bf16.msra.mxu0 0
    %1364 = vmatprep.subr.bf16.mxu0 0
    %1365 = vmatpush2.bf16.msra.mxu0 0
    %1366 = vmatprep.mubr.bf16.mxu0 0
    %1367 = vmatmul.mubr.bf16.gmra.mxu0 %v1333
    %v1368 = vpop.f32.mrf.mxu0
    %v1369 = vadd.f32 0.0, %v1368
    %v1370 = vpop.f32.mrf.mxu0
    %v1371 = vadd.f32 0.0, %v1370
    %v1372 = vpop.f32.mrf.mxu0
    %v1373 = vpop.f32.mrf.mxu0
    %1374 = vdwg.mxu0
    %1375 = vmatprep.subr.bf16.mxu0 %v545
    %1376 = vmatpush1.bf16.msra.mxu0 %v544
    %1377 = vmatprep.subr.bf16.mxu0 %v541
    %1378 = vmatpush1.bf16.msra.mxu0 %v540
    %1379 = vmatprep.subr.bf16.mxu0 %v537
    %1380 = vmatpush1.bf16.msra.mxu0 %v536
    %1381 = vmatprep.subr.bf16.mxu0 %v533
    %1382 = vmatpush1.bf16.msra.mxu0 %v532
    %1383 = vmatprep.subr.bf16.mxu0 %v529
    %1384 = vmatpush1.bf16.msra.mxu0 %v528
    %1385 = vmatprep.subr.bf16.mxu0 %v525
    %1386 = vmatpush1.bf16.msra.mxu0 %v524
    %1387 = vmatprep.subr.bf16.mxu0 %v521
    %1388 = vmatpush1.bf16.msra.mxu0 %v520
    %1389 = vmatprep.subr.bf16.mxu0 %v517
    %1390 = vmatpush1.bf16.msra.mxu0 %v516
    %1391 = vmatprep.subr.bf16.mxu0 0
    %1392 = vmatpush2.bf16.msra.mxu0 0
    %1393 = vmatprep.subr.bf16.mxu0 0
    %1394 = vmatpush2.bf16.msra.mxu0 0
    %1395 = vmatprep.subr.bf16.mxu0 0
    %1396 = vmatpush2.bf16.msra.mxu0 0
    %1397 = vmatprep.subr.bf16.mxu0 0
    %1398 = vmatpush2.bf16.msra.mxu0 0
    %1399 = vmatprep.subr.bf16.mxu0 0
    %1400 = vmatpush2.bf16.msra.mxu0 0
    %1401 = vmatprep.subr.bf16.mxu0 0
    %1402 = vmatpush2.bf16.msra.mxu0 0
    %1403 = vmatprep.subr.bf16.mxu0 0
    %1404 = vmatpush2.bf16.msra.mxu0 0
    %1405 = vmatprep.subr.bf16.mxu0 0
    %1406 = vmatpush2.bf16.msra.mxu0 0
    %1407 = vmatprep.mubr.bf16.mxu0 0
    %1408 = vmatmul.mubr.bf16.gmra.mxu0 %v1333
    %v1409 = vpop.f32.mrf.mxu0
    %v1410 = vadd.f32 0.0, %v1409
    %v1411 = vpop.f32.mrf.mxu0
    %v1412 = vadd.f32 0.0, %v1411
    %v1413 = vpop.f32.mrf.mxu0
    %v1414 = vpop.f32.mrf.mxu0
    %1415 = vdwg.mxu0
    %v1416 = vadd.f32 %v1286, %v1369
    %v1417 = vadd.f32 %v1288, %v1371
    %v1418 = vadd.f32 %v1327, %v1410
    %v1419 = vadd.f32 %v1329, %v1412
    %v1420 = vmul.f32 %v1416, 0.5
    %v1421 = vtanh.pop %v1420
    %v1422 = vmul.f32 %v1421, 0.5
    %v1423 = vadd.f32 %v1422, 0.5
    %v1424 = vmul.f32 %v1417, 0.5
    %v1425 = vtanh.pop %v1424
    %v1426 = vmul.f32 %v1425, 0.5
    %v1427 = vadd.f32 %v1426, 0.5
    %v1428 = vtanh.pop %v1418
    %v1429 = vmul.f32 %v1419, 0.5
    %v1430 = vtanh.pop %v1429
    %v1431 = vmul.f32 %v1430, 0.5
    %v1432 = vadd.f32 %v1431, 0.5
    %v1433 = vmul.f32 %v1427, %v1246
    %v1434 = vmul.f32 %v1423, %v1428
    %v1435 = vadd.f32 %v1433, %v1434
    %v1436 = vtanh.pop %v1435
    %v1437 = vmul.f32 %v1432, %v1436
    %s1438 = scalar_lea.vmem [#allocation4], 20
    %v1439 = vld [vmem:[%s1438] sm:$0xf]
    %1440 = vmatprep.subr.bf16.mxu0 %v300
    %1441 = vmatpush1.bf16.msra.mxu0 %v299
    %1442 = vmatprep.subr.bf16.mxu0 %v296
    %1443 = vmatpush1.bf16.msra.mxu0 %v295
    %1444 = vmatprep.subr.bf16.mxu0 %v292
    %1445 = vmatpush1.bf16.msra.mxu0 %v291
    %1446 = vmatprep.subr.bf16.mxu0 %v288
    %1447 = vmatpush1.bf16.msra.mxu0 %v287
    %1448 = vmatprep.subr.bf16.mxu0 %v284
    %1449 = vmatpush1.bf16.msra.mxu0 %v283
    %1450 = vmatprep.subr.bf16.mxu0 %v280
    %1451 = vmatpush1.bf16.msra.mxu0 %v279
    %1452 = vmatprep.subr.bf16.mxu0 %v276
    %1453 = vmatpush1.bf16.msra.mxu0 %v275
    %1454 = vmatprep.subr.bf16.mxu0 %v272
    %1455 = vmatpush1.bf16.msra.mxu0 %v271
    %1456 = vmatprep.subr.bf16.mxu0 0
    %1457 = vmatpush2.bf16.msra.mxu0 0
    %1458 = vmatprep.subr.bf16.mxu0 0
    %1459 = vmatpush2.bf16.msra.mxu0 0
    %1460 = vmatprep.subr.bf16.mxu0 0
    %1461 = vmatpush2.bf16.msra.mxu0 0
    %1462 = vmatprep.subr.bf16.mxu0 0
    %1463 = vmatpush2.bf16.msra.mxu0 0
    %1464 = vmatprep.subr.bf16.mxu0 0
    %1465 = vmatpush2.bf16.msra.mxu0 0
    %1466 = vmatprep.subr.bf16.mxu0 0
    %1467 = vmatpush2.bf16.msra.mxu0 0
    %1468 = vmatprep.subr.bf16.mxu0 0
    %1469 = vmatpush2.bf16.msra.mxu0 0
    %1470 = vmatprep.subr.bf16.mxu0 0
    %1471 = vmatpush2.bf16.msra.mxu0 0
    %1472 = vmatprep.mubr.bf16.mxu0 0
    %1473 = vmatmul.mubr.bf16.gmra.mxu0 %v1439
    %v1474 = vpop.f32.mrf.mxu0
    %v1475 = vadd.f32 %v155, %v1474
    %v1476 = vpop.f32.mrf.mxu0
    %v1477 = vadd.f32 %v159, %v1476
    %v1478 = vpop.f32.mrf.mxu0
    %v1479 = vpop.f32.mrf.mxu0
    %1480 = vdwg.mxu0
    %1481 = vmatprep.subr.bf16.mxu0 %v302
    %1482 = vmatpush1.bf16.msra.mxu0 %v301
    %1483 = vmatprep.subr.bf16.mxu0 %v298
    %1484 = vmatpush1.bf16.msra.mxu0 %v297
    %1485 = vmatprep.subr.bf16.mxu0 %v294
    %1486 = vmatpush1.bf16.msra.mxu0 %v293
    %1487 = vmatprep.subr.bf16.mxu0 %v290
    %1488 = vmatpush1.bf16.msra.mxu0 %v289
    %1489 = vmatprep.subr.bf16.mxu0 %v286
    %1490 = vmatpush1.bf16.msra.mxu0 %v285
    %1491 = vmatprep.subr.bf16.mxu0 %v282
    %1492 = vmatpush1.bf16.msra.mxu0 %v281
    %1493 = vmatprep.subr.bf16.mxu0 %v278
    %1494 = vmatpush1.bf16.msra.mxu0 %v277
    %1495 = vmatprep.subr.bf16.mxu0 %v274
    %1496 = vmatpush1.bf16.msra.mxu0 %v273
    %1497 = vmatprep.subr.bf16.mxu0 0
    %1498 = vmatpush2.bf16.msra.mxu0 0
    %1499 = vmatprep.subr.bf16.mxu0 0
    %1500 = vmatpush2.bf16.msra.mxu0 0
    %1501 = vmatprep.subr.bf16.mxu0 0
    %1502 = vmatpush2.bf16.msra.mxu0 0
    %1503 = vmatprep.subr.bf16.mxu0 0
    %1504 = vmatpush2.bf16.msra.mxu0 0
    %1505 = vmatprep.subr.bf16.mxu0 0
    %1506 = vmatpush2.bf16.msra.mxu0 0
    %1507 = vmatprep.subr.bf16.mxu0 0
    %1508 = vmatpush2.bf16.msra.mxu0 0
    %1509 = vmatprep.subr.bf16.mxu0 0
    %1510 = vmatpush2.bf16.msra.mxu0 0
    %1511 = vmatprep.subr.bf16.mxu0 0
    %1512 = vmatpush2.bf16.msra.mxu0 0
    %1513 = vmatprep.mubr.bf16.mxu0 0
    %1514 = vmatmul.mubr.bf16.gmra.mxu0 %v1439
    %v1515 = vpop.f32.mrf.mxu0
    %v1516 = vadd.f32 %v163, %v1515
    %v1517 = vpop.f32.mrf.mxu0
    %v1518 = vadd.f32 %v167, %v1517
    %v1519 = vpop.f32.mrf.mxu0
    %v1520 = vpop.f32.mrf.mxu0
    %1521 = vdwg.mxu0
    %v1522 = vpack.c.bf16 %v1437, %v1437
    %1523 = vmatprep.subr.bf16.mxu0 %v543
    %1524 = vmatpush1.bf16.msra.mxu0 %v542
    %1525 = vmatprep.subr.bf16.mxu0 %v539
    %1526 = vmatpush1.bf16.msra.mxu0 %v538
    %1527 = vmatprep.subr.bf16.mxu0 %v535
    %1528 = vmatpush1.bf16.msra.mxu0 %v534
    %1529 = vmatprep.subr.bf16.mxu0 %v531
    %1530 = vmatpush1.bf16.msra.mxu0 %v530
    %1531 = vmatprep.subr.bf16.mxu0 %v527
    %1532 = vmatpush1.bf16.msra.mxu0 %v526
    %1533 = vmatprep.subr.bf16.mxu0 %v523
    %1534 = vmatpush1.bf16.msra.mxu0 %v522
    %1535 = vmatprep.subr.bf16.mxu0 %v519
    %1536 = vmatpush1.bf16.msra.mxu0 %v518
    %1537 = vmatprep.subr.bf16.mxu0 %v515
    %1538 = vmatpush1.bf16.msra.mxu0 %v514
    %1539 = vmatprep.subr.bf16.mxu0 0
    %1540 = vmatpush2.bf16.msra.mxu0 0
    %1541 = vmatprep.subr.bf16.mxu0 0
    %1542 = vmatpush2.bf16.msra.mxu0 0
    %1543 = vmatprep.subr.bf16.mxu0 0
    %1544 = vmatpush2.bf16.msra.mxu0 0
    %1545 = vmatprep.subr.bf16.mxu0 0
    %1546 = vmatpush2.bf16.msra.mxu0 0
    %1547 = vmatprep.subr.bf16.mxu0 0
    %1548 = vmatpush2.bf16.msra.mxu0 0
    %1549 = vmatprep.subr.bf16.mxu0 0
    %1550 = vmatpush2.bf16.msra.mxu0 0
    %1551 = vmatprep.subr.bf16.mxu0 0
    %1552 = vmatpush2.bf16.msra.mxu0 0
    %1553 = vmatprep.subr.bf16.mxu0 0
    %1554 = vmatpush2.bf16.msra.mxu0 0
    %1555 = vmatprep.mubr.bf16.mxu0 0
    %1556 = vmatmul.mubr.bf16.gmra.mxu0 %v1522
    %v1557 = vpop.f32.mrf.mxu0
    %v1558 = vadd.f32 0.0, %v1557
    %v1559 = vpop.f32.mrf.mxu0
    %v1560 = vadd.f32 0.0, %v1559
    %v1561 = vpop.f32.mrf.mxu0
    %v1562 = vpop.f32.mrf.mxu0
    %1563 = vdwg.mxu0
    %1564 = vmatprep.subr.bf16.mxu0 %v545
    %1565 = vmatpush1.bf16.msra.mxu0 %v544
    %1566 = vmatprep.subr.bf16.mxu0 %v541
    %1567 = vmatpush1.bf16.msra.mxu0 %v540
    %1568 = vmatprep.subr.bf16.mxu0 %v537
    %1569 = vmatpush1.bf16.msra.mxu0 %v536
    %1570 = vmatprep.subr.bf16.mxu0 %v533
    %1571 = vmatpush1.bf16.msra.mxu0 %v532
    %1572 = vmatprep.subr.bf16.mxu0 %v529
    %1573 = vmatpush1.bf16.msra.mxu0 %v528
    %1574 = vmatprep.subr.bf16.mxu0 %v525
    %1575 = vmatpush1.bf16.msra.mxu0 %v524
    %1576 = vmatprep.subr.bf16.mxu0 %v521
    %1577 = vmatpush1.bf16.msra.mxu0 %v520
    %1578 = vmatprep.subr.bf16.mxu0 %v517
    %1579 = vmatpush1.bf16.msra.mxu0 %v516
    %1580 = vmatprep.subr.bf16.mxu0 0
    %1581 = vmatpush2.bf16.msra.mxu0 0
    %1582 = vmatprep.subr.bf16.mxu0 0
    %1583 = vmatpush2.bf16.msra.mxu0 0
    %1584 = vmatprep.subr.bf16.mxu0 0
    %1585 = vmatpush2.bf16.msra.mxu0 0
    %1586 = vmatprep.subr.bf16.mxu0 0
    %1587 = vmatpush2.bf16.msra.mxu0 0
    %1588 = vmatprep.subr.bf16.mxu0 0
    %1589 = vmatpush2.bf16.msra.mxu0 0
    %1590 = vmatprep.subr.bf16.mxu0 0
    %1591 = vmatpush2.bf16.msra.mxu0 0
    %1592 = vmatprep.subr.bf16.mxu0 0
    %1593 = vmatpush2.bf16.msra.mxu0 0
    %1594 = vmatprep.subr.bf16.mxu0 0
    %1595 = vmatpush2.bf16.msra.mxu0 0
    %1596 = vmatprep.mubr.bf16.mxu0 0
    %1597 = vmatmul.mubr.bf16.gmra.mxu0 %v1522
    %v1598 = vpop.f32.mrf.mxu0
    %v1599 = vadd.f32 0.0, %v1598
    %v1600 = vpop.f32.mrf.mxu0
    %v1601 = vadd.f32 0.0, %v1600
    %v1602 = vpop.f32.mrf.mxu0
    %v1603 = vpop.f32.mrf.mxu0
    %1604 = vdwg.mxu0
    %v1605 = vadd.f32 %v1475, %v1558
    %v1606 = vadd.f32 %v1477, %v1560
    %v1607 = vadd.f32 %v1516, %v1599
    %v1608 = vadd.f32 %v1518, %v1601
    %v1609 = vmul.f32 %v1605, 0.5
    %v1610 = vtanh.pop %v1609
    %v1611 = vmul.f32 %v1610, 0.5
    %v1612 = vadd.f32 %v1611, 0.5
    %v1613 = vmul.f32 %v1606, 0.5
    %v1614 = vtanh.pop %v1613
    %v1615 = vmul.f32 %v1614, 0.5
    %v1616 = vadd.f32 %v1615, 0.5
    %v1617 = vtanh.pop %v1607
    %v1618 = vmul.f32 %v1608, 0.5
    %v1619 = vtanh.pop %v1618
    %v1620 = vmul.f32 %v1619, 0.5
    %v1621 = vadd.f32 %v1620, 0.5
    %v1622 = vmul.f32 %v1616, %v1435
    %v1623 = vmul.f32 %v1612, %v1617
    %v1624 = vadd.f32 %v1622, %v1623
    %v1625 = vtanh.pop %v1624
    %v1626 = vmul.f32 %v1621, %v1625
    %s1627 = scalar_lea.vmem [#allocation4], 24
    %v1628 = vld [vmem:[%s1627] sm:$0xf]
    %1629 = vmatprep.subr.bf16.mxu0 %v300
    %1630 = vmatpush1.bf16.msra.mxu0 %v299
    %1631 = vmatprep.subr.bf16.mxu0 %v296
    %1632 = vmatpush1.bf16.msra.mxu0 %v295
    %1633 = vmatprep.subr.bf16.mxu0 %v292
    %1634 = vmatpush1.bf16.msra.mxu0 %v291
    %1635 = vmatprep.subr.bf16.mxu0 %v288
    %1636 = vmatpush1.bf16.msra.mxu0 %v287
    %1637 = vmatprep.subr.bf16.mxu0 %v284
    %1638 = vmatpush1.bf16.msra.mxu0 %v283
    %1639 = vmatprep.subr.bf16.mxu0 %v280
    %1640 = vmatpush1.bf16.msra.mxu0 %v279
    %1641 = vmatprep.subr.bf16.mxu0 %v276
    %1642 = vmatpush1.bf16.msra.mxu0 %v275
    %1643 = vmatprep.subr.bf16.mxu0 %v272
    %1644 = vmatpush1.bf16.msra.mxu0 %v271
    %1645 = vmatprep.subr.bf16.mxu0 0
    %1646 = vmatpush2.bf16.msra.mxu0 0
    %1647 = vmatprep.subr.bf16.mxu0 0
    %1648 = vmatpush2.bf16.msra.mxu0 0
    %1649 = vmatprep.subr.bf16.mxu0 0
    %1650 = vmatpush2.bf16.msra.mxu0 0
    %1651 = vmatprep.subr.bf16.mxu0 0
    %1652 = vmatpush2.bf16.msra.mxu0 0
    %1653 = vmatprep.subr.bf16.mxu0 0
    %1654 = vmatpush2.bf16.msra.mxu0 0
    %1655 = vmatprep.subr.bf16.mxu0 0
    %1656 = vmatpush2.bf16.msra.mxu0 0
    %1657 = vmatprep.subr.bf16.mxu0 0
    %1658 = vmatpush2.bf16.msra.mxu0 0
    %1659 = vmatprep.subr.bf16.mxu0 0
    %1660 = vmatpush2.bf16.msra.mxu0 0
    %1661 = vmatprep.mubr.bf16.mxu0 0
    %1662 = vmatmul.mubr.bf16.gmra.mxu0 %v1628
    %v1663 = vpop.f32.mrf.mxu0
    %v1664 = vadd.f32 %v155, %v1663
    %v1665 = vpop.f32.mrf.mxu0
    %v1666 = vadd.f32 %v159, %v1665
    %v1667 = vpop.f32.mrf.mxu0
    %v1668 = vpop.f32.mrf.mxu0
    %1669 = vdwg.mxu0
    %1670 = vmatprep.subr.bf16.mxu0 %v302
    %1671 = vmatpush1.bf16.msra.mxu0 %v301
    %1672 = vmatprep.subr.bf16.mxu0 %v298
    %1673 = vmatpush1.bf16.msra.mxu0 %v297
    %1674 = vmatprep.subr.bf16.mxu0 %v294
    %1675 = vmatpush1.bf16.msra.mxu0 %v293
    %1676 = vmatprep.subr.bf16.mxu0 %v290
    %1677 = vmatpush1.bf16.msra.mxu0 %v289
    %1678 = vmatprep.subr.bf16.mxu0 %v286
    %1679 = vmatpush1.bf16.msra.mxu0 %v285
    %1680 = vmatprep.subr.bf16.mxu0 %v282
    %1681 = vmatpush1.bf16.msra.mxu0 %v281
    %1682 = vmatprep.subr.bf16.mxu0 %v278
    %1683 = vmatpush1.bf16.msra.mxu0 %v277
    %1684 = vmatprep.subr.bf16.mxu0 %v274
    %1685 = vmatpush1.bf16.msra.mxu0 %v273
    %1686 = vmatprep.subr.bf16.mxu0 0
    %1687 = vmatpush2.bf16.msra.mxu0 0
    %1688 = vmatprep.subr.bf16.mxu0 0
    %1689 = vmatpush2.bf16.msra.mxu0 0
    %1690 = vmatprep.subr.bf16.mxu0 0
    %1691 = vmatpush2.bf16.msra.mxu0 0
    %1692 = vmatprep.subr.bf16.mxu0 0
    %1693 = vmatpush2.bf16.msra.mxu0 0
    %1694 = vmatprep.subr.bf16.mxu0 0
    %1695 = vmatpush2.bf16.msra.mxu0 0
    %1696 = vmatprep.subr.bf16.mxu0 0
    %1697 = vmatpush2.bf16.msra.mxu0 0
    %1698 = vmatprep.subr.bf16.mxu0 0
    %1699 = vmatpush2.bf16.msra.mxu0 0
    %1700 = vmatprep.subr.bf16.mxu0 0
    %1701 = vmatpush2.bf16.msra.mxu0 0
    %1702 = vmatprep.mubr.bf16.mxu0 0
    %1703 = vmatmul.mubr.bf16.gmra.mxu0 %v1628
    %v1704 = vpop.f32.mrf.mxu0
    %v1705 = vadd.f32 %v163, %v1704
    %v1706 = vpop.f32.mrf.mxu0
    %v1707 = vadd.f32 %v167, %v1706
    %v1708 = vpop.f32.mrf.mxu0
    %v1709 = vpop.f32.mrf.mxu0
    %1710 = vdwg.mxu0
    %v1711 = vpack.c.bf16 %v1626, %v1626
    %1712 = vmatprep.subr.bf16.mxu0 %v543
    %1713 = vmatpush1.bf16.msra.mxu0 %v542
    %1714 = vmatprep.subr.bf16.mxu0 %v539
    %1715 = vmatpush1.bf16.msra.mxu0 %v538
    %1716 = vmatprep.subr.bf16.mxu0 %v535
    %1717 = vmatpush1.bf16.msra.mxu0 %v534
    %1718 = vmatprep.subr.bf16.mxu0 %v531
    %1719 = vmatpush1.bf16.msra.mxu0 %v530
    %1720 = vmatprep.subr.bf16.mxu0 %v527
    %1721 = vmatpush1.bf16.msra.mxu0 %v526
    %1722 = vmatprep.subr.bf16.mxu0 %v523
    %1723 = vmatpush1.bf16.msra.mxu0 %v522
    %1724 = vmatprep.subr.bf16.mxu0 %v519
    %1725 = vmatpush1.bf16.msra.mxu0 %v518
    %1726 = vmatprep.subr.bf16.mxu0 %v515
    %1727 = vmatpush1.bf16.msra.mxu0 %v514
    %1728 = vmatprep.subr.bf16.mxu0 0
    %1729 = vmatpush2.bf16.msra.mxu0 0
    %1730 = vmatprep.subr.bf16.mxu0 0
    %1731 = vmatpush2.bf16.msra.mxu0 0
    %1732 = vmatprep.subr.bf16.mxu0 0
    %1733 = vmatpush2.bf16.msra.mxu0 0
    %1734 = vmatprep.subr.bf16.mxu0 0
    %1735 = vmatpush2.bf16.msra.mxu0 0
    %1736 = vmatprep.subr.bf16.mxu0 0
    %1737 = vmatpush2.bf16.msra.mxu0 0
    %1738 = vmatprep.subr.bf16.mxu0 0
    %1739 = vmatpush2.bf16.msra.mxu0 0
    %1740 = vmatprep.subr.bf16.mxu0 0
    %1741 = vmatpush2.bf16.msra.mxu0 0
    %1742 = vmatprep.subr.bf16.mxu0 0
    %1743 = vmatpush2.bf16.msra.mxu0 0
    %1744 = vmatprep.mubr.bf16.mxu0 0
    %1745 = vmatmul.mubr.bf16.gmra.mxu0 %v1711
    %v1746 = vpop.f32.mrf.mxu0
    %v1747 = vadd.f32 0.0, %v1746
    %v1748 = vpop.f32.mrf.mxu0
    %v1749 = vadd.f32 0.0, %v1748
    %v1750 = vpop.f32.mrf.mxu0
    %v1751 = vpop.f32.mrf.mxu0
    %1752 = vdwg.mxu0
    %1753 = vmatprep.subr.bf16.mxu0 %v545
    %1754 = vmatpush1.bf16.msra.mxu0 %v544
    %1755 = vmatprep.subr.bf16.mxu0 %v541
    %1756 = vmatpush1.bf16.msra.mxu0 %v540
    %1757 = vmatprep.subr.bf16.mxu0 %v537
    %1758 = vmatpush1.bf16.msra.mxu0 %v536
    %1759 = vmatprep.subr.bf16.mxu0 %v533
    %1760 = vmatpush1.bf16.msra.mxu0 %v532
    %1761 = vmatprep.subr.bf16.mxu0 %v529
    %1762 = vmatpush1.bf16.msra.mxu0 %v528
    %1763 = vmatprep.subr.bf16.mxu0 %v525
    %1764 = vmatpush1.bf16.msra.mxu0 %v524
    %1765 = vmatprep.subr.bf16.mxu0 %v521
    %1766 = vmatpush1.bf16.msra.mxu0 %v520
    %1767 = vmatprep.subr.bf16.mxu0 %v517
    %1768 = vmatpush1.bf16.msra.mxu0 %v516
    %1769 = vmatprep.subr.bf16.mxu0 0
    %1770 = vmatpush2.bf16.msra.mxu0 0
    %1771 = vmatprep.subr.bf16.mxu0 0
    %1772 = vmatpush2.bf16.msra.mxu0 0
    %1773 = vmatprep.subr.bf16.mxu0 0
    %1774 = vmatpush2.bf16.msra.mxu0 0
    %1775 = vmatprep.subr.bf16.mxu0 0
    %1776 = vmatpush2.bf16.msra.mxu0 0
    %1777 = vmatprep.subr.bf16.mxu0 0
    %1778 = vmatpush2.bf16.msra.mxu0 0
    %1779 = vmatprep.subr.bf16.mxu0 0
    %1780 = vmatpush2.bf16.msra.mxu0 0
    %1781 = vmatprep.subr.bf16.mxu0 0
    %1782 = vmatpush2.bf16.msra.mxu0 0
    %1783 = vmatprep.subr.bf16.mxu0 0
    %1784 = vmatpush2.bf16.msra.mxu0 0
    %1785 = vmatprep.mubr.bf16.mxu0 0
    %1786 = vmatmul.mubr.bf16.gmra.mxu0 %v1711
    %v1787 = vpop.f32.mrf.mxu0
    %v1788 = vadd.f32 0.0, %v1787
    %v1789 = vpop.f32.mrf.mxu0
    %v1790 = vadd.f32 0.0, %v1789
    %v1791 = vpop.f32.mrf.mxu0
    %v1792 = vpop.f32.mrf.mxu0
    %1793 = vdwg.mxu0
    %v1794 = vadd.f32 %v1664, %v1747
    %v1795 = vadd.f32 %v1666, %v1749
    %v1796 = vadd.f32 %v1705, %v1788
    %v1797 = vadd.f32 %v1707, %v1790
    %v1798 = vmul.f32 %v1794, 0.5
    %v1799 = vtanh.pop %v1798
    %v1800 = vmul.f32 %v1799, 0.5
    %v1801 = vadd.f32 %v1800, 0.5
    %v1802 = vmul.f32 %v1795, 0.5
    %v1803 = vtanh.pop %v1802
    %v1804 = vmul.f32 %v1803, 0.5
    %v1805 = vadd.f32 %v1804, 0.5
    %v1806 = vtanh.pop %v1796
    %v1807 = vmul.f32 %v1797, 0.5
    %v1808 = vtanh.pop %v1807
    %v1809 = vmul.f32 %v1808, 0.5
    %v1810 = vadd.f32 %v1809, 0.5
    %v1811 = vmul.f32 %v1805, %v1624
    %v1812 = vmul.f32 %v1801, %v1806
    %v1813 = vadd.f32 %v1811, %v1812
    %v1814 = vtanh.pop %v1813
    %v1815 = vmul.f32 %v1810, %v1814
    %s1816 = scalar_lea.vmem [#allocation4], 28
    %v1817 = vld [vmem:[%s1816] sm:$0xf]
    %1818 = vmatprep.subr.bf16.mxu0 %v300
    %1819 = vmatpush1.bf16.msra.mxu0 %v299
    %1820 = vmatprep.subr.bf16.mxu0 %v296
    %1821 = vmatpush1.bf16.msra.mxu0 %v295
    %1822 = vmatprep.subr.bf16.mxu0 %v292
    %1823 = vmatpush1.bf16.msra.mxu0 %v291
    %1824 = vmatprep.subr.bf16.mxu0 %v288
    %1825 = vmatpush1.bf16.msra.mxu0 %v287
    %1826 = vmatprep.subr.bf16.mxu0 %v284
    %1827 = vmatpush1.bf16.msra.mxu0 %v283
    %1828 = vmatprep.subr.bf16.mxu0 %v280
    %1829 = vmatpush1.bf16.msra.mxu0 %v279
    %1830 = vmatprep.subr.bf16.mxu0 %v276
    %1831 = vmatpush1.bf16.msra.mxu0 %v275
    %1832 = vmatprep.subr.bf16.mxu0 %v272
    %1833 = vmatpush1.bf16.msra.mxu0 %v271
    %1834 = vmatprep.subr.bf16.mxu0 0
    %1835 = vmatpush2.bf16.msra.mxu0 0
    %1836 = vmatprep.subr.bf16.mxu0 0
    %1837 = vmatpush2.bf16.msra.mxu0 0
    %1838 = vmatprep.subr.bf16.mxu0 0
    %1839 = vmatpush2.bf16.msra.mxu0 0
    %1840 = vmatprep.subr.bf16.mxu0 0
    %1841 = vmatpush2.bf16.msra.mxu0 0
    %1842 = vmatprep.subr.bf16.mxu0 0
    %1843 = vmatpush2.bf16.msra.mxu0 0
    %1844 = vmatprep.subr.bf16.mxu0 0
    %1845 = vmatpush2.bf16.msra.mxu0 0
    %1846 = vmatprep.subr.bf16.mxu0 0
    %1847 = vmatpush2.bf16.msra.mxu0 0
    %1848 = vmatprep.subr.bf16.mxu0 0
    %1849 = vmatpush2.bf16.msra.mxu0 0
    %1850 = vmatprep.mubr.bf16.mxu0 0
    %1851 = vmatmul.mubr.bf16.gmra.mxu0 %v1817
    %v1852 = vpop.f32.mrf.mxu0
    %v1853 = vadd.f32 %v155, %v1852
    %v1854 = vpop.f32.mrf.mxu0
    %v1855 = vadd.f32 %v159, %v1854
    %v1856 = vpop.f32.mrf.mxu0
    %v1857 = vpop.f32.mrf.mxu0
    %1858 = vdwg.mxu0
    %1859 = vmatprep.subr.bf16.mxu0 %v302
    %1860 = vmatpush1.bf16.msra.mxu0 %v301
    %1861 = vmatprep.subr.bf16.mxu0 %v298
    %1862 = vmatpush1.bf16.msra.mxu0 %v297
    %1863 = vmatprep.subr.bf16.mxu0 %v294
    %1864 = vmatpush1.bf16.msra.mxu0 %v293
    %1865 = vmatprep.subr.bf16.mxu0 %v290
    %1866 = vmatpush1.bf16.msra.mxu0 %v289
    %1867 = vmatprep.subr.bf16.mxu0 %v286
    %1868 = vmatpush1.bf16.msra.mxu0 %v285
    %1869 = vmatprep.subr.bf16.mxu0 %v282
    %1870 = vmatpush1.bf16.msra.mxu0 %v281
    %1871 = vmatprep.subr.bf16.mxu0 %v278
    %1872 = vmatpush1.bf16.msra.mxu0 %v277
    %1873 = vmatprep.subr.bf16.mxu0 %v274
    %1874 = vmatpush1.bf16.msra.mxu0 %v273
    %1875 = vmatprep.subr.bf16.mxu0 0
    %1876 = vmatpush2.bf16.msra.mxu0 0
    %1877 = vmatprep.subr.bf16.mxu0 0
    %1878 = vmatpush2.bf16.msra.mxu0 0
    %1879 = vmatprep.subr.bf16.mxu0 0
    %1880 = vmatpush2.bf16.msra.mxu0 0
    %1881 = vmatprep.subr.bf16.mxu0 0
    %1882 = vmatpush2.bf16.msra.mxu0 0
    %1883 = vmatprep.subr.bf16.mxu0 0
    %1884 = vmatpush2.bf16.msra.mxu0 0
    %1885 = vmatprep.subr.bf16.mxu0 0
    %1886 = vmatpush2.bf16.msra.mxu0 0
    %1887 = vmatprep.subr.bf16.mxu0 0
    %1888 = vmatpush2.bf16.msra.mxu0 0
    %1889 = vmatprep.subr.bf16.mxu0 0
    %1890 = vmatpush2.bf16.msra.mxu0 0
    %1891 = vmatprep.mubr.bf16.mxu0 0
    %1892 = vmatmul.mubr.bf16.gmra.mxu0 %v1817
    %v1893 = vpop.f32.mrf.mxu0
    %v1894 = vadd.f32 %v163, %v1893
    %v1895 = vpop.f32.mrf.mxu0
    %v1896 = vadd.f32 %v167, %v1895
    %v1897 = vpop.f32.mrf.mxu0
    %v1898 = vpop.f32.mrf.mxu0
    %1899 = vdwg.mxu0
    %v1900 = vpack.c.bf16 %v1815, %v1815
    %1901 = vmatprep.subr.bf16.mxu0 %v543
    %1902 = vmatpush1.bf16.msra.mxu0 %v542
    %1903 = vmatprep.subr.bf16.mxu0 %v539
    %1904 = vmatpush1.bf16.msra.mxu0 %v538
    %1905 = vmatprep.subr.bf16.mxu0 %v535
    %1906 = vmatpush1.bf16.msra.mxu0 %v534
    %1907 = vmatprep.subr.bf16.mxu0 %v531
    %1908 = vmatpush1.bf16.msra.mxu0 %v530
    %1909 = vmatprep.subr.bf16.mxu0 %v527
    %1910 = vmatpush1.bf16.msra.mxu0 %v526
    %1911 = vmatprep.subr.bf16.mxu0 %v523
    %1912 = vmatpush1.bf16.msra.mxu0 %v522
    %1913 = vmatprep.subr.bf16.mxu0 %v519
    %1914 = vmatpush1.bf16.msra.mxu0 %v518
    %1915 = vmatprep.subr.bf16.mxu0 %v515
    %1916 = vmatpush1.bf16.msra.mxu0 %v514
    %1917 = vmatprep.subr.bf16.mxu0 0
    %1918 = vmatpush2.bf16.msra.mxu0 0
    %1919 = vmatprep.subr.bf16.mxu0 0
    %1920 = vmatpush2.bf16.msra.mxu0 0
    %1921 = vmatprep.subr.bf16.mxu0 0
    %1922 = vmatpush2.bf16.msra.mxu0 0
    %1923 = vmatprep.subr.bf16.mxu0 0
    %1924 = vmatpush2.bf16.msra.mxu0 0
    %1925 = vmatprep.subr.bf16.mxu0 0
    %1926 = vmatpush2.bf16.msra.mxu0 0
    %1927 = vmatprep.subr.bf16.mxu0 0
    %1928 = vmatpush2.bf16.msra.mxu0 0
    %1929 = vmatprep.subr.bf16.mxu0 0
    %1930 = vmatpush2.bf16.msra.mxu0 0
    %1931 = vmatprep.subr.bf16.mxu0 0
    %1932 = vmatpush2.bf16.msra.mxu0 0
    %1933 = vmatprep.mubr.bf16.mxu0 0
    %1934 = vmatmul.mubr.bf16.gmra.mxu0 %v1900
    %v1935 = vpop.f32.mrf.mxu0
    %v1936 = vadd.f32 0.0, %v1935
    %v1937 = vpop.f32.mrf.mxu0
    %v1938 = vadd.f32 0.0, %v1937
    %v1939 = vpop.f32.mrf.mxu0
    %v1940 = vpop.f32.mrf.mxu0
    %1941 = vdwg.mxu0
    %1942 = vmatprep.subr.bf16.mxu0 %v545
    %1943 = vmatpush1.bf16.msra.mxu0 %v544
    %1944 = vmatprep.subr.bf16.mxu0 %v541
    %1945 = vmatpush1.bf16.msra.mxu0 %v540
    %1946 = vmatprep.subr.bf16.mxu0 %v537
    %1947 = vmatpush1.bf16.msra.mxu0 %v536
    %1948 = vmatprep.subr.bf16.mxu0 %v533
    %1949 = vmatpush1.bf16.msra.mxu0 %v532
    %1950 = vmatprep.subr.bf16.mxu0 %v529
    %1951 = vmatpush1.bf16.msra.mxu0 %v528
    %1952 = vmatprep.subr.bf16.mxu0 %v525
    %1953 = vmatpush1.bf16.msra.mxu0 %v524
    %1954 = vmatprep.subr.bf16.mxu0 %v521
    %1955 = vmatpush1.bf16.msra.mxu0 %v520
    %1956 = vmatprep.subr.bf16.mxu0 %v517
    %1957 = vmatpush1.bf16.msra.mxu0 %v516
    %1958 = vmatprep.subr.bf16.mxu0 0
    %1959 = vmatpush2.bf16.msra.mxu0 0
    %1960 = vmatprep.subr.bf16.mxu0 0
    %1961 = vmatpush2.bf16.msra.mxu0 0
    %1962 = vmatprep.subr.bf16.mxu0 0
    %1963 = vmatpush2.bf16.msra.mxu0 0
    %1964 = vmatprep.subr.bf16.mxu0 0
    %1965 = vmatpush2.bf16.msra.mxu0 0
    %1966 = vmatprep.subr.bf16.mxu0 0
    %1967 = vmatpush2.bf16.msra.mxu0 0
    %1968 = vmatprep.subr.bf16.mxu0 0
    %1969 = vmatpush2.bf16.msra.mxu0 0
    %1970 = vmatprep.subr.bf16.mxu0 0
    %1971 = vmatpush2.bf16.msra.mxu0 0
    %1972 = vmatprep.subr.bf16.mxu0 0
    %1973 = vmatpush2.bf16.msra.mxu0 0
    %1974 = vmatprep.mubr.bf16.mxu0 0
    %1975 = vmatmul.mubr.bf16.gmra.mxu0 %v1900
    %v1976 = vpop.f32.mrf.mxu0
    %v1977 = vadd.f32 0.0, %v1976
    %v1978 = vpop.f32.mrf.mxu0
    %v1979 = vadd.f32 0.0, %v1978
    %v1980 = vpop.f32.mrf.mxu0
    %v1981 = vpop.f32.mrf.mxu0
    %1982 = vdwg.mxu0
    %v1983 = vadd.f32 %v1853, %v1936
    %v1984 = vadd.f32 %v1855, %v1938
    %v1985 = vadd.f32 %v1894, %v1977
    %v1986 = vadd.f32 %v1896, %v1979
    %v1987 = vmul.f32 %v1983, 0.5
    %v1988 = vtanh.pop %v1987
    %v1989 = vmul.f32 %v1988, 0.5
    %v1990 = vadd.f32 %v1989, 0.5
    %v1991 = vmul.f32 %v1984, 0.5
    %v1992 = vtanh.pop %v1991
    %v1993 = vmul.f32 %v1992, 0.5
    %v1994 = vadd.f32 %v1993, 0.5
    %v1995 = vtanh.pop %v1985
    %v1996 = vmul.f32 %v1986, 0.5
    %v1997 = vtanh.pop %v1996
    %v1998 = vmul.f32 %v1997, 0.5
    %v1999 = vadd.f32 %v1998, 0.5
    %v2000 = vmul.f32 %v1994, %v1813
    %v2001 = vmul.f32 %v1990, %v1995
    %v2002 = vadd.f32 %v2000, %v2001
    %v2003 = vtanh.pop %v2002
    %v2004 = vmul.f32 %v1999, %v2003
    %2005 = vst [vmem:[#allocation2] sm:$0xff] %v2004
    %2006 = vst [vmem:[#allocation3] sm:$0xff] %v2002
    // Predicated region
    $region46: #{tpu_custom_call.1} parent=1 // pred_check
      %p2007 = pneg %p80
    $region47: #{tpu_custom_call.1} parent=1 // pred_check_branch
      %2009 = sbr.rel (%p2007) target = $region49
    $region48: #{tpu_custom_call.1} parent=1 // pred_region
      %v2010 = vld [vmem:[#allocation2] sm:$0xff]
      %v2011 = vpack.c.bf16 %v2010, %v2010
      %v2012 = vld [vmem:[#allocation10] sm:$0xf]
      %v2013 = vld [vmem:[#allocation10 + $0x4] sm:$0xf]
      %v2014 = vld [vmem:[#allocation10 + $0x8] sm:$0xf]
      %v2015 = vld [vmem:[#allocation10 + $0xc] sm:$0xf]
      %v2016 = vld [vmem:[#allocation10 + $0x10] sm:$0xf]
      %v2017 = vld [vmem:[#allocation10 + $0x14] sm:$0xf]
      %v2018 = vld [vmem:[#allocation10 + $0x18] sm:$0xf]
      %v2019 = vld [vmem:[#allocation10 + $0x1c] sm:$0xf]
      %v2020 = vld [vmem:[#allocation10 + $0x20] sm:$0xf]
      %v2021 = vld [vmem:[#allocation10 + $0x24] sm:$0xf]
      %v2022 = vld [vmem:[#allocation10 + $0x28] sm:$0xf]
      %v2023 = vld [vmem:[#allocation10 + $0x2c] sm:$0xf]
      %v2024 = vld [vmem:[#allocation10 + $0x30] sm:$0xf]
      %v2025 = vld [vmem:[#allocation10 + $0x34] sm:$0xf]
      %v2026 = vld [vmem:[#allocation10 + $0x38] sm:$0xf]
      %v2027 = vld [vmem:[#allocation10 + $0x3c] sm:$0xf]
      %v2028 = vld [vmem:[%s5] sm:$0x1]
      %v2030 = vlaneseq
      %v2031 = vshrl.u32 %v2030, 7
      %v2032 = vsub.s32 0, %v2031
      %v2033 = vrot.slane %v2028, %v2032
      %v2051 = vunpack.c.l.b16 %v2012
      %v2052 = vunpack.c.l.b16 %v2013
      %v2053 = vunpack.c.l.b16 %v2014
      %v2054 = vunpack.c.l.b16 %v2015
      %v2055 = vunpack.c.l.b16 %v2016
      %v2056 = vunpack.c.l.b16 %v2017
      %v2057 = vunpack.c.l.b16 %v2018
      %v2058 = vunpack.c.l.b16 %v2019
      %v2059 = vunpack.c.l.b16 %v2020
      %v2060 = vunpack.c.l.b16 %v2021
      %v2061 = vunpack.c.l.b16 %v2022
      %v2062 = vunpack.c.l.b16 %v2023
      %v2063 = vunpack.c.l.b16 %v2024
      %v2064 = vunpack.c.l.b16 %v2025
      %v2065 = vunpack.c.l.b16 %v2026
      %v2066 = vunpack.c.l.b16 %v2027
      %v2067 = vpack.c.b16 %v2052, %v2051
      %v2068 = vpack.c.b16 %v2054, %v2053
      %v2069 = vpack.c.b16 %v2056, %v2055
      %v2070 = vpack.c.b16 %v2058, %v2057
      %v2071 = vpack.c.b16 %v2060, %v2059
      %v2072 = vpack.c.b16 %v2062, %v2061
      %v2073 = vpack.c.b16 %v2064, %v2063
      %v2074 = vpack.c.b16 %v2066, %v2065
      %2083 = vmatprep.subr.bf16.mxu0 0
      %2084 = vmatpush1.bf16.msra.mxu0 %v2074
      %2085 = vmatprep.subr.bf16.mxu0 0
      %2086 = vmatpush1.bf16.msra.mxu0 %v2073
      %2087 = vmatprep.subr.bf16.mxu0 0
      %2088 = vmatpush1.bf16.msra.mxu0 %v2072
      %2089 = vmatprep.subr.bf16.mxu0 0
      %2090 = vmatpush1.bf16.msra.mxu0 %v2071
      %2091 = vmatprep.subr.bf16.mxu0 0
      %2092 = vmatpush1.bf16.msra.mxu0 %v2070
      %2093 = vmatprep.subr.bf16.mxu0 0
      %2094 = vmatpush1.bf16.msra.mxu0 %v2069
      %2095 = vmatprep.subr.bf16.mxu0 0
      %2096 = vmatpush1.bf16.msra.mxu0 %v2068
      %2097 = vmatprep.subr.bf16.mxu0 0
      %2098 = vmatpush1.bf16.msra.mxu0 %v2067
      %2099 = vmatprep.subr.bf16.mxu0 0
      %2100 = vmatpush2.bf16.msra.mxu0 0
      %2101 = vmatprep.subr.bf16.mxu0 0
      %2102 = vmatpush2.bf16.msra.mxu0 0
      %2103 = vmatprep.subr.bf16.mxu0 0
      %2104 = vmatpush2.bf16.msra.mxu0 0
      %2105 = vmatprep.subr.bf16.mxu0 0
      %2106 = vmatpush2.bf16.msra.mxu0 0
      %2107 = vmatprep.subr.bf16.mxu0 0
      %2108 = vmatpush2.bf16.msra.mxu0 0
      %2109 = vmatprep.subr.bf16.mxu0 0
      %2110 = vmatpush2.bf16.msra.mxu0 0
      %2111 = vmatprep.subr.bf16.mxu0 0
      %2112 = vmatpush2.bf16.msra.mxu0 0
      %2113 = vmatprep.subr.bf16.mxu0 0
      %2114 = vmatpush2.bf16.msra.mxu0 0
      %2115 = vmatprep.mubr.bf16.mxu0 0
      %2116 = vmatmul.mubr.bf16.gmra.mxu0 %v2011
      %v2117 = vpop.f32.mrf.mxu0
      %v2118 = vadd.f32 %v2033, %v2117
      %v2119 = vpop.f32.mrf.mxu0
      %v2120 = vpop.f32.mrf.mxu0
      %v2121 = vpop.f32.mrf.mxu0
      %2122 = vdwg.mxu0
      %2123 = vst [vmem:[#allocation12] sm:$0xff] %v2118
    $region49: #{tpu_custom_call.1} parent=1 // pred_fallthru
      _
    // Predicated region
    $region50: #{tpu_custom_call.1} parent=1 // pred_check
      _
    $region51: #{tpu_custom_call.1} parent=1 // pred_check_branch
      %2125 = sbr.rel (0) target = $region53
    $region52: #{tpu_custom_call.1} parent=1 // pred_region
      %s2127 = ssub.s32 128, 128
      %2128 = vsyncadd [#allocation6], %s2127
      %s2130 = sshll.u32 [#allocation12], 4
      %s2131 = int_to_ptr.vmem [resolvable:$true] %s2130
      %2133 = dma.vmem_to_hbm [thread:$0]  %s2131, 128, %s6, [#allocation6]
    $region53: #{tpu_custom_call.1} parent=1 // pred_fallthru
      _
    // Predicated region
    $region54: #{tpu_custom_call.1} parent=1 // pred_check
      _
    $region55: #{tpu_custom_call.1} parent=1 // pred_check_branch
      %2135 = sbr.rel (0) target = $region57
    $region56: #{tpu_custom_call.1} parent=1 // pred_region
      %2136 = dma.done [#allocation6], 128
    $region57: #{tpu_custom_call.1} parent=1 // pred_fallthru
      _
    %2137 = vsyncpa [#allocation5], 1
    %2138 = vsyncpa [#allocation8], 1
    %2139 = vsyncpa [#allocation11], 1
    %2140 = vsyncpa [#allocation6], 1

// kernel: tpu_custom_call.1
$region0: #{tpu_custom_call.1}
  #allocation0 [shape = 'u32[]', space=smem, size = 0x4, offset = 0x4, fixed_abs, tag = 'smem constant byte address 0x4 - core index']
  #allocation1 [shape = 'u32[144,128]{1,0:T(1,128)}', space=vmem, size = 0x12000, scoped, tag = 'internal scratch']
  #allocation2 [shape = 'f32[8,128]{1,0:T(8,128)}', space=vmem, size = 0x1000, scoped, tag = 'scratch operand']
  #allocation3 [shape = 'f32[8,128]{1,0:T(8,128)}', space=vmem, size = 0x1000, scoped, tag = 'scratch operand']
  %s0 = inlined_call_operand.hbm [shape: bf16[8,8,128], index: 0, kind: input, shape index: {}]
  %s1 = inlined_call_operand.hbm [shape: bf16[128,512], index: 1, kind: input, shape index: {}]
  %s2 = inlined_call_operand.hbm [shape: bf16[128,512], index: 2, kind: input, shape index: {}]
  %s3 = inlined_call_operand.vmem [shape: f32[1,512], index: 3, kind: input, shape index: {}]
  %s4 = inlined_call_operand.hbm [shape: bf16[128,128], index: 4, kind: input, shape index: {}]
  %s5 = inlined_call_operand.vmem [shape: f32[1,128], index: 5, kind: input, shape index: {}]
  %s6 = inlined_call_operand.hbm [shape: f32[8,128], index: 6, kind: output, shape index: {}]
  %s7 = sld [smem:[#allocation0]]
  $region58: #{tpu_custom_call.1} parent=0
    _
  %s9 = ssub.s32 1, %s7
  %s10 = scalar_select 0, %s9, %s7
  $region1: #{tpu_custom_call.1} parent=0
    #allocation4 [shape = 'u8[16384]{0}', space=vmem, size = 0x4000, scoped, tag = 'input window, operand 0, single buffered']
    #allocation5 [shape = 's32[1]{0}', space=sflag, size = 0x4, scoped, tag = 'scoped memory for tpu_custom_call.1']
    #allocation6 [shape = 's32[1]{0}', space=sflag, size = 0x4, scoped, tag = 'scoped memory for tpu_custom_call.1']
    #allocation7 [shape = 'u8[131072]{0}', space=vmem, size = 0x20000, scoped, tag = 'input window, operand 1, single buffered']
    #allocation8 [shape = 's32[1]{0}', space=sflag, size = 0x4, scoped, tag = 'scoped memory for tpu_custom_call.1']
    #allocation9 [shape = 'u8[131072]{0}', space=vmem, size = 0x20000, scoped, tag = 'input window, operand 2, single buffered']
    #allocation10 [shape = 'u8[32768]{0}', space=vmem, size = 0x8000, scoped, tag = 'input window, operand 4, single buffered']
    #allocation11 [shape = 's32[1]{0}', space=sflag, size = 0x4, scoped, tag = 'scoped memory for tpu_custom_call.1']
    #allocation12 [shape = 'u8[4096]{0}', space=vmem, size = 0x1000, scoped, tag = 'output window, operand 0, single buffered']
    %11 = vsyncpa [#allocation5], 0
    %12 = vsyncpa [#allocation8], 0
    %13 = vsyncpa [#allocation11], 0
    %14 = vsyncpa [#allocation6], 0
    // Predicated region
    $region2: #{tpu_custom_call.1} parent=1 // pred_check
      _
    $region3: #{tpu_custom_call.1} parent=1 // pred_check_branch
      %16 = sbr.rel (0) target = $region5
    $region4: #{tpu_custom_call.1} parent=1 // pred_region
      %s18 = ssub.s32 512, 512
      %19 = vsyncadd [#allocation5], %s18
      %s20 = sshll.u32 [#allocation4], 4
      %s21 = int_to_ptr.vmem [resolvable:$true] %s20
      %26 = dma.hbm_to_vmem [thread:$0]  %s0, 512, %s21, [#allocation5], 64, 64, 4
    $region5: #{tpu_custom_call.1} parent=1 // pred_fallthru
      _
    // Predicated region
    $region6: #{tpu_custom_call.1} parent=1 // pred_check
      _
    $region7: #{tpu_custom_call.1} parent=1 // pred_check_branch
      %28 = sbr.rel (0) target = $region9
    $region8: #{tpu_custom_call.1} parent=1 // pred_region
      %s30 = ssub.s32 4096, 4096
      %31 = vsyncadd [#allocation8], %s30
      %s32 = sshll.u32 [#allocation7], 4
      %s33 = int_to_ptr.vmem [resolvable:$true] %s32
      %38 = dma.hbm_to_vmem [thread:$0]  %s1, 4096, %s33, [#allocation8], 256, 256, 16
    $region9: #{tpu_custom_call.1} parent=1 // pred_fallthru
      _
    // Predicated region
    $region10: #{tpu_custom_call.1} parent=1 // pred_check
      _
    $region11: #{tpu_custom_call.1} parent=1 // pred_check_branch
      %40 = sbr.rel (0) target = $region13
    $region12: #{tpu_custom_call.1} parent=1 // pred_region
      %s42 = ssub.s32 4096, 4096
      %43 = vsyncadd [#allocation8], %s42
      %s44 = sshll.u32 [#allocation9], 4
      %s45 = int_to_ptr.vmem [resolvable:$true] %s44
      %50 = dma.hbm_to_vmem [thread:$0]  %s2, 4096, %s45, [#allocation8], 256, 256, 16
    $region13: #{tpu_custom_call.1} parent=1 // pred_fallthru
      _
    // Predicated region
    $region14: #{tpu_custom_call.1} parent=1 // pred_check
      _
    $region15: #{tpu_custom_call.1} parent=1 // pred_check_branch
      %52 = sbr.rel (0) target = $region17
    $region16: #{tpu_custom_call.1} parent=1 // pred_region
      _
    $region17: #{tpu_custom_call.1} parent=1 // pred_fallthru
      _
    // Predicated region
    $region18: #{tpu_custom_call.1} parent=1 // pred_check
      _
    $region19: #{tpu_custom_call.1} parent=1 // pred_check_branch
      %54 = sbr.rel (0) target = $region21
    $region20: #{tpu_custom_call.1} parent=1 // pred_region
      %s56 = ssub.s32 1024, 1024
      %57 = vsyncadd [#allocation11], %s56
      %s58 = sshll.u32 [#allocation10], 4
      %s59 = int_to_ptr.vmem [resolvable:$true] %s58
      %64 = dma.hbm_to_vmem [thread:$0]  %s4, 1024, %s59, [#allocation11], 64, 64, 4
    $region21: #{tpu_custom_call.1} parent=1 // pred_fallthru
      _
    // Predicated region
    $region22: #{tpu_custom_call.1} parent=1 // pred_check
      _
    $region23: #{tpu_custom_call.1} parent=1 // pred_check_branch
      %66 = sbr.rel (0) target = $region25
    $region24: #{tpu_custom_call.1} parent=1 // pred_region
      _
    $region25: #{tpu_custom_call.1} parent=1 // pred_fallthru
      _
    // Predicated region
    $region26: #{tpu_custom_call.1} parent=1 // pred_check
      _
    $region27: #{tpu_custom_call.1} parent=1 // pred_check_branch
      %68 = sbr.rel (0) target = $region29
    $region28: #{tpu_custom_call.1} parent=1 // pred_region
      %69 = dma.done [#allocation5], 512
    $region29: #{tpu_custom_call.1} parent=1 // pred_fallthru
      _
    // Predicated region
    $region30: #{tpu_custom_call.1} parent=1 // pred_check
      _
    $region31: #{tpu_custom_call.1} parent=1 // pred_check_branch
      %71 = sbr.rel (0) target = $region33
    $region32: #{tpu_custom_call.1} parent=1 // pred_region
      %72 = dma.done [#allocation8], 4096
    $region33: #{tpu_custom_call.1} parent=1 // pred_fallthru
      _
    // Predicated region
    $region34: #{tpu_custom_call.1} parent=1 // pred_check
      _
    $region35: #{tpu_custom_call.1} parent=1 // pred_check_branch
      %74 = sbr.rel (0) target = $region37
    $region36: #{tpu_custom_call.1} parent=1 // pred_region
      %75 = dma.done [#allocation8], 4096
    $region37: #{tpu_custom_call.1} parent=1 // pred_fallthru
      _
    // Predicated region
    $region38: #{tpu_custom_call.1} parent=1 // pred_check
      _
    $region39: #{tpu_custom_call.1} parent=1 // pred_check_branch
      %77 = sbr.rel (0) target = $region41
    $region40: #{tpu_custom_call.1} parent=1 // pred_region
      %78 = dma.done [#allocation11], 1024
    $region41: #{tpu_custom_call.1} parent=1 // pred_fallthru
      _
    %p80 = scmp.eq.s32.totalorder 0, 0
    // Predicated region
    $region42: #{tpu_custom_call.1} parent=1 // pred_check
      %p81 = pneg %p80
    $region43: #{tpu_custom_call.1} parent=1 // pred_check_branch
      %83 = sbr.rel (%p81) target = $region45
    $region44: #{tpu_custom_call.1} parent=1 // pred_region
      %84 = vst [vmem:[#allocation2] sm:$0xff] 0.0
      %85 = vst [vmem:[#allocation3] sm:$0xff] 0.0
    $region45: #{tpu_custom_call.1} parent=1 // pred_fallthru
      _
    %v86 = vld [vmem:[#allocation7] sm:$0xff]
    %v87 = vld [vmem:[#allocation7 + $0x8] sm:$0xff]
    %v88 = vld [vmem:[#allocation7 + $0x10] sm:$0xff]
    %v89 = vld [vmem:[#allocation7 + $0x18] sm:$0xff]
    %v90 = vld [vmem:[#allocation7 + $0x20] sm:$0xff]
    %v91 = vld [vmem:[#allocation7 + $0x28] sm:$0xff]
    %v92 = vld [vmem:[#allocation7 + $0x30] sm:$0xff]
    %v93 = vld [vmem:[#allocation7 + $0x38] sm:$0xff]
    %v94 = vld [vmem:[#allocation7 + $0x40] sm:$0xff]
    %v95 = vld [vmem:[#allocation7 + $0x48] sm:$0xff]
    %v96 = vld [vmem:[#allocation7 + $0x50] sm:$0xff]
    %v97 = vld [vmem:[#allocation7 + $0x58] sm:$0xff]
    %v98 = vld [vmem:[#allocation7 + $0x60] sm:$0xff]
    %v99 = vld [vmem:[#allocation7 + $0x68] sm:$0xff]
    %v100 = vld [vmem:[#allocation7 + $0x70] sm:$0xff]
    %v101 = vld [vmem:[#allocation7 + $0x78] sm:$0xff]
    %v102 = vld [vmem:[#allocation7 + $0x80] sm:$0xff]
    %v103 = vld [vmem:[#allocation7 + $0x88] sm:$0xff]
    %v104 = vld [vmem:[#allocation7 + $0x90] sm:$0xff]
    %v105 = vld [vmem:[#allocation7 + $0x98] sm:$0xff]
    %v106 = vld [vmem:[#allocation7 + $0xa0] sm:$0xff]
    %v107 = vld [vmem:[#allocation7 + $0xa8] sm:$0xff]
    %v108 = vld [vmem:[#allocation7 + $0xb0] sm:$0xff]
    %v109 = vld [vmem:[#allocation7 + $0xb8] sm:$0xff]
    %v110 = vld [vmem:[#allocation7 + $0xc0] sm:$0xff]
    %v111 = vld [vmem:[#allocation7 + $0xc8] sm:$0xff]
    %v112 = vld [vmem:[#allocation7 + $0xd0] sm:$0xff]
    %v113 = vld [vmem:[#allocation7 + $0xd8] sm:$0xff]
    %v114 = vld [vmem:[#allocation7 + $0xe0] sm:$0xff]
    %v115 = vld [vmem:[#allocation7 + $0xe8] sm:$0xff]
    %v116 = vld [vmem:[#allocation7 + $0xf0] sm:$0xff]
    %v117 = vld [vmem:[#allocation7 + $0xf8] sm:$0xff]
    %v118 = vld [vmem:[#allocation9] sm:$0xff]
    %v119 = vld [vmem:[#allocation9 + $0x8] sm:$0xff]
    %v120 = vld [vmem:[#allocation9 + $0x10] sm:$0xff]
    %v121 = vld [vmem:[#allocation9 + $0x18] sm:$0xff]
    %v122 = vld [vmem:[#allocation9 + $0x20] sm:$0xff]
    %v123 = vld [vmem:[#allocation9 + $0x28] sm:$0xff]
    %v124 = vld [vmem:[#allocation9 + $0x30] sm:$0xff]
    %v125 = vld [vmem:[#allocation9 + $0x38] sm:$0xff]
    %v126 = vld [vmem:[#allocation9 + $0x40] sm:$0xff]
    %v127 = vld [vmem:[#allocation9 + $0x48] sm:$0xff]
    %v128 = vld [vmem:[#allocation9 + $0x50] sm:$0xff]
    %v129 = vld [vmem:[#allocation9 + $0x58] sm:$0xff]
    %v130 = vld [vmem:[#allocation9 + $0x60] sm:$0xff]
    %v131 = vld [vmem:[#allocation9 + $0x68] sm:$0xff]
    %v132 = vld [vmem:[#allocation9 + $0x70] sm:$0xff]
    %v133 = vld [vmem:[#allocation9 + $0x78] sm:$0xff]
    %v134 = vld [vmem:[#allocation9 + $0x80] sm:$0xff]
    %v135 = vld [vmem:[#allocation9 + $0x88] sm:$0xff]
    %v136 = vld [vmem:[#allocation9 + $0x90] sm:$0xff]
    %v137 = vld [vmem:[#allocation9 + $0x98] sm:$0xff]
    %v138 = vld [vmem:[#allocation9 + $0xa0] sm:$0xff]
    %v139 = vld [vmem:[#allocation9 + $0xa8] sm:$0xff]
    %v140 = vld [vmem:[#allocation9 + $0xb0] sm:$0xff]
    %v141 = vld [vmem:[#allocation9 + $0xb8] sm:$0xff]
    %v142 = vld [vmem:[#allocation9 + $0xc0] sm:$0xff]
    %v143 = vld [vmem:[#allocation9 + $0xc8] sm:$0xff]
    %v144 = vld [vmem:[#allocation9 + $0xd0] sm:$0xff]
    %v145 = vld [vmem:[#allocation9 + $0xd8] sm:$0xff]
    %v146 = vld [vmem:[#allocation9 + $0xe0] sm:$0xff]
    %v147 = vld [vmem:[#allocation9 + $0xe8] sm:$0xff]
    %v148 = vld [vmem:[#allocation9 + $0xf0] sm:$0xff]
    %v149 = vld [vmem:[#allocation9 + $0xf8] sm:$0xff]
    %v150 = vld [vmem:[%s3] sm:$0xf]
    %v152 = vlaneseq
    %v153 = vshrl.u32 %v152, 7
    %v154 = vsub.s32 0, %v153
    %v155 = vrot.slane %v150, %v154
    %v156 = vlaneseq
    %v157 = vshrl.u32 %v156, 7
    %v158 = vsub.s32 1, %v157
    %v159 = vrot.slane %v150, %v158
    %v160 = vlaneseq
    %v161 = vshrl.u32 %v160, 7
    %v162 = vsub.s32 2, %v161
    %v163 = vrot.slane %v150, %v162
    %v164 = vlaneseq
    %v165 = vshrl.u32 %v164, 7
    %v166 = vsub.s32 3, %v165
    %v167 = vrot.slane %v150, %v166
    %v172 = vld [vmem:[#allocation2] sm:$0xff]
    %v173 = vld [vmem:[#allocation3] sm:$0xff]
    %v174 = vld [vmem:[#allocation4] sm:$0xf]
    %v207 = vunpack.c.l.b16 %v86
    %v208 = vunpack.c.h.b16 %v86
    %v209 = vunpack.c.l.b16 %v87
    %v210 = vunpack.c.h.b16 %v87
    %v211 = vunpack.c.l.b16 %v88
    %v212 = vunpack.c.h.b16 %v88
    %v213 = vunpack.c.l.b16 %v89
    %v214 = vunpack.c.h.b16 %v89
    %v215 = vunpack.c.l.b16 %v90
    %v216 = vunpack.c.h.b16 %v90
    %v217 = vunpack.c.l.b16 %v91
    %v218 = vunpack.c.h.b16 %v91
    %v219 = vunpack.c.l.b16 %v92
    %v220 = vunpack.c.h.b16 %v92
    %v221 = vunpack.c.l.b16 %v93
    %v222 = vunpack.c.h.b16 %v93
    %v223 = vunpack.c.l.b16 %v94
    %v224 = vunpack.c.h.b16 %v94
    %v225 = vunpack.c.l.b16 %v95
    %v226 = vunpack.c.h.b16 %v95
    %v227 = vunpack.c.l.b16 %v96
    %v228 = vunpack.c.h.b16 %v96
    %v229 = vunpack.c.l.b16 %v97
    %v230 = vunpack.c.h.b16 %v97
    %v231 = vunpack.c.l.b16 %v98
    %v232 = vunpack.c.h.b16 %v98
    %v233 = vunpack.c.l.b16 %v99
    %v234 = vunpack.c.h.b16 %v99
    %v235 = vunpack.c.l.b16 %v100
    %v236 = vunpack.c.h.b16 %v100
    %v237 = vunpack.c.l.b16 %v101
    %v238 = vunpack.c.h.b16 %v101
    %v239 = vunpack.c.l.b16 %v102
    %v240 = vunpack.c.h.b16 %v102
    %v241 = vunpack.c.l.b16 %v103
    %v242 = vunpack.c.h.b16 %v103
    %v243 = vunpack.c.l.b16 %v104
    %v244 = vunpack.c.h.b16 %v104
    %v245 = vunpack.c.l.b16 %v105
    %v246 = vunpack.c.h.b16 %v105
    %v247 = vunpack.c.l.b16 %v106
    %v248 = vunpack.c.h.b16 %v106
    %v249 = vunpack.c.l.b16 %v107
    %v250 = vunpack.c.h.b16 %v107
    %v251 = vunpack.c.l.b16 %v108
    %v252 = vunpack.c.h.b16 %v108
    %v253 = vunpack.c.l.b16 %v109
    %v254 = vunpack.c.h.b16 %v109
    %v255 = vunpack.c.l.b16 %v110
    %v256 = vunpack.c.h.b16 %v110
    %v257 = vunpack.c.l.b16 %v111
    %v258 = vunpack.c.h.b16 %v111
    %v259 = vunpack.c.l.b16 %v112
    %v260 = vunpack.c.h.b16 %v112
    %v261 = vunpack.c.l.b16 %v113
    %v262 = vunpack.c.h.b16 %v113
    %v263 = vunpack.c.l.b16 %v114
    %v264 = vunpack.c.h.b16 %v114
    %v265 = vunpack.c.l.b16 %v115
    %v266 = vunpack.c.h.b16 %v115
    %v267 = vunpack.c.l.b16 %v116
    %v268 = vunpack.c.h.b16 %v116
    %v269 = vunpack.c.l.b16 %v117
    %v270 = vunpack.c.h.b16 %v117
    %v271 = vpack.c.b16 %v211, %v207
    %v272 = vpack.c.b16 %v212, %v208
    %v273 = vpack.c.b16 %v213, %v209
    %v274 = vpack.c.b16 %v214, %v210
    %v275 = vpack.c.b16 %v219, %v215
    %v276 = vpack.c.b16 %v220, %v216
    %v277 = vpack.c.b16 %v221, %v217
    %v278 = vpack.c.b16 %v222, %v218
    %v279 = vpack.c.b16 %v227, %v223
    %v280 = vpack.c.b16 %v228, %v224
    %v281 = vpack.c.b16 %v229, %v225
    %v282 = vpack.c.b16 %v230, %v226
    %v283 = vpack.c.b16 %v235, %v231
    %v284 = vpack.c.b16 %v236, %v232
    %v285 = vpack.c.b16 %v237, %v233
    %v286 = vpack.c.b16 %v238, %v234
    %v287 = vpack.c.b16 %v243, %v239
    %v288 = vpack.c.b16 %v244, %v240
    %v289 = vpack.c.b16 %v245, %v241
    %v290 = vpack.c.b16 %v246, %v242
    %v291 = vpack.c.b16 %v251, %v247
    %v292 = vpack.c.b16 %v252, %v248
    %v293 = vpack.c.b16 %v253, %v249
    %v294 = vpack.c.b16 %v254, %v250
    %v295 = vpack.c.b16 %v259, %v255
    %v296 = vpack.c.b16 %v260, %v256
    %v297 = vpack.c.b16 %v261, %v257
    %v298 = vpack.c.b16 %v262, %v258
    %v299 = vpack.c.b16 %v267, %v263
    %v300 = vpack.c.b16 %v268, %v264
    %v301 = vpack.c.b16 %v269, %v265
    %v302 = vpack.c.b16 %v270, %v266
    %335 = vmatprep.subr.bf16.mxu0 %v300
    %336 = vmatpush1.bf16.msra.mxu0 %v299
    %337 = vmatprep.subr.bf16.mxu0 %v296
    %338 = vmatpush1.bf16.msra.mxu0 %v295
    %339 = vmatprep.subr.bf16.mxu0 %v292
    %340 = vmatpush1.bf16.msra.mxu0 %v291
    %341 = vmatprep.subr.bf16.mxu0 %v288
    %342 = vmatpush1.bf16.msra.mxu0 %v287
    %343 = vmatprep.subr.bf16.mxu0 %v284
    %344 = vmatpush1.bf16.msra.mxu0 %v283
    %345 = vmatprep.subr.bf16.mxu0 %v280
    %346 = vmatpush1.bf16.msra.mxu0 %v279
    %347 = vmatprep.subr.bf16.mxu0 %v276
    %348 = vmatpush1.bf16.msra.mxu0 %v275
    %349 = vmatprep.subr.bf16.mxu0 %v272
    %350 = vmatpush1.bf16.msra.mxu0 %v271
    %351 = vmatprep.subr.bf16.mxu0 0
    %352 = vmatpush2.bf16.msra.mxu0 0
    %353 = vmatprep.subr.bf16.mxu0 0
    %354 = vmatpush2.bf16.msra.mxu0 0
    %355 = vmatprep.subr.bf16.mxu0 0
    %356 = vmatpush2.bf16.msra.mxu0 0
    %357 = vmatprep.subr.bf16.mxu0 0
    %358 = vmatpush2.bf16.msra.mxu0 0
    %359 = vmatprep.subr.bf16.mxu0 0
    %360 = vmatpush2.bf16.msra.mxu0 0
    %361 = vmatprep.subr.bf16.mxu0 0
    %362 = vmatpush2.bf16.msra.mxu0 0
    %363 = vmatprep.subr.bf16.mxu0 0
    %364 = vmatpush2.bf16.msra.mxu0 0
    %365 = vmatprep.subr.bf16.mxu0 0
    %366 = vmatpush2.bf16.msra.mxu0 0
    %367 = vmatprep.mubr.bf16.mxu0 0
    %368 = vmatmul.mubr.bf16.gmra.mxu0 %v174
    %v369 = vpop.f32.mrf.mxu0
    %v370 = vadd.f32 %v155, %v369
    %v371 = vpop.f32.mrf.mxu0
    %v372 = vadd.f32 %v159, %v371
    %v373 = vpop.f32.mrf.mxu0
    %v374 = vpop.f32.mrf.mxu0
    %375 = vdwg.mxu0
    %376 = vmatprep.subr.bf16.mxu0 %v302
    %377 = vmatpush1.bf16.msra.mxu0 %v301
    %378 = vmatprep.subr.bf16.mxu0 %v298
    %379 = vmatpush1.bf16.msra.mxu0 %v297
    %380 = vmatprep.subr.bf16.mxu0 %v294
    %381 = vmatpush1.bf16.msra.mxu0 %v293
    %382 = vmatprep.subr.bf16.mxu0 %v290
    %383 = vmatpush1.bf16.msra.mxu0 %v289
    %384 = vmatprep.subr.bf16.mxu0 %v286
    %385 = vmatpush1.bf16.msra.mxu0 %v285
    %386 = vmatprep.subr.bf16.mxu0 %v282
    %387 = vmatpush1.bf16.msra.mxu0 %v281
    %388 = vmatprep.subr.bf16.mxu0 %v278
    %389 = vmatpush1.bf16.msra.mxu0 %v277
    %390 = vmatprep.subr.bf16.mxu0 %v274
    %391 = vmatpush1.bf16.msra.mxu0 %v273
    %392 = vmatprep.subr.bf16.mxu0 0
    %393 = vmatpush2.bf16.msra.mxu0 0
    %394 = vmatprep.subr.bf16.mxu0 0
    %395 = vmatpush2.bf16.msra.mxu0 0
    %396 = vmatprep.subr.bf16.mxu0 0
    %397 = vmatpush2.bf16.msra.mxu0 0
    %398 = vmatprep.subr.bf16.mxu0 0
    %399 = vmatpush2.bf16.msra.mxu0 0
    %400 = vmatprep.subr.bf16.mxu0 0
    %401 = vmatpush2.bf16.msra.mxu0 0
    %402 = vmatprep.subr.bf16.mxu0 0
    %403 = vmatpush2.bf16.msra.mxu0 0
    %404 = vmatprep.subr.bf16.mxu0 0
    %405 = vmatpush2.bf16.msra.mxu0 0
    %406 = vmatprep.subr.bf16.mxu0 0
    %407 = vmatpush2.bf16.msra.mxu0 0
    %408 = vmatprep.mubr.bf16.mxu0 0
    %409 = vmatmul.mubr.bf16.gmra.mxu0 %v174
    %v410 = vpop.f32.mrf.mxu0
    %v411 = vadd.f32 %v163, %v410
    %v412 = vpop.f32.mrf.mxu0
    %v413 = vadd.f32 %v167, %v412
    %v414 = vpop.f32.mrf.mxu0
    %v415 = vpop.f32.mrf.mxu0
    %416 = vdwg.mxu0
    %v417 = vpack.c.bf16 %v172, %v172
    %v450 = vunpack.c.l.b16 %v118
    %v451 = vunpack.c.h.b16 %v118
    %v452 = vunpack.c.l.b16 %v119
    %v453 = vunpack.c.h.b16 %v119
    %v454 = vunpack.c.l.b16 %v120
    %v455 = vunpack.c.h.b16 %v120
    %v456 = vunpack.c.l.b16 %v121
    %v457 = vunpack.c.h.b16 %v121
    %v458 = vunpack.c.l.b16 %v122
    %v459 = vunpack.c.h.b16 %v122
    %v460 = vunpack.c.l.b16 %v123
    %v461 = vunpack.c.h.b16 %v123
    %v462 = vunpack.c.l.b16 %v124
    %v463 = vunpack.c.h.b16 %v124
    %v464 = vunpack.c.l.b16 %v125
    %v465 = vunpack.c.h.b16 %v125
    %v466 = vunpack.c.l.b16 %v126
    %v467 = vunpack.c.h.b16 %v126
    %v468 = vunpack.c.l.b16 %v127
    %v469 = vunpack.c.h.b16 %v127
    %v470 = vunpack.c.l.b16 %v128
    %v471 = vunpack.c.h.b16 %v128
    %v472 = vunpack.c.l.b16 %v129
    %v473 = vunpack.c.h.b16 %v129
    %v474 = vunpack.c.l.b16 %v130
    %v475 = vunpack.c.h.b16 %v130
    %v476 = vunpack.c.l.b16 %v131
    %v477 = vunpack.c.h.b16 %v131
    %v478 = vunpack.c.l.b16 %v132
    %v479 = vunpack.c.h.b16 %v132
    %v480 = vunpack.c.l.b16 %v133
    %v481 = vunpack.c.h.b16 %v133
    %v482 = vunpack.c.l.b16 %v134
    %v483 = vunpack.c.h.b16 %v134
    %v484 = vunpack.c.l.b16 %v135
    %v485 = vunpack.c.h.b16 %v135
    %v486 = vunpack.c.l.b16 %v136
    %v487 = vunpack.c.h.b16 %v136
    %v488 = vunpack.c.l.b16 %v137
    %v489 = vunpack.c.h.b16 %v137
    %v490 = vunpack.c.l.b16 %v138
    %v491 = vunpack.c.h.b16 %v138
    %v492 = vunpack.c.l.b16 %v139
    %v493 = vunpack.c.h.b16 %v139
    %v494 = vunpack.c.l.b16 %v140
    %v495 = vunpack.c.h.b16 %v140
    %v496 = vunpack.c.l.b16 %v141
    %v497 = vunpack.c.h.b16 %v141
    %v498 = vunpack.c.l.b16 %v142
    %v499 = vunpack.c.h.b16 %v142
    %v500 = vunpack.c.l.b16 %v143
    %v501 = vunpack.c.h.b16 %v143
    %v502 = vunpack.c.l.b16 %v144
    %v503 = vunpack.c.h.b16 %v144
    %v504 = vunpack.c.l.b16 %v145
    %v505 = vunpack.c.h.b16 %v145
    %v506 = vunpack.c.l.b16 %v146
    %v507 = vunpack.c.h.b16 %v146
    %v508 = vunpack.c.l.b16 %v147
    %v509 = vunpack.c.h.b16 %v147
    %v510 = vunpack.c.l.b16 %v148
    %v511 = vunpack.c.h.b16 %v148
    %v512 = vunpack.c.l.b16 %v149
    %v513 = vunpack.c.h.b16 %v149
    %v514 = vpack.c.b16 %v454, %v450
    %v515 = vpack.c.b16 %v455, %v451
    %v516 = vpack.c.b16 %v456, %v452
    %v517 = vpack.c.b16 %v457, %v453
    %v518 = vpack.c.b16 %v462, %v458
    %v519 = vpack.c.b16 %v463, %v459
    %v520 = vpack.c.b16 %v464, %v460
    %v521 = vpack.c.b16 %v465, %v461
    %v522 = vpack.c.b16 %v470, %v466
    %v523 = vpack.c.b16 %v471, %v467
    %v524 = vpack.c.b16 %v472, %v468
    %v525 = vpack.c.b16 %v473, %v469
    %v526 = vpack.c.b16 %v478, %v474
    %v527 = vpack.c.b16 %v479, %v475
    %v528 = vpack.c.b16 %v480, %v476
    %v529 = vpack.c.b16 %v481, %v477
    %v530 = vpack.c.b16 %v486, %v482
    %v531 = vpack.c.b16 %v487, %v483
    %v532 = vpack.c.b16 %v488, %v484
    %v533 = vpack.c.b16 %v489, %v485
    %v534 = vpack.c.b16 %v494, %v490
    %v535 = vpack.c.b16 %v495, %v491
    %v536 = vpack.c.b16 %v496, %v492
    %v537 = vpack.c.b16 %v497, %v493
    %v538 = vpack.c.b16 %v502, %v498
    %v539 = vpack.c.b16 %v503, %v499
    %v540 = vpack.c.b16 %v504, %v500
    %v541 = vpack.c.b16 %v505, %v501
    %v542 = vpack.c.b16 %v510, %v506
    %v543 = vpack.c.b16 %v511, %v507
    %v544 = vpack.c.b16 %v512, %v508
    %v545 = vpack.c.b16 %v513, %v509
    %578 = vmatprep.subr.bf16.mxu0 %v543
    %579 = vmatpush1.bf16.msra.mxu0 %v542
    %580 = vmatprep.subr.bf16.mxu0 %v539
    %581 = vmatpush1.bf16.msra.mxu0 %v538
    %582 = vmatprep.subr.bf16.mxu0 %v535
    %583 = vmatpush1.bf16.msra.mxu0 %v534
    %584 = vmatprep.subr.bf16.mxu0 %v531
    %585 = vmatpush1.bf16.msra.mxu0 %v530
    %586 = vmatprep.subr.bf16.mxu0 %v527
    %587 = vmatpush1.bf16.msra.mxu0 %v526
    %588 = vmatprep.subr.bf16.mxu0 %v523
    %589 = vmatpush1.bf16.msra.mxu0 %v522
    %590 = vmatprep.subr.bf16.mxu0 %v519
    %591 = vmatpush1.bf16.msra.mxu0 %v518
    %592 = vmatprep.subr.bf16.mxu0 %v515
    %593 = vmatpush1.bf16.msra.mxu0 %v514
    %594 = vmatprep.subr.bf16.mxu0 0
    %595 = vmatpush2.bf16.msra.mxu0 0
    %596 = vmatprep.subr.bf16.mxu0 0
    %597 = vmatpush2.bf16.msra.mxu0 0
    %598 = vmatprep.subr.bf16.mxu0 0
    %599 = vmatpush2.bf16.msra.mxu0 0
    %600 = vmatprep.subr.bf16.mxu0 0
    %601 = vmatpush2.bf16.msra.mxu0 0
    %602 = vmatprep.subr.bf16.mxu0 0
    %603 = vmatpush2.bf16.msra.mxu0 0
    %604 = vmatprep.subr.bf16.mxu0 0
    %605 = vmatpush2.bf16.msra.mxu0 0
    %606 = vmatprep.subr.bf16.mxu0 0
    %607 = vmatpush2.bf16.msra.mxu0 0
    %608 = vmatprep.subr.bf16.mxu0 0
    %609 = vmatpush2.bf16.msra.mxu0 0
    %610 = vmatprep.mubr.bf16.mxu0 0
    %611 = vmatmul.mubr.bf16.gmra.mxu0 %v417
    %v612 = vpop.f32.mrf.mxu0
    %v613 = vadd.f32 0.0, %v612
    %v614 = vpop.f32.mrf.mxu0
    %v615 = vadd.f32 0.0, %v614
    %v616 = vpop.f32.mrf.mxu0
    %v617 = vpop.f32.mrf.mxu0
    %618 = vdwg.mxu0
    %619 = vmatprep.subr.bf16.mxu0 %v545
    %620 = vmatpush1.bf16.msra.mxu0 %v544
    %621 = vmatprep.subr.bf16.mxu0 %v541
    %622 = vmatpush1.bf16.msra.mxu0 %v540
    %623 = vmatprep.subr.bf16.mxu0 %v537
    %624 = vmatpush1.bf16.msra.mxu0 %v536
    %625 = vmatprep.subr.bf16.mxu0 %v533
    %626 = vmatpush1.bf16.msra.mxu0 %v532
    %627 = vmatprep.subr.bf16.mxu0 %v529
    %628 = vmatpush1.bf16.msra.mxu0 %v528
    %629 = vmatprep.subr.bf16.mxu0 %v525
    %630 = vmatpush1.bf16.msra.mxu0 %v524
    %631 = vmatprep.subr.bf16.mxu0 %v521
    %632 = vmatpush1.bf16.msra.mxu0 %v520
    %633 = vmatprep.subr.bf16.mxu0 %v517
    %634 = vmatpush1.bf16.msra.mxu0 %v516
    %635 = vmatprep.subr.bf16.mxu0 0
    %636 = vmatpush2.bf16.msra.mxu0 0
    %637 = vmatprep.subr.bf16.mxu0 0
    %638 = vmatpush2.bf16.msra.mxu0 0
    %639 = vmatprep.subr.bf16.mxu0 0
    %640 = vmatpush2.bf16.msra.mxu0 0
    %641 = vmatprep.subr.bf16.mxu0 0
    %642 = vmatpush2.bf16.msra.mxu0 0
    %643 = vmatprep.subr.bf16.mxu0 0
    %644 = vmatpush2.bf16.msra.mxu0 0
    %645 = vmatprep.subr.bf16.mxu0 0
    %646 = vmatpush2.bf16.msra.mxu0 0
    %647 = vmatprep.subr.bf16.mxu0 0
    %648 = vmatpush2.bf16.msra.mxu0 0
    %649 = vmatprep.subr.bf16.mxu0 0
    %650 = vmatpush2.bf16.msra.mxu0 0
    %651 = vmatprep.mubr.bf16.mxu0 0
    %652 = vmatmul.mubr.bf16.gmra.mxu0 %v417
    %v653 = vpop.f32.mrf.mxu0
    %v654 = vadd.f32 0.0, %v653
    %v655 = vpop.f32.mrf.mxu0
    %v656 = vadd.f32 0.0, %v655
    %v657 = vpop.f32.mrf.mxu0
    %v658 = vpop.f32.mrf.mxu0
    %659 = vdwg.mxu0
    %v660 = vadd.f32 %v370, %v613
    %v661 = vadd.f32 %v372, %v615
    %v662 = vadd.f32 %v411, %v654
    %v663 = vadd.f32 %v413, %v656
    %v664 = vmul.f32 %v660, 0.5
    %v665 = vtanh.pop %v664
    %v666 = vmul.f32 %v665, 0.5
    %v667 = vadd.f32 %v666, 0.5
    %v668 = vmul.f32 %v661, 0.5
    %v669 = vtanh.pop %v668
    %v670 = vmul.f32 %v669, 0.5
    %v671 = vadd.f32 %v670, 0.5
    %v672 = vtanh.pop %v662
    %v673 = vmul.f32 %v663, 0.5
    %v674 = vtanh.pop %v673
    %v675 = vmul.f32 %v674, 0.5
    %v676 = vadd.f32 %v675, 0.5
    %v677 = vmul.f32 %v671, %v173
    %v678 = vmul.f32 %v667, %v672
    %v679 = vadd.f32 %v677, %v678
    %v680 = vtanh.pop %v679
    %v681 = vmul.f32 %v676, %v680
    %s682 = scalar_lea.vmem [#allocation4], 4
    %v683 = vld [vmem:[%s682] sm:$0xf]
    %684 = vmatprep.subr.bf16.mxu0 %v300
    %685 = vmatpush1.bf16.msra.mxu0 %v299
    %686 = vmatprep.subr.bf16.mxu0 %v296
    %687 = vmatpush1.bf16.msra.mxu0 %v295
    %688 = vmatprep.subr.bf16.mxu0 %v292
    %689 = vmatpush1.bf16.msra.mxu0 %v291
    %690 = vmatprep.subr.bf16.mxu0 %v288
    %691 = vmatpush1.bf16.msra.mxu0 %v287
    %692 = vmatprep.subr.bf16.mxu0 %v284
    %693 = vmatpush1.bf16.msra.mxu0 %v283
    %694 = vmatprep.subr.bf16.mxu0 %v280
    %695 = vmatpush1.bf16.msra.mxu0 %v279
    %696 = vmatprep.subr.bf16.mxu0 %v276
    %697 = vmatpush1.bf16.msra.mxu0 %v275
    %698 = vmatprep.subr.bf16.mxu0 %v272
    %699 = vmatpush1.bf16.msra.mxu0 %v271
    %700 = vmatprep.subr.bf16.mxu0 0
    %701 = vmatpush2.bf16.msra.mxu0 0
    %702 = vmatprep.subr.bf16.mxu0 0
    %703 = vmatpush2.bf16.msra.mxu0 0
    %704 = vmatprep.subr.bf16.mxu0 0
    %705 = vmatpush2.bf16.msra.mxu0 0
    %706 = vmatprep.subr.bf16.mxu0 0
    %707 = vmatpush2.bf16.msra.mxu0 0
    %708 = vmatprep.subr.bf16.mxu0 0
    %709 = vmatpush2.bf16.msra.mxu0 0
    %710 = vmatprep.subr.bf16.mxu0 0
    %711 = vmatpush2.bf16.msra.mxu0 0
    %712 = vmatprep.subr.bf16.mxu0 0
    %713 = vmatpush2.bf16.msra.mxu0 0
    %714 = vmatprep.subr.bf16.mxu0 0
    %715 = vmatpush2.bf16.msra.mxu0 0
    %716 = vmatprep.mubr.bf16.mxu0 0
    %717 = vmatmul.mubr.bf16.gmra.mxu0 %v683
    %v718 = vpop.f32.mrf.mxu0
    %v719 = vadd.f32 %v155, %v718
    %v720 = vpop.f32.mrf.mxu0
    %v721 = vadd.f32 %v159, %v720
    %v722 = vpop.f32.mrf.mxu0
    %v723 = vpop.f32.mrf.mxu0
    %724 = vdwg.mxu0
    %725 = vmatprep.subr.bf16.mxu0 %v302
    %726 = vmatpush1.bf16.msra.mxu0 %v301
    %727 = vmatprep.subr.bf16.mxu0 %v298
    %728 = vmatpush1.bf16.msra.mxu0 %v297
    %729 = vmatprep.subr.bf16.mxu0 %v294
    %730 = vmatpush1.bf16.msra.mxu0 %v293
    %731 = vmatprep.subr.bf16.mxu0 %v290
    %732 = vmatpush1.bf16.msra.mxu0 %v289
    %733 = vmatprep.subr.bf16.mxu0 %v286
    %734 = vmatpush1.bf16.msra.mxu0 %v285
    %735 = vmatprep.subr.bf16.mxu0 %v282
    %736 = vmatpush1.bf16.msra.mxu0 %v281
    %737 = vmatprep.subr.bf16.mxu0 %v278
    %738 = vmatpush1.bf16.msra.mxu0 %v277
    %739 = vmatprep.subr.bf16.mxu0 %v274
    %740 = vmatpush1.bf16.msra.mxu0 %v273
    %741 = vmatprep.subr.bf16.mxu0 0
    %742 = vmatpush2.bf16.msra.mxu0 0
    %743 = vmatprep.subr.bf16.mxu0 0
    %744 = vmatpush2.bf16.msra.mxu0 0
    %745 = vmatprep.subr.bf16.mxu0 0
    %746 = vmatpush2.bf16.msra.mxu0 0
    %747 = vmatprep.subr.bf16.mxu0 0
    %748 = vmatpush2.bf16.msra.mxu0 0
    %749 = vmatprep.subr.bf16.mxu0 0
    %750 = vmatpush2.bf16.msra.mxu0 0
    %751 = vmatprep.subr.bf16.mxu0 0
    %752 = vmatpush2.bf16.msra.mxu0 0
    %753 = vmatprep.subr.bf16.mxu0 0
    %754 = vmatpush2.bf16.msra.mxu0 0
    %755 = vmatprep.subr.bf16.mxu0 0
    %756 = vmatpush2.bf16.msra.mxu0 0
    %757 = vmatprep.mubr.bf16.mxu0 0
    %758 = vmatmul.mubr.bf16.gmra.mxu0 %v683
    %v759 = vpop.f32.mrf.mxu0
    %v760 = vadd.f32 %v163, %v759
    %v761 = vpop.f32.mrf.mxu0
    %v762 = vadd.f32 %v167, %v761
    %v763 = vpop.f32.mrf.mxu0
    %v764 = vpop.f32.mrf.mxu0
    %765 = vdwg.mxu0
    %v766 = vpack.c.bf16 %v681, %v681
    %767 = vmatprep.subr.bf16.mxu0 %v543
    %768 = vmatpush1.bf16.msra.mxu0 %v542
    %769 = vmatprep.subr.bf16.mxu0 %v539
    %770 = vmatpush1.bf16.msra.mxu0 %v538
    %771 = vmatprep.subr.bf16.mxu0 %v535
    %772 = vmatpush1.bf16.msra.mxu0 %v534
    %773 = vmatprep.subr.bf16.mxu0 %v531
    %774 = vmatpush1.bf16.msra.mxu0 %v530
    %775 = vmatprep.subr.bf16.mxu0 %v527
    %776 = vmatpush1.bf16.msra.mxu0 %v526
    %777 = vmatprep.subr.bf16.mxu0 %v523
    %778 = vmatpush1.bf16.msra.mxu0 %v522
    %779 = vmatprep.subr.bf16.mxu0 %v519
    %780 = vmatpush1.bf16.msra.mxu0 %v518
    %781 = vmatprep.subr.bf16.mxu0 %v515
    %782 = vmatpush1.bf16.msra.mxu0 %v514
    %783 = vmatprep.subr.bf16.mxu0 0
    %784 = vmatpush2.bf16.msra.mxu0 0
    %785 = vmatprep.subr.bf16.mxu0 0
    %786 = vmatpush2.bf16.msra.mxu0 0
    %787 = vmatprep.subr.bf16.mxu0 0
    %788 = vmatpush2.bf16.msra.mxu0 0
    %789 = vmatprep.subr.bf16.mxu0 0
    %790 = vmatpush2.bf16.msra.mxu0 0
    %791 = vmatprep.subr.bf16.mxu0 0
    %792 = vmatpush2.bf16.msra.mxu0 0
    %793 = vmatprep.subr.bf16.mxu0 0
    %794 = vmatpush2.bf16.msra.mxu0 0
    %795 = vmatprep.subr.bf16.mxu0 0
    %796 = vmatpush2.bf16.msra.mxu0 0
    %797 = vmatprep.subr.bf16.mxu0 0
    %798 = vmatpush2.bf16.msra.mxu0 0
    %799 = vmatprep.mubr.bf16.mxu0 0
    %800 = vmatmul.mubr.bf16.gmra.mxu0 %v766
    %v801 = vpop.f32.mrf.mxu0
    %v802 = vadd.f32 0.0, %v801
    %v803 = vpop.f32.mrf.mxu0
    %v804 = vadd.f32 0.0, %v803
    %v805 = vpop.f32.mrf.mxu0
    %v806 = vpop.f32.mrf.mxu0
    %807 = vdwg.mxu0
    %808 = vmatprep.subr.bf16.mxu0 %v545
    %809 = vmatpush1.bf16.msra.mxu0 %v544
    %810 = vmatprep.subr.bf16.mxu0 %v541
    %811 = vmatpush1.bf16.msra.mxu0 %v540
    %812 = vmatprep.subr.bf16.mxu0 %v537
    %813 = vmatpush1.bf16.msra.mxu0 %v536
    %814 = vmatprep.subr.bf16.mxu0 %v533
    %815 = vmatpush1.bf16.msra.mxu0 %v532
    %816 = vmatprep.subr.bf16.mxu0 %v529
    %817 = vmatpush1.bf16.msra.mxu0 %v528
    %818 = vmatprep.subr.bf16.mxu0 %v525
    %819 = vmatpush1.bf16.msra.mxu0 %v524
    %820 = vmatprep.subr.bf16.mxu0 %v521
    %821 = vmatpush1.bf16.msra.mxu0 %v520
    %822 = vmatprep.subr.bf16.mxu0 %v517
    %823 = vmatpush1.bf16.msra.mxu0 %v516
    %824 = vmatprep.subr.bf16.mxu0 0
    %825 = vmatpush2.bf16.msra.mxu0 0
    %826 = vmatprep.subr.bf16.mxu0 0
    %827 = vmatpush2.bf16.msra.mxu0 0
    %828 = vmatprep.subr.bf16.mxu0 0
    %829 = vmatpush2.bf16.msra.mxu0 0
    %830 = vmatprep.subr.bf16.mxu0 0
    %831 = vmatpush2.bf16.msra.mxu0 0
    %832 = vmatprep.subr.bf16.mxu0 0
    %833 = vmatpush2.bf16.msra.mxu0 0
    %834 = vmatprep.subr.bf16.mxu0 0
    %835 = vmatpush2.bf16.msra.mxu0 0
    %836 = vmatprep.subr.bf16.mxu0 0
    %837 = vmatpush2.bf16.msra.mxu0 0
    %838 = vmatprep.subr.bf16.mxu0 0
    %839 = vmatpush2.bf16.msra.mxu0 0
    %840 = vmatprep.mubr.bf16.mxu0 0
    %841 = vmatmul.mubr.bf16.gmra.mxu0 %v766
    %v842 = vpop.f32.mrf.mxu0
    %v843 = vadd.f32 0.0, %v842
    %v844 = vpop.f32.mrf.mxu0
    %v845 = vadd.f32 0.0, %v844
    %v846 = vpop.f32.mrf.mxu0
    %v847 = vpop.f32.mrf.mxu0
    %848 = vdwg.mxu0
    %v849 = vadd.f32 %v719, %v802
    %v850 = vadd.f32 %v721, %v804
    %v851 = vadd.f32 %v760, %v843
    %v852 = vadd.f32 %v762, %v845
    %v853 = vmul.f32 %v849, 0.5
    %v854 = vtanh.pop %v853
    %v855 = vmul.f32 %v854, 0.5
    %v856 = vadd.f32 %v855, 0.5
    %v857 = vmul.f32 %v850, 0.5
    %v858 = vtanh.pop %v857
    %v859 = vmul.f32 %v858, 0.5
    %v860 = vadd.f32 %v859, 0.5
    %v861 = vtanh.pop %v851
    %v862 = vmul.f32 %v852, 0.5
    %v863 = vtanh.pop %v862
    %v864 = vmul.f32 %v863, 0.5
    %v865 = vadd.f32 %v864, 0.5
    %v866 = vmul.f32 %v860, %v679
    %v867 = vmul.f32 %v856, %v861
    %v868 = vadd.f32 %v866, %v867
    %v869 = vtanh.pop %v868
    %v870 = vmul.f32 %v865, %v869
    %s871 = scalar_lea.vmem [#allocation4], 8
    %v872 = vld [vmem:[%s871] sm:$0xf]
    %873 = vmatprep.subr.bf16.mxu0 %v300
    %874 = vmatpush1.bf16.msra.mxu0 %v299
    %875 = vmatprep.subr.bf16.mxu0 %v296
    %876 = vmatpush1.bf16.msra.mxu0 %v295
    %877 = vmatprep.subr.bf16.mxu0 %v292
    %878 = vmatpush1.bf16.msra.mxu0 %v291
    %879 = vmatprep.subr.bf16.mxu0 %v288
    %880 = vmatpush1.bf16.msra.mxu0 %v287
    %881 = vmatprep.subr.bf16.mxu0 %v284
    %882 = vmatpush1.bf16.msra.mxu0 %v283
    %883 = vmatprep.subr.bf16.mxu0 %v280
    %884 = vmatpush1.bf16.msra.mxu0 %v279
    %885 = vmatprep.subr.bf16.mxu0 %v276
    %886 = vmatpush1.bf16.msra.mxu0 %v275
    %887 = vmatprep.subr.bf16.mxu0 %v272
    %888 = vmatpush1.bf16.msra.mxu0 %v271
    %889 = vmatprep.subr.bf16.mxu0 0
    %890 = vmatpush2.bf16.msra.mxu0 0
    %891 = vmatprep.subr.bf16.mxu0 0
    %892 = vmatpush2.bf16.msra.mxu0 0
    %893 = vmatprep.subr.bf16.mxu0 0
    %894 = vmatpush2.bf16.msra.mxu0 0
    %895 = vmatprep.subr.bf16.mxu0 0
    %896 = vmatpush2.bf16.msra.mxu0 0
    %897 = vmatprep.subr.bf16.mxu0 0
    %898 = vmatpush2.bf16.msra.mxu0 0
    %899 = vmatprep.subr.bf16.mxu0 0
    %900 = vmatpush2.bf16.msra.mxu0 0
    %901 = vmatprep.subr.bf16.mxu0 0
    %902 = vmatpush2.bf16.msra.mxu0 0
    %903 = vmatprep.subr.bf16.mxu0 0
    %904 = vmatpush2.bf16.msra.mxu0 0
    %905 = vmatprep.mubr.bf16.mxu0 0
    %906 = vmatmul.mubr.bf16.gmra.mxu0 %v872
    %v907 = vpop.f32.mrf.mxu0
    %v908 = vadd.f32 %v155, %v907
    %v909 = vpop.f32.mrf.mxu0
    %v910 = vadd.f32 %v159, %v909
    %v911 = vpop.f32.mrf.mxu0
    %v912 = vpop.f32.mrf.mxu0
    %913 = vdwg.mxu0
    %914 = vmatprep.subr.bf16.mxu0 %v302
    %915 = vmatpush1.bf16.msra.mxu0 %v301
    %916 = vmatprep.subr.bf16.mxu0 %v298
    %917 = vmatpush1.bf16.msra.mxu0 %v297
    %918 = vmatprep.subr.bf16.mxu0 %v294
    %919 = vmatpush1.bf16.msra.mxu0 %v293
    %920 = vmatprep.subr.bf16.mxu0 %v290
    %921 = vmatpush1.bf16.msra.mxu0 %v289
    %922 = vmatprep.subr.bf16.mxu0 %v286
    %923 = vmatpush1.bf16.msra.mxu0 %v285
    %924 = vmatprep.subr.bf16.mxu0 %v282
    %925 = vmatpush1.bf16.msra.mxu0 %v281
    %926 = vmatprep.subr.bf16.mxu0 %v278
    %927 = vmatpush1.bf16.msra.mxu0 %v277
    %928 = vmatprep.subr.bf16.mxu0 %v274
    %929 = vmatpush1.bf16.msra.mxu0 %v273
    %930 = vmatprep.subr.bf16.mxu0 0
    %931 = vmatpush2.bf16.msra.mxu0 0
    %932 = vmatprep.subr.bf16.mxu0 0
    %933 = vmatpush2.bf16.msra.mxu0 0
    %934 = vmatprep.subr.bf16.mxu0 0
    %935 = vmatpush2.bf16.msra.mxu0 0
    %936 = vmatprep.subr.bf16.mxu0 0
    %937 = vmatpush2.bf16.msra.mxu0 0
    %938 = vmatprep.subr.bf16.mxu0 0
    %939 = vmatpush2.bf16.msra.mxu0 0
    %940 = vmatprep.subr.bf16.mxu0 0
    %941 = vmatpush2.bf16.msra.mxu0 0
    %942 = vmatprep.subr.bf16.mxu0 0
    %943 = vmatpush2.bf16.msra.mxu0 0
    %944 = vmatprep.subr.bf16.mxu0 0
    %945 = vmatpush2.bf16.msra.mxu0 0
    %946 = vmatprep.mubr.bf16.mxu0 0
    %947 = vmatmul.mubr.bf16.gmra.mxu0 %v872
    %v948 = vpop.f32.mrf.mxu0
    %v949 = vadd.f32 %v163, %v948
    %v950 = vpop.f32.mrf.mxu0
    %v951 = vadd.f32 %v167, %v950
    %v952 = vpop.f32.mrf.mxu0
    %v953 = vpop.f32.mrf.mxu0
    %954 = vdwg.mxu0
    %v955 = vpack.c.bf16 %v870, %v870
    %956 = vmatprep.subr.bf16.mxu0 %v543
    %957 = vmatpush1.bf16.msra.mxu0 %v542
    %958 = vmatprep.subr.bf16.mxu0 %v539
    %959 = vmatpush1.bf16.msra.mxu0 %v538
    %960 = vmatprep.subr.bf16.mxu0 %v535
    %961 = vmatpush1.bf16.msra.mxu0 %v534
    %962 = vmatprep.subr.bf16.mxu0 %v531
    %963 = vmatpush1.bf16.msra.mxu0 %v530
    %964 = vmatprep.subr.bf16.mxu0 %v527
    %965 = vmatpush1.bf16.msra.mxu0 %v526
    %966 = vmatprep.subr.bf16.mxu0 %v523
    %967 = vmatpush1.bf16.msra.mxu0 %v522
    %968 = vmatprep.subr.bf16.mxu0 %v519
    %969 = vmatpush1.bf16.msra.mxu0 %v518
    %970 = vmatprep.subr.bf16.mxu0 %v515
    %971 = vmatpush1.bf16.msra.mxu0 %v514
    %972 = vmatprep.subr.bf16.mxu0 0
    %973 = vmatpush2.bf16.msra.mxu0 0
    %974 = vmatprep.subr.bf16.mxu0 0
    %975 = vmatpush2.bf16.msra.mxu0 0
    %976 = vmatprep.subr.bf16.mxu0 0
    %977 = vmatpush2.bf16.msra.mxu0 0
    %978 = vmatprep.subr.bf16.mxu0 0
    %979 = vmatpush2.bf16.msra.mxu0 0
    %980 = vmatprep.subr.bf16.mxu0 0
    %981 = vmatpush2.bf16.msra.mxu0 0
    %982 = vmatprep.subr.bf16.mxu0 0
    %983 = vmatpush2.bf16.msra.mxu0 0
    %984 = vmatprep.subr.bf16.mxu0 0
    %985 = vmatpush2.bf16.msra.mxu0 0
    %986 = vmatprep.subr.bf16.mxu0 0
    %987 = vmatpush2.bf16.msra.mxu0 0
    %988 = vmatprep.mubr.bf16.mxu0 0
    %989 = vmatmul.mubr.bf16.gmra.mxu0 %v955
    %v990 = vpop.f32.mrf.mxu0
    %v991 = vadd.f32 0.0, %v990
    %v992 = vpop.f32.mrf.mxu0
    %v993 = vadd.f32 0.0, %v992
    %v994 = vpop.f32.mrf.mxu0
    %v995 = vpop.f32.mrf.mxu0
    %996 = vdwg.mxu0
    %997 = vmatprep.subr.bf16.mxu0 %v545
    %998 = vmatpush1.bf16.msra.mxu0 %v544
    %999 = vmatprep.subr.bf16.mxu0 %v541
    %1000 = vmatpush1.bf16.msra.mxu0 %v540
    %1001 = vmatprep.subr.bf16.mxu0 %v537
    %1002 = vmatpush1.bf16.msra.mxu0 %v536
    %1003 = vmatprep.subr.bf16.mxu0 %v533
    %1004 = vmatpush1.bf16.msra.mxu0 %v532
    %1005 = vmatprep.subr.bf16.mxu0 %v529
    %1006 = vmatpush1.bf16.msra.mxu0 %v528
    %1007 = vmatprep.subr.bf16.mxu0 %v525
    %1008 = vmatpush1.bf16.msra.mxu0 %v524
    %1009 = vmatprep.subr.bf16.mxu0 %v521
    %1010 = vmatpush1.bf16.msra.mxu0 %v520
    %1011 = vmatprep.subr.bf16.mxu0 %v517
    %1012 = vmatpush1.bf16.msra.mxu0 %v516
    %1013 = vmatprep.subr.bf16.mxu0 0
    %1014 = vmatpush2.bf16.msra.mxu0 0
    %1015 = vmatprep.subr.bf16.mxu0 0
    %1016 = vmatpush2.bf16.msra.mxu0 0
    %1017 = vmatprep.subr.bf16.mxu0 0
    %1018 = vmatpush2.bf16.msra.mxu0 0
    %1019 = vmatprep.subr.bf16.mxu0 0
    %1020 = vmatpush2.bf16.msra.mxu0 0
    %1021 = vmatprep.subr.bf16.mxu0 0
    %1022 = vmatpush2.bf16.msra.mxu0 0
    %1023 = vmatprep.subr.bf16.mxu0 0
    %1024 = vmatpush2.bf16.msra.mxu0 0
    %1025 = vmatprep.subr.bf16.mxu0 0
    %1026 = vmatpush2.bf16.msra.mxu0 0
    %1027 = vmatprep.subr.bf16.mxu0 0
    %1028 = vmatpush2.bf16.msra.mxu0 0
    %1029 = vmatprep.mubr.bf16.mxu0 0
    %1030 = vmatmul.mubr.bf16.gmra.mxu0 %v955
    %v1031 = vpop.f32.mrf.mxu0
    %v1032 = vadd.f32 0.0, %v1031
    %v1033 = vpop.f32.mrf.mxu0
    %v1034 = vadd.f32 0.0, %v1033
    %v1035 = vpop.f32.mrf.mxu0
    %v1036 = vpop.f32.mrf.mxu0
    %1037 = vdwg.mxu0
    %v1038 = vadd.f32 %v908, %v991
    %v1039 = vadd.f32 %v910, %v993
    %v1040 = vadd.f32 %v949, %v1032
    %v1041 = vadd.f32 %v951, %v1034
    %v1042 = vmul.f32 %v1038, 0.5
    %v1043 = vtanh.pop %v1042
    %v1044 = vmul.f32 %v1043, 0.5
    %v1045 = vadd.f32 %v1044, 0.5
    %v1046 = vmul.f32 %v1039, 0.5
    %v1047 = vtanh.pop %v1046
    %v1048 = vmul.f32 %v1047, 0.5
    %v1049 = vadd.f32 %v1048, 0.5
    %v1050 = vtanh.pop %v1040
    %v1051 = vmul.f32 %v1041, 0.5
    %v1052 = vtanh.pop %v1051
    %v1053 = vmul.f32 %v1052, 0.5
    %v1054 = vadd.f32 %v1053, 0.5
    %v1055 = vmul.f32 %v1049, %v868
    %v1056 = vmul.f32 %v1045, %v1050
    %v1057 = vadd.f32 %v1055, %v1056
    %v1058 = vtanh.pop %v1057
    %v1059 = vmul.f32 %v1054, %v1058
    %s1060 = scalar_lea.vmem [#allocation4], 12
    %v1061 = vld [vmem:[%s1060] sm:$0xf]
    %1062 = vmatprep.subr.bf16.mxu0 %v300
    %1063 = vmatpush1.bf16.msra.mxu0 %v299
    %1064 = vmatprep.subr.bf16.mxu0 %v296
    %1065 = vmatpush1.bf16.msra.mxu0 %v295
    %1066 = vmatprep.subr.bf16.mxu0 %v292
    %1067 = vmatpush1.bf16.msra.mxu0 %v291
    %1068 = vmatprep.subr.bf16.mxu0 %v288
    %1069 = vmatpush1.bf16.msra.mxu0 %v287
    %1070 = vmatprep.subr.bf16.mxu0 %v284
    %1071 = vmatpush1.bf16.msra.mxu0 %v283
    %1072 = vmatprep.subr.bf16.mxu0 %v280
    %1073 = vmatpush1.bf16.msra.mxu0 %v279
    %1074 = vmatprep.subr.bf16.mxu0 %v276
    %1075 = vmatpush1.bf16.msra.mxu0 %v275
    %1076 = vmatprep.subr.bf16.mxu0 %v272
    %1077 = vmatpush1.bf16.msra.mxu0 %v271
    %1078 = vmatprep.subr.bf16.mxu0 0
    %1079 = vmatpush2.bf16.msra.mxu0 0
    %1080 = vmatprep.subr.bf16.mxu0 0
    %1081 = vmatpush2.bf16.msra.mxu0 0
    %1082 = vmatprep.subr.bf16.mxu0 0
    %1083 = vmatpush2.bf16.msra.mxu0 0
    %1084 = vmatprep.subr.bf16.mxu0 0
    %1085 = vmatpush2.bf16.msra.mxu0 0
    %1086 = vmatprep.subr.bf16.mxu0 0
    %1087 = vmatpush2.bf16.msra.mxu0 0
    %1088 = vmatprep.subr.bf16.mxu0 0
    %1089 = vmatpush2.bf16.msra.mxu0 0
    %1090 = vmatprep.subr.bf16.mxu0 0
    %1091 = vmatpush2.bf16.msra.mxu0 0
    %1092 = vmatprep.subr.bf16.mxu0 0
    %1093 = vmatpush2.bf16.msra.mxu0 0
    %1094 = vmatprep.mubr.bf16.mxu0 0
    %1095 = vmatmul.mubr.bf16.gmra.mxu0 %v1061
    %v1096 = vpop.f32.mrf.mxu0
    %v1097 = vadd.f32 %v155, %v1096
    %v1098 = vpop.f32.mrf.mxu0
    %v1099 = vadd.f32 %v159, %v1098
    %v1100 = vpop.f32.mrf.mxu0
    %v1101 = vpop.f32.mrf.mxu0
    %1102 = vdwg.mxu0
    %1103 = vmatprep.subr.bf16.mxu0 %v302
    %1104 = vmatpush1.bf16.msra.mxu0 %v301
    %1105 = vmatprep.subr.bf16.mxu0 %v298
    %1106 = vmatpush1.bf16.msra.mxu0 %v297
    %1107 = vmatprep.subr.bf16.mxu0 %v294
    %1108 = vmatpush1.bf16.msra.mxu0 %v293
    %1109 = vmatprep.subr.bf16.mxu0 %v290
    %1110 = vmatpush1.bf16.msra.mxu0 %v289
    %1111 = vmatprep.subr.bf16.mxu0 %v286
    %1112 = vmatpush1.bf16.msra.mxu0 %v285
    %1113 = vmatprep.subr.bf16.mxu0 %v282
    %1114 = vmatpush1.bf16.msra.mxu0 %v281
    %1115 = vmatprep.subr.bf16.mxu0 %v278
    %1116 = vmatpush1.bf16.msra.mxu0 %v277
    %1117 = vmatprep.subr.bf16.mxu0 %v274
    %1118 = vmatpush1.bf16.msra.mxu0 %v273
    %1119 = vmatprep.subr.bf16.mxu0 0
    %1120 = vmatpush2.bf16.msra.mxu0 0
    %1121 = vmatprep.subr.bf16.mxu0 0
    %1122 = vmatpush2.bf16.msra.mxu0 0
    %1123 = vmatprep.subr.bf16.mxu0 0
    %1124 = vmatpush2.bf16.msra.mxu0 0
    %1125 = vmatprep.subr.bf16.mxu0 0
    %1126 = vmatpush2.bf16.msra.mxu0 0
    %1127 = vmatprep.subr.bf16.mxu0 0
    %1128 = vmatpush2.bf16.msra.mxu0 0
    %1129 = vmatprep.subr.bf16.mxu0 0
    %1130 = vmatpush2.bf16.msra.mxu0 0
    %1131 = vmatprep.subr.bf16.mxu0 0
    %1132 = vmatpush2.bf16.msra.mxu0 0
    %1133 = vmatprep.subr.bf16.mxu0 0
    %1134 = vmatpush2.bf16.msra.mxu0 0
    %1135 = vmatprep.mubr.bf16.mxu0 0
    %1136 = vmatmul.mubr.bf16.gmra.mxu0 %v1061
    %v1137 = vpop.f32.mrf.mxu0
    %v1138 = vadd.f32 %v163, %v1137
    %v1139 = vpop.f32.mrf.mxu0
    %v1140 = vadd.f32 %v167, %v1139
    %v1141 = vpop.f32.mrf.mxu0
    %v1142 = vpop.f32.mrf.mxu0
    %1143 = vdwg.mxu0
    %v1144 = vpack.c.bf16 %v1059, %v1059
    %1145 = vmatprep.subr.bf16.mxu0 %v543
    %1146 = vmatpush1.bf16.msra.mxu0 %v542
    %1147 = vmatprep.subr.bf16.mxu0 %v539
    %1148 = vmatpush1.bf16.msra.mxu0 %v538
    %1149 = vmatprep.subr.bf16.mxu0 %v535
    %1150 = vmatpush1.bf16.msra.mxu0 %v534
    %1151 = vmatprep.subr.bf16.mxu0 %v531
    %1152 = vmatpush1.bf16.msra.mxu0 %v530
    %1153 = vmatprep.subr.bf16.mxu0 %v527
    %1154 = vmatpush1.bf16.msra.mxu0 %v526
    %1155 = vmatprep.subr.bf16.mxu0 %v523
    %1156 = vmatpush1.bf16.msra.mxu0 %v522
    %1157 = vmatprep.subr.bf16.mxu0 %v519
    %1158 = vmatpush1.bf16.msra.mxu0 %v518
    %1159 = vmatprep.subr.bf16.mxu0 %v515
    %1160 = vmatpush1.bf16.msra.mxu0 %v514
    %1161 = vmatprep.subr.bf16.mxu0 0
    %1162 = vmatpush2.bf16.msra.mxu0 0
    %1163 = vmatprep.subr.bf16.mxu0 0
    %1164 = vmatpush2.bf16.msra.mxu0 0
    %1165 = vmatprep.subr.bf16.mxu0 0
    %1166 = vmatpush2.bf16.msra.mxu0 0
    %1167 = vmatprep.subr.bf16.mxu0 0
    %1168 = vmatpush2.bf16.msra.mxu0 0
    %1169 = vmatprep.subr.bf16.mxu0 0
    %1170 = vmatpush2.bf16.msra.mxu0 0
    %1171 = vmatprep.subr.bf16.mxu0 0
    %1172 = vmatpush2.bf16.msra.mxu0 0
    %1173 = vmatprep.subr.bf16.mxu0 0
    %1174 = vmatpush2.bf16.msra.mxu0 0
    %1175 = vmatprep.subr.bf16.mxu0 0
    %1176 = vmatpush2.bf16.msra.mxu0 0
    %1177 = vmatprep.mubr.bf16.mxu0 0
    %1178 = vmatmul.mubr.bf16.gmra.mxu0 %v1144
    %v1179 = vpop.f32.mrf.mxu0
    %v1180 = vadd.f32 0.0, %v1179
    %v1181 = vpop.f32.mrf.mxu0
    %v1182 = vadd.f32 0.0, %v1181
    %v1183 = vpop.f32.mrf.mxu0
    %v1184 = vpop.f32.mrf.mxu0
    %1185 = vdwg.mxu0
    %1186 = vmatprep.subr.bf16.mxu0 %v545
    %1187 = vmatpush1.bf16.msra.mxu0 %v544
    %1188 = vmatprep.subr.bf16.mxu0 %v541
    %1189 = vmatpush1.bf16.msra.mxu0 %v540
    %1190 = vmatprep.subr.bf16.mxu0 %v537
    %1191 = vmatpush1.bf16.msra.mxu0 %v536
    %1192 = vmatprep.subr.bf16.mxu0 %v533
    %1193 = vmatpush1.bf16.msra.mxu0 %v532
    %1194 = vmatprep.subr.bf16.mxu0 %v529
    %1195 = vmatpush1.bf16.msra.mxu0 %v528
    %1196 = vmatprep.subr.bf16.mxu0 %v525
    %1197 = vmatpush1.bf16.msra.mxu0 %v524
    %1198 = vmatprep.subr.bf16.mxu0 %v521
    %1199 = vmatpush1.bf16.msra.mxu0 %v520
    %1200 = vmatprep.subr.bf16.mxu0 %v517
    %1201 = vmatpush1.bf16.msra.mxu0 %v516
    %1202 = vmatprep.subr.bf16.mxu0 0
    %1203 = vmatpush2.bf16.msra.mxu0 0
    %1204 = vmatprep.subr.bf16.mxu0 0
    %1205 = vmatpush2.bf16.msra.mxu0 0
    %1206 = vmatprep.subr.bf16.mxu0 0
    %1207 = vmatpush2.bf16.msra.mxu0 0
    %1208 = vmatprep.subr.bf16.mxu0 0
    %1209 = vmatpush2.bf16.msra.mxu0 0
    %1210 = vmatprep.subr.bf16.mxu0 0
    %1211 = vmatpush2.bf16.msra.mxu0 0
    %1212 = vmatprep.subr.bf16.mxu0 0
    %1213 = vmatpush2.bf16.msra.mxu0 0
    %1214 = vmatprep.subr.bf16.mxu0 0
    %1215 = vmatpush2.bf16.msra.mxu0 0
    %1216 = vmatprep.subr.bf16.mxu0 0
    %1217 = vmatpush2.bf16.msra.mxu0 0
    %1218 = vmatprep.mubr.bf16.mxu0 0
    %1219 = vmatmul.mubr.bf16.gmra.mxu0 %v1144
    %v1220 = vpop.f32.mrf.mxu0
    %v1221 = vadd.f32 0.0, %v1220
    %v1222 = vpop.f32.mrf.mxu0
    %v1223 = vadd.f32 0.0, %v1222
    %v1224 = vpop.f32.mrf.mxu0
    %v1225 = vpop.f32.mrf.mxu0
    %1226 = vdwg.mxu0
    %v1227 = vadd.f32 %v1097, %v1180
    %v1228 = vadd.f32 %v1099, %v1182
    %v1229 = vadd.f32 %v1138, %v1221
    %v1230 = vadd.f32 %v1140, %v1223
    %v1231 = vmul.f32 %v1227, 0.5
    %v1232 = vtanh.pop %v1231
    %v1233 = vmul.f32 %v1232, 0.5
    %v1234 = vadd.f32 %v1233, 0.5
    %v1235 = vmul.f32 %v1228, 0.5
    %v1236 = vtanh.pop %v1235
    %v1237 = vmul.f32 %v1236, 0.5
    %v1238 = vadd.f32 %v1237, 0.5
    %v1239 = vtanh.pop %v1229
    %v1240 = vmul.f32 %v1230, 0.5
    %v1241 = vtanh.pop %v1240
    %v1242 = vmul.f32 %v1241, 0.5
    %v1243 = vadd.f32 %v1242, 0.5
    %v1244 = vmul.f32 %v1238, %v1057
    %v1245 = vmul.f32 %v1234, %v1239
    %v1246 = vadd.f32 %v1244, %v1245
    %v1247 = vtanh.pop %v1246
    %v1248 = vmul.f32 %v1243, %v1247
    %s1249 = scalar_lea.vmem [#allocation4], 16
    %v1250 = vld [vmem:[%s1249] sm:$0xf]
    %1251 = vmatprep.subr.bf16.mxu0 %v300
    %1252 = vmatpush1.bf16.msra.mxu0 %v299
    %1253 = vmatprep.subr.bf16.mxu0 %v296
    %1254 = vmatpush1.bf16.msra.mxu0 %v295
    %1255 = vmatprep.subr.bf16.mxu0 %v292
    %1256 = vmatpush1.bf16.msra.mxu0 %v291
    %1257 = vmatprep.subr.bf16.mxu0 %v288
    %1258 = vmatpush1.bf16.msra.mxu0 %v287
    %1259 = vmatprep.subr.bf16.mxu0 %v284
    %1260 = vmatpush1.bf16.msra.mxu0 %v283
    %1261 = vmatprep.subr.bf16.mxu0 %v280
    %1262 = vmatpush1.bf16.msra.mxu0 %v279
    %1263 = vmatprep.subr.bf16.mxu0 %v276
    %1264 = vmatpush1.bf16.msra.mxu0 %v275
    %1265 = vmatprep.subr.bf16.mxu0 %v272
    %1266 = vmatpush1.bf16.msra.mxu0 %v271
    %1267 = vmatprep.subr.bf16.mxu0 0
    %1268 = vmatpush2.bf16.msra.mxu0 0
    %1269 = vmatprep.subr.bf16.mxu0 0
    %1270 = vmatpush2.bf16.msra.mxu0 0
    %1271 = vmatprep.subr.bf16.mxu0 0
    %1272 = vmatpush2.bf16.msra.mxu0 0
    %1273 = vmatprep.subr.bf16.mxu0 0
    %1274 = vmatpush2.bf16.msra.mxu0 0
    %1275 = vmatprep.subr.bf16.mxu0 0
    %1276 = vmatpush2.bf16.msra.mxu0 0
    %1277 = vmatprep.subr.bf16.mxu0 0
    %1278 = vmatpush2.bf16.msra.mxu0 0
    %1279 = vmatprep.subr.bf16.mxu0 0
    %1280 = vmatpush2.bf16.msra.mxu0 0
    %1281 = vmatprep.subr.bf16.mxu0 0
    %1282 = vmatpush2.bf16.msra.mxu0 0
    %1283 = vmatprep.mubr.bf16.mxu0 0
    %1284 = vmatmul.mubr.bf16.gmra.mxu0 %v1250
    %v1285 = vpop.f32.mrf.mxu0
    %v1286 = vadd.f32 %v155, %v1285
    %v1287 = vpop.f32.mrf.mxu0
    %v1288 = vadd.f32 %v159, %v1287
    %v1289 = vpop.f32.mrf.mxu0
    %v1290 = vpop.f32.mrf.mxu0
    %1291 = vdwg.mxu0
    %1292 = vmatprep.subr.bf16.mxu0 %v302
    %1293 = vmatpush1.bf16.msra.mxu0 %v301
    %1294 = vmatprep.subr.bf16.mxu0 %v298
    %1295 = vmatpush1.bf16.msra.mxu0 %v297
    %1296 = vmatprep.subr.bf16.mxu0 %v294
    %1297 = vmatpush1.bf16.msra.mxu0 %v293
    %1298 = vmatprep.subr.bf16.mxu0 %v290
    %1299 = vmatpush1.bf16.msra.mxu0 %v289
    %1300 = vmatprep.subr.bf16.mxu0 %v286
    %1301 = vmatpush1.bf16.msra.mxu0 %v285
    %1302 = vmatprep.subr.bf16.mxu0 %v282
    %1303 = vmatpush1.bf16.msra.mxu0 %v281
    %1304 = vmatprep.subr.bf16.mxu0 %v278
    %1305 = vmatpush1.bf16.msra.mxu0 %v277
    %1306 = vmatprep.subr.bf16.mxu0 %v274
    %1307 = vmatpush1.bf16.msra.mxu0 %v273
    %1308 = vmatprep.subr.bf16.mxu0 0
    %1309 = vmatpush2.bf16.msra.mxu0 0
    %1310 = vmatprep.subr.bf16.mxu0 0
    %1311 = vmatpush2.bf16.msra.mxu0 0
    %1312 = vmatprep.subr.bf16.mxu0 0
    %1313 = vmatpush2.bf16.msra.mxu0 0
    %1314 = vmatprep.subr.bf16.mxu0 0
    %1315 = vmatpush2.bf16.msra.mxu0 0
    %1316 = vmatprep.subr.bf16.mxu0 0
    %1317 = vmatpush2.bf16.msra.mxu0 0
    %1318 = vmatprep.subr.bf16.mxu0 0
    %1319 = vmatpush2.bf16.msra.mxu0 0
    %1320 = vmatprep.subr.bf16.mxu0 0
    %1321 = vmatpush2.bf16.msra.mxu0 0
    %1322 = vmatprep.subr.bf16.mxu0 0
    %1323 = vmatpush2.bf16.msra.mxu0 0
    %1324 = vmatprep.mubr.bf16.mxu0 0
    %1325 = vmatmul.mubr.bf16.gmra.mxu0 %v1250
    %v1326 = vpop.f32.mrf.mxu0
    %v1327 = vadd.f32 %v163, %v1326
    %v1328 = vpop.f32.mrf.mxu0
    %v1329 = vadd.f32 %v167, %v1328
    %v1330 = vpop.f32.mrf.mxu0
    %v1331 = vpop.f32.mrf.mxu0
    %1332 = vdwg.mxu0
    %v1333 = vpack.c.bf16 %v1248, %v1248
    %1334 = vmatprep.subr.bf16.mxu0 %v543
    %1335 = vmatpush1.bf16.msra.mxu0 %v542
    %1336 = vmatprep.subr.bf16.mxu0 %v539
    %1337 = vmatpush1.bf16.msra.mxu0 %v538
    %1338 = vmatprep.subr.bf16.mxu0 %v535
    %1339 = vmatpush1.bf16.msra.mxu0 %v534
    %1340 = vmatprep.subr.bf16.mxu0 %v531
    %1341 = vmatpush1.bf16.msra.mxu0 %v530
    %1342 = vmatprep.subr.bf16.mxu0 %v527
    %1343 = vmatpush1.bf16.msra.mxu0 %v526
    %1344 = vmatprep.subr.bf16.mxu0 %v523
    %1345 = vmatpush1.bf16.msra.mxu0 %v522
    %1346 = vmatprep.subr.bf16.mxu0 %v519
    %1347 = vmatpush1.bf16.msra.mxu0 %v518
    %1348 = vmatprep.subr.bf16.mxu0 %v515
    %1349 = vmatpush1.bf16.msra.mxu0 %v514
    %1350 = vmatprep.subr.bf16.mxu0 0
    %1351 = vmatpush2.bf16.msra.mxu0 0
    %1352 = vmatprep.subr.bf16.mxu0 0
    %1353 = vmatpush2.bf16.msra.mxu0 0
    %1354 = vmatprep.subr.bf16.mxu0 0
    %1355 = vmatpush2.bf16.msra.mxu0 0
    %1356 = vmatprep.subr.bf16.mxu0 0
    %1357 = vmatpush2.bf16.msra.mxu0 0
    %1358 = vmatprep.subr.bf16.mxu0 0
    %1359 = vmatpush2.bf16.msra.mxu0 0
    %1360 = vmatprep.subr.bf16.mxu0 0
    %1361 = vmatpush2.bf16.msra.mxu0 0
    %1362 = vmatprep.subr.bf16.mxu0 0
    %1363 = vmatpush2.bf16.msra.mxu0 0
    %1364 = vmatprep.subr.bf16.mxu0 0
    %1365 = vmatpush2.bf16.msra.mxu0 0
    %1366 = vmatprep.mubr.bf16.mxu0 0
    %1367 = vmatmul.mubr.bf16.gmra.mxu0 %v1333
    %v1368 = vpop.f32.mrf.mxu0
    %v1369 = vadd.f32 0.0, %v1368
    %v1370 = vpop.f32.mrf.mxu0
    %v1371 = vadd.f32 0.0, %v1370
    %v1372 = vpop.f32.mrf.mxu0
    %v1373 = vpop.f32.mrf.mxu0
    %1374 = vdwg.mxu0
    %1375 = vmatprep.subr.bf16.mxu0 %v545
    %1376 = vmatpush1.bf16.msra.mxu0 %v544
    %1377 = vmatprep.subr.bf16.mxu0 %v541
    %1378 = vmatpush1.bf16.msra.mxu0 %v540
    %1379 = vmatprep.subr.bf16.mxu0 %v537
    %1380 = vmatpush1.bf16.msra.mxu0 %v536
    %1381 = vmatprep.subr.bf16.mxu0 %v533
    %1382 = vmatpush1.bf16.msra.mxu0 %v532
    %1383 = vmatprep.subr.bf16.mxu0 %v529
    %1384 = vmatpush1.bf16.msra.mxu0 %v528
    %1385 = vmatprep.subr.bf16.mxu0 %v525
    %1386 = vmatpush1.bf16.msra.mxu0 %v524
    %1387 = vmatprep.subr.bf16.mxu0 %v521
    %1388 = vmatpush1.bf16.msra.mxu0 %v520
    %1389 = vmatprep.subr.bf16.mxu0 %v517
    %1390 = vmatpush1.bf16.msra.mxu0 %v516
    %1391 = vmatprep.subr.bf16.mxu0 0
    %1392 = vmatpush2.bf16.msra.mxu0 0
    %1393 = vmatprep.subr.bf16.mxu0 0
    %1394 = vmatpush2.bf16.msra.mxu0 0
    %1395 = vmatprep.subr.bf16.mxu0 0
    %1396 = vmatpush2.bf16.msra.mxu0 0
    %1397 = vmatprep.subr.bf16.mxu0 0
    %1398 = vmatpush2.bf16.msra.mxu0 0
    %1399 = vmatprep.subr.bf16.mxu0 0
    %1400 = vmatpush2.bf16.msra.mxu0 0
    %1401 = vmatprep.subr.bf16.mxu0 0
    %1402 = vmatpush2.bf16.msra.mxu0 0
    %1403 = vmatprep.subr.bf16.mxu0 0
    %1404 = vmatpush2.bf16.msra.mxu0 0
    %1405 = vmatprep.subr.bf16.mxu0 0
    %1406 = vmatpush2.bf16.msra.mxu0 0
    %1407 = vmatprep.mubr.bf16.mxu0 0
    %1408 = vmatmul.mubr.bf16.gmra.mxu0 %v1333
    %v1409 = vpop.f32.mrf.mxu0
    %v1410 = vadd.f32 0.0, %v1409
    %v1411 = vpop.f32.mrf.mxu0
    %v1412 = vadd.f32 0.0, %v1411
    %v1413 = vpop.f32.mrf.mxu0
    %v1414 = vpop.f32.mrf.mxu0
    %1415 = vdwg.mxu0
    %v1416 = vadd.f32 %v1286, %v1369
    %v1417 = vadd.f32 %v1288, %v1371
    %v1418 = vadd.f32 %v1327, %v1410
    %v1419 = vadd.f32 %v1329, %v1412
    %v1420 = vmul.f32 %v1416, 0.5
    %v1421 = vtanh.pop %v1420
    %v1422 = vmul.f32 %v1421, 0.5
    %v1423 = vadd.f32 %v1422, 0.5
    %v1424 = vmul.f32 %v1417, 0.5
    %v1425 = vtanh.pop %v1424
    %v1426 = vmul.f32 %v1425, 0.5
    %v1427 = vadd.f32 %v1426, 0.5
    %v1428 = vtanh.pop %v1418
    %v1429 = vmul.f32 %v1419, 0.5
    %v1430 = vtanh.pop %v1429
    %v1431 = vmul.f32 %v1430, 0.5
    %v1432 = vadd.f32 %v1431, 0.5
    %v1433 = vmul.f32 %v1427, %v1246
    %v1434 = vmul.f32 %v1423, %v1428
    %v1435 = vadd.f32 %v1433, %v1434
    %v1436 = vtanh.pop %v1435
    %v1437 = vmul.f32 %v1432, %v1436
    %s1438 = scalar_lea.vmem [#allocation4], 20
    %v1439 = vld [vmem:[%s1438] sm:$0xf]
    %1440 = vmatprep.subr.bf16.mxu0 %v300
    %1441 = vmatpush1.bf16.msra.mxu0 %v299
    %1442 = vmatprep.subr.bf16.mxu0 %v296
    %1443 = vmatpush1.bf16.msra.mxu0 %v295
    %1444 = vmatprep.subr.bf16.mxu0 %v292
    %1445 = vmatpush1.bf16.msra.mxu0 %v291
    %1446 = vmatprep.subr.bf16.mxu0 %v288
    %1447 = vmatpush1.bf16.msra.mxu0 %v287
    %1448 = vmatprep.subr.bf16.mxu0 %v284
    %1449 = vmatpush1.bf16.msra.mxu0 %v283
    %1450 = vmatprep.subr.bf16.mxu0 %v280
    %1451 = vmatpush1.bf16.msra.mxu0 %v279
    %1452 = vmatprep.subr.bf16.mxu0 %v276
    %1453 = vmatpush1.bf16.msra.mxu0 %v275
    %1454 = vmatprep.subr.bf16.mxu0 %v272
    %1455 = vmatpush1.bf16.msra.mxu0 %v271
    %1456 = vmatprep.subr.bf16.mxu0 0
    %1457 = vmatpush2.bf16.msra.mxu0 0
    %1458 = vmatprep.subr.bf16.mxu0 0
    %1459 = vmatpush2.bf16.msra.mxu0 0
    %1460 = vmatprep.subr.bf16.mxu0 0
    %1461 = vmatpush2.bf16.msra.mxu0 0
    %1462 = vmatprep.subr.bf16.mxu0 0
    %1463 = vmatpush2.bf16.msra.mxu0 0
    %1464 = vmatprep.subr.bf16.mxu0 0
    %1465 = vmatpush2.bf16.msra.mxu0 0
    %1466 = vmatprep.subr.bf16.mxu0 0
    %1467 = vmatpush2.bf16.msra.mxu0 0
    %1468 = vmatprep.subr.bf16.mxu0 0
    %1469 = vmatpush2.bf16.msra.mxu0 0
    %1470 = vmatprep.subr.bf16.mxu0 0
    %1471 = vmatpush2.bf16.msra.mxu0 0
    %1472 = vmatprep.mubr.bf16.mxu0 0
    %1473 = vmatmul.mubr.bf16.gmra.mxu0 %v1439
    %v1474 = vpop.f32.mrf.mxu0
    %v1475 = vadd.f32 %v155, %v1474
    %v1476 = vpop.f32.mrf.mxu0
    %v1477 = vadd.f32 %v159, %v1476
    %v1478 = vpop.f32.mrf.mxu0
    %v1479 = vpop.f32.mrf.mxu0
    %1480 = vdwg.mxu0
    %1481 = vmatprep.subr.bf16.mxu0 %v302
    %1482 = vmatpush1.bf16.msra.mxu0 %v301
    %1483 = vmatprep.subr.bf16.mxu0 %v298
    %1484 = vmatpush1.bf16.msra.mxu0 %v297
    %1485 = vmatprep.subr.bf16.mxu0 %v294
    %1486 = vmatpush1.bf16.msra.mxu0 %v293
    %1487 = vmatprep.subr.bf16.mxu0 %v290
    %1488 = vmatpush1.bf16.msra.mxu0 %v289
    %1489 = vmatprep.subr.bf16.mxu0 %v286
    %1490 = vmatpush1.bf16.msra.mxu0 %v285
    %1491 = vmatprep.subr.bf16.mxu0 %v282
    %1492 = vmatpush1.bf16.msra.mxu0 %v281
    %1493 = vmatprep.subr.bf16.mxu0 %v278
    %1494 = vmatpush1.bf16.msra.mxu0 %v277
    %1495 = vmatprep.subr.bf16.mxu0 %v274
    %1496 = vmatpush1.bf16.msra.mxu0 %v273
    %1497 = vmatprep.subr.bf16.mxu0 0
    %1498 = vmatpush2.bf16.msra.mxu0 0
    %1499 = vmatprep.subr.bf16.mxu0 0
    %1500 = vmatpush2.bf16.msra.mxu0 0
    %1501 = vmatprep.subr.bf16.mxu0 0
    %1502 = vmatpush2.bf16.msra.mxu0 0
    %1503 = vmatprep.subr.bf16.mxu0 0
    %1504 = vmatpush2.bf16.msra.mxu0 0
    %1505 = vmatprep.subr.bf16.mxu0 0
    %1506 = vmatpush2.bf16.msra.mxu0 0
    %1507 = vmatprep.subr.bf16.mxu0 0
    %1508 = vmatpush2.bf16.msra.mxu0 0
    %1509 = vmatprep.subr.bf16.mxu0 0
    %1510 = vmatpush2.bf16.msra.mxu0 0
    %1511 = vmatprep.subr.bf16.mxu0 0
    %1512 = vmatpush2.bf16.msra.mxu0 0
    %1513 = vmatprep.mubr.bf16.mxu0 0
    %1514 = vmatmul.mubr.bf16.gmra.mxu0 %v1439
    %v1515 = vpop.f32.mrf.mxu0
    %v1516 = vadd.f32 %v163, %v1515
    %v1517 = vpop.f32.mrf.mxu0
    %v1518 = vadd.f32 %v167, %v1517
    %v1519 = vpop.f32.mrf.mxu0
    %v1520 = vpop.f32.mrf.mxu0
    %1521 = vdwg.mxu0
    %v1522 = vpack.c.bf16 %v1437, %v1437
    %1523 = vmatprep.subr.bf16.mxu0 %v543
    %1524 = vmatpush1.bf16.msra.mxu0 %v542
    %1525 = vmatprep.subr.bf16.mxu0 %v539
    %1526 = vmatpush1.bf16.msra.mxu0 %v538
    %1527 = vmatprep.subr.bf16.mxu0 %v535
    %1528 = vmatpush1.bf16.msra.mxu0 %v534
    %1529 = vmatprep.subr.bf16.mxu0 %v531
    %1530 = vmatpush1.bf16.msra.mxu0 %v530
    %1531 = vmatprep.subr.bf16.mxu0 %v527
    %1532 = vmatpush1.bf16.msra.mxu0 %v526
    %1533 = vmatprep.subr.bf16.mxu0 %v523
    %1534 = vmatpush1.bf16.msra.mxu0 %v522
    %1535 = vmatprep.subr.bf16.mxu0 %v519
    %1536 = vmatpush1.bf16.msra.mxu0 %v518
    %1537 = vmatprep.subr.bf16.mxu0 %v515
    %1538 = vmatpush1.bf16.msra.mxu0 %v514
    %1539 = vmatprep.subr.bf16.mxu0 0
    %1540 = vmatpush2.bf16.msra.mxu0 0
    %1541 = vmatprep.subr.bf16.mxu0 0
    %1542 = vmatpush2.bf16.msra.mxu0 0
    %1543 = vmatprep.subr.bf16.mxu0 0
    %1544 = vmatpush2.bf16.msra.mxu0 0
    %1545 = vmatprep.subr.bf16.mxu0 0
    %1546 = vmatpush2.bf16.msra.mxu0 0
    %1547 = vmatprep.subr.bf16.mxu0 0
    %1548 = vmatpush2.bf16.msra.mxu0 0
    %1549 = vmatprep.subr.bf16.mxu0 0
    %1550 = vmatpush2.bf16.msra.mxu0 0
    %1551 = vmatprep.subr.bf16.mxu0 0
    %1552 = vmatpush2.bf16.msra.mxu0 0
    %1553 = vmatprep.subr.bf16.mxu0 0
    %1554 = vmatpush2.bf16.msra.mxu0 0
    %1555 = vmatprep.mubr.bf16.mxu0 0
    %1556 = vmatmul.mubr.bf16.gmra.mxu0 %v1522
    %v1557 = vpop.f32.mrf.mxu0
    %v1558 = vadd.f32 0.0, %v1557
    %v1559 = vpop.f32.mrf.mxu0
    %v1560 = vadd.f32 0.0, %v1559
    %v1561 = vpop.f32.mrf.mxu0
    %v1562 = vpop.f32.mrf.mxu0
    %1563 = vdwg.mxu0
    %1564 = vmatprep.subr.bf16.mxu0 %v545
    %1565 = vmatpush1.bf16.msra.mxu0 %v544
    %1566 = vmatprep.subr.bf16.mxu0 %v541
    %1567 = vmatpush1.bf16.msra.mxu0 %v540
    %1568 = vmatprep.subr.bf16.mxu0 %v537
    %1569 = vmatpush1.bf16.msra.mxu0 %v536
    %1570 = vmatprep.subr.bf16.mxu0 %v533
    %1571 = vmatpush1.bf16.msra.mxu0 %v532
    %1572 = vmatprep.subr.bf16.mxu0 %v529
    %1573 = vmatpush1.bf16.msra.mxu0 %v528
    %1574 = vmatprep.subr.bf16.mxu0 %v525
    %1575 = vmatpush1.bf16.msra.mxu0 %v524
    %1576 = vmatprep.subr.bf16.mxu0 %v521
    %1577 = vmatpush1.bf16.msra.mxu0 %v520
    %1578 = vmatprep.subr.bf16.mxu0 %v517
    %1579 = vmatpush1.bf16.msra.mxu0 %v516
    %1580 = vmatprep.subr.bf16.mxu0 0
    %1581 = vmatpush2.bf16.msra.mxu0 0
    %1582 = vmatprep.subr.bf16.mxu0 0
    %1583 = vmatpush2.bf16.msra.mxu0 0
    %1584 = vmatprep.subr.bf16.mxu0 0
    %1585 = vmatpush2.bf16.msra.mxu0 0
    %1586 = vmatprep.subr.bf16.mxu0 0
    %1587 = vmatpush2.bf16.msra.mxu0 0
    %1588 = vmatprep.subr.bf16.mxu0 0
    %1589 = vmatpush2.bf16.msra.mxu0 0
    %1590 = vmatprep.subr.bf16.mxu0 0
    %1591 = vmatpush2.bf16.msra.mxu0 0
    %1592 = vmatprep.subr.bf16.mxu0 0
    %1593 = vmatpush2.bf16.msra.mxu0 0
    %1594 = vmatprep.subr.bf16.mxu0 0
    %1595 = vmatpush2.bf16.msra.mxu0 0
    %1596 = vmatprep.mubr.bf16.mxu0 0
    %1597 = vmatmul.mubr.bf16.gmra.mxu0 %v1522
    %v1598 = vpop.f32.mrf.mxu0
    %v1599 = vadd.f32 0.0, %v1598
    %v1600 = vpop.f32.mrf.mxu0
    %v1601 = vadd.f32 0.0, %v1600
    %v1602 = vpop.f32.mrf.mxu0
    %v1603 = vpop.f32.mrf.mxu0
    %1604 = vdwg.mxu0
    %v1605 = vadd.f32 %v1475, %v1558
    %v1606 = vadd.f32 %v1477, %v1560
    %v1607 = vadd.f32 %v1516, %v1599
    %v1608 = vadd.f32 %v1518, %v1601
    %v1609 = vmul.f32 %v1605, 0.5
    %v1610 = vtanh.pop %v1609
    %v1611 = vmul.f32 %v1610, 0.5
    %v1612 = vadd.f32 %v1611, 0.5
    %v1613 = vmul.f32 %v1606, 0.5
    %v1614 = vtanh.pop %v1613
    %v1615 = vmul.f32 %v1614, 0.5
    %v1616 = vadd.f32 %v1615, 0.5
    %v1617 = vtanh.pop %v1607
    %v1618 = vmul.f32 %v1608, 0.5
    %v1619 = vtanh.pop %v1618
    %v1620 = vmul.f32 %v1619, 0.5
    %v1621 = vadd.f32 %v1620, 0.5
    %v1622 = vmul.f32 %v1616, %v1435
    %v1623 = vmul.f32 %v1612, %v1617
    %v1624 = vadd.f32 %v1622, %v1623
    %v1625 = vtanh.pop %v1624
    %v1626 = vmul.f32 %v1621, %v1625
    %s1627 = scalar_lea.vmem [#allocation4], 24
    %v1628 = vld [vmem:[%s1627] sm:$0xf]
    %1629 = vmatprep.subr.bf16.mxu0 %v300
    %1630 = vmatpush1.bf16.msra.mxu0 %v299
    %1631 = vmatprep.subr.bf16.mxu0 %v296
    %1632 = vmatpush1.bf16.msra.mxu0 %v295
    %1633 = vmatprep.subr.bf16.mxu0 %v292
    %1634 = vmatpush1.bf16.msra.mxu0 %v291
    %1635 = vmatprep.subr.bf16.mxu0 %v288
    %1636 = vmatpush1.bf16.msra.mxu0 %v287
    %1637 = vmatprep.subr.bf16.mxu0 %v284
    %1638 = vmatpush1.bf16.msra.mxu0 %v283
    %1639 = vmatprep.subr.bf16.mxu0 %v280
    %1640 = vmatpush1.bf16.msra.mxu0 %v279
    %1641 = vmatprep.subr.bf16.mxu0 %v276
    %1642 = vmatpush1.bf16.msra.mxu0 %v275
    %1643 = vmatprep.subr.bf16.mxu0 %v272
    %1644 = vmatpush1.bf16.msra.mxu0 %v271
    %1645 = vmatprep.subr.bf16.mxu0 0
    %1646 = vmatpush2.bf16.msra.mxu0 0
    %1647 = vmatprep.subr.bf16.mxu0 0
    %1648 = vmatpush2.bf16.msra.mxu0 0
    %1649 = vmatprep.subr.bf16.mxu0 0
    %1650 = vmatpush2.bf16.msra.mxu0 0
    %1651 = vmatprep.subr.bf16.mxu0 0
    %1652 = vmatpush2.bf16.msra.mxu0 0
    %1653 = vmatprep.subr.bf16.mxu0 0
    %1654 = vmatpush2.bf16.msra.mxu0 0
    %1655 = vmatprep.subr.bf16.mxu0 0
    %1656 = vmatpush2.bf16.msra.mxu0 0
    %1657 = vmatprep.subr.bf16.mxu0 0
    %1658 = vmatpush2.bf16.msra.mxu0 0
    %1659 = vmatprep.subr.bf16.mxu0 0
    %1660 = vmatpush2.bf16.msra.mxu0 0
    %1661 = vmatprep.mubr.bf16.mxu0 0
    %1662 = vmatmul.mubr.bf16.gmra.mxu0 %v1628
    %v1663 = vpop.f32.mrf.mxu0
    %v1664 = vadd.f32 %v155, %v1663
    %v1665 = vpop.f32.mrf.mxu0
    %v1666 = vadd.f32 %v159, %v1665
    %v1667 = vpop.f32.mrf.mxu0
    %v1668 = vpop.f32.mrf.mxu0
    %1669 = vdwg.mxu0
    %1670 = vmatprep.subr.bf16.mxu0 %v302
    %1671 = vmatpush1.bf16.msra.mxu0 %v301
    %1672 = vmatprep.subr.bf16.mxu0 %v298
    %1673 = vmatpush1.bf16.msra.mxu0 %v297
    %1674 = vmatprep.subr.bf16.mxu0 %v294
    %1675 = vmatpush1.bf16.msra.mxu0 %v293
    %1676 = vmatprep.subr.bf16.mxu0 %v290
    %1677 = vmatpush1.bf16.msra.mxu0 %v289
    %1678 = vmatprep.subr.bf16.mxu0 %v286
    %1679 = vmatpush1.bf16.msra.mxu0 %v285
    %1680 = vmatprep.subr.bf16.mxu0 %v282
    %1681 = vmatpush1.bf16.msra.mxu0 %v281
    %1682 = vmatprep.subr.bf16.mxu0 %v278
    %1683 = vmatpush1.bf16.msra.mxu0 %v277
    %1684 = vmatprep.subr.bf16.mxu0 %v274
    %1685 = vmatpush1.bf16.msra.mxu0 %v273
    %1686 = vmatprep.subr.bf16.mxu0 0
    %1687 = vmatpush2.bf16.msra.mxu0 0
    %1688 = vmatprep.subr.bf16.mxu0 0
    %1689 = vmatpush2.bf16.msra.mxu0 0
    %1690 = vmatprep.subr.bf16.mxu0 0
    %1691 = vmatpush2.bf16.msra.mxu0 0
    %1692 = vmatprep.subr.bf16.mxu0 0
    %1693 = vmatpush2.bf16.msra.mxu0 0
    %1694 = vmatprep.subr.bf16.mxu0 0
    %1695 = vmatpush2.bf16.msra.mxu0 0
    %1696 = vmatprep.subr.bf16.mxu0 0
    %1697 = vmatpush2.bf16.msra.mxu0 0
    %1698 = vmatprep.subr.bf16.mxu0 0
    %1699 = vmatpush2.bf16.msra.mxu0 0
    %1700 = vmatprep.subr.bf16.mxu0 0
    %1701 = vmatpush2.bf16.msra.mxu0 0
    %1702 = vmatprep.mubr.bf16.mxu0 0
    %1703 = vmatmul.mubr.bf16.gmra.mxu0 %v1628
    %v1704 = vpop.f32.mrf.mxu0
    %v1705 = vadd.f32 %v163, %v1704
    %v1706 = vpop.f32.mrf.mxu0
    %v1707 = vadd.f32 %v167, %v1706
    %v1708 = vpop.f32.mrf.mxu0
    %v1709 = vpop.f32.mrf.mxu0
    %1710 = vdwg.mxu0
    %v1711 = vpack.c.bf16 %v1626, %v1626
    %1712 = vmatprep.subr.bf16.mxu0 %v543
    %1713 = vmatpush1.bf16.msra.mxu0 %v542
    %1714 = vmatprep.subr.bf16.mxu0 %v539
    %1715 = vmatpush1.bf16.msra.mxu0 %v538
    %1716 = vmatprep.subr.bf16.mxu0 %v535
    %1717 = vmatpush1.bf16.msra.mxu0 %v534
    %1718 = vmatprep.subr.bf16.mxu0 %v531
    %1719 = vmatpush1.bf16.msra.mxu0 %v530
    %1720 = vmatprep.subr.bf16.mxu0 %v527
    %1721 = vmatpush1.bf16.msra.mxu0 %v526
    %1722 = vmatprep.subr.bf16.mxu0 %v523
    %1723 = vmatpush1.bf16.msra.mxu0 %v522
    %1724 = vmatprep.subr.bf16.mxu0 %v519
    %1725 = vmatpush1.bf16.msra.mxu0 %v518
    %1726 = vmatprep.subr.bf16.mxu0 %v515
    %1727 = vmatpush1.bf16.msra.mxu0 %v514
    %1728 = vmatprep.subr.bf16.mxu0 0
    %1729 = vmatpush2.bf16.msra.mxu0 0
    %1730 = vmatprep.subr.bf16.mxu0 0
    %1731 = vmatpush2.bf16.msra.mxu0 0
    %1732 = vmatprep.subr.bf16.mxu0 0
    %1733 = vmatpush2.bf16.msra.mxu0 0
    %1734 = vmatprep.subr.bf16.mxu0 0
    %1735 = vmatpush2.bf16.msra.mxu0 0
    %1736 = vmatprep.subr.bf16.mxu0 0
    %1737 = vmatpush2.bf16.msra.mxu0 0
    %1738 = vmatprep.subr.bf16.mxu0 0
    %1739 = vmatpush2.bf16.msra.mxu0 0
    %1740 = vmatprep.subr.bf16.mxu0 0
    %1741 = vmatpush2.bf16.msra.mxu0 0
    %1742 = vmatprep.subr.bf16.mxu0 0
    %1743 = vmatpush2.bf16.msra.mxu0 0
    %1744 = vmatprep.mubr.bf16.mxu0 0
    %1745 = vmatmul.mubr.bf16.gmra.mxu0 %v1711
    %v1746 = vpop.f32.mrf.mxu0
    %v1747 = vadd.f32 0.0, %v1746
    %v1748 = vpop.f32.mrf.mxu0
    %v1749 = vadd.f32 0.0, %v1748
    %v1750 = vpop.f32.mrf.mxu0
    %v1751 = vpop.f32.mrf.mxu0
    %1752 = vdwg.mxu0
    %1753 = vmatprep.subr.bf16.mxu0 %v545
    %1754 = vmatpush1.bf16.msra.mxu0 %v544
    %1755 = vmatprep.subr.bf16.mxu0 %v541
    %1756 = vmatpush1.bf16.msra.mxu0 %v540
    %1757 = vmatprep.subr.bf16.mxu0 %v537
    %1758 = vmatpush1.bf16.msra.mxu0 %v536
    %1759 = vmatprep.subr.bf16.mxu0 %v533
    %1760 = vmatpush1.bf16.msra.mxu0 %v532
    %1761 = vmatprep.subr.bf16.mxu0 %v529
    %1762 = vmatpush1.bf16.msra.mxu0 %v528
    %1763 = vmatprep.subr.bf16.mxu0 %v525
    %1764 = vmatpush1.bf16.msra.mxu0 %v524
    %1765 = vmatprep.subr.bf16.mxu0 %v521
    %1766 = vmatpush1.bf16.msra.mxu0 %v520
    %1767 = vmatprep.subr.bf16.mxu0 %v517
    %1768 = vmatpush1.bf16.msra.mxu0 %v516
    %1769 = vmatprep.subr.bf16.mxu0 0
    %1770 = vmatpush2.bf16.msra.mxu0 0
    %1771 = vmatprep.subr.bf16.mxu0 0
    %1772 = vmatpush2.bf16.msra.mxu0 0
    %1773 = vmatprep.subr.bf16.mxu0 0
    %1774 = vmatpush2.bf16.msra.mxu0 0
    %1775 = vmatprep.subr.bf16.mxu0 0
    %1776 = vmatpush2.bf16.msra.mxu0 0
    %1777 = vmatprep.subr.bf16.mxu0 0
    %1778 = vmatpush2.bf16.msra.mxu0 0
    %1779 = vmatprep.subr.bf16.mxu0 0
    %1780 = vmatpush2.bf16.msra.mxu0 0
    %1781 = vmatprep.subr.bf16.mxu0 0
    %1782 = vmatpush2.bf16.msra.mxu0 0
    %1783 = vmatprep.subr.bf16.mxu0 0
    %1784 = vmatpush2.bf16.msra.mxu0 0
    %1785 = vmatprep.mubr.bf16.mxu0 0
    %1786 = vmatmul.mubr.bf16.gmra.mxu0 %v1711
    %v1787 = vpop.f32.mrf.mxu0
    %v1788 = vadd.f32 0.0, %v1787
    %v1789 = vpop.f32.mrf.mxu0
    %v1790 = vadd.f32 0.0, %v1789
    %v1791 = vpop.f32.mrf.mxu0
    %v1792 = vpop.f32.mrf.mxu0
    %1793 = vdwg.mxu0
    %v1794 = vadd.f32 %v1664, %v1747
    %v1795 = vadd.f32 %v1666, %v1749
    %v1796 = vadd.f32 %v1705, %v1788
    %v1797 = vadd.f32 %v1707, %v1790
    %v1798 = vmul.f32 %v1794, 0.5
    %v1799 = vtanh.pop %v1798
    %v1800 = vmul.f32 %v1799, 0.5
    %v1801 = vadd.f32 %v1800, 0.5
    %v1802 = vmul.f32 %v1795, 0.5
    %v1803 = vtanh.pop %v1802
    %v1804 = vmul.f32 %v1803, 0.5
    %v1805 = vadd.f32 %v1804, 0.5
    %v1806 = vtanh.pop %v1796
    %v1807 = vmul.f32 %v1797, 0.5
    %v1808 = vtanh.pop %v1807
    %v1809 = vmul.f32 %v1808, 0.5
    %v1810 = vadd.f32 %v1809, 0.5
    %v1811 = vmul.f32 %v1805, %v1624
    %v1812 = vmul.f32 %v1801, %v1806
    %v1813 = vadd.f32 %v1811, %v1812
    %v1814 = vtanh.pop %v1813
    %v1815 = vmul.f32 %v1810, %v1814
    %s1816 = scalar_lea.vmem [#allocation4], 28
    %v1817 = vld [vmem:[%s1816] sm:$0xf]
    %1818 = vmatprep.subr.bf16.mxu0 %v300
    %1819 = vmatpush1.bf16.msra.mxu0 %v299
    %1820 = vmatprep.subr.bf16.mxu0 %v296
    %1821 = vmatpush1.bf16.msra.mxu0 %v295
    %1822 = vmatprep.subr.bf16.mxu0 %v292
    %1823 = vmatpush1.bf16.msra.mxu0 %v291
    %1824 = vmatprep.subr.bf16.mxu0 %v288
    %1825 = vmatpush1.bf16.msra.mxu0 %v287
    %1826 = vmatprep.subr.bf16.mxu0 %v284
    %1827 = vmatpush1.bf16.msra.mxu0 %v283
    %1828 = vmatprep.subr.bf16.mxu0 %v280
    %1829 = vmatpush1.bf16.msra.mxu0 %v279
    %1830 = vmatprep.subr.bf16.mxu0 %v276
    %1831 = vmatpush1.bf16.msra.mxu0 %v275
    %1832 = vmatprep.subr.bf16.mxu0 %v272
    %1833 = vmatpush1.bf16.msra.mxu0 %v271
    %1834 = vmatprep.subr.bf16.mxu0 0
    %1835 = vmatpush2.bf16.msra.mxu0 0
    %1836 = vmatprep.subr.bf16.mxu0 0
    %1837 = vmatpush2.bf16.msra.mxu0 0
    %1838 = vmatprep.subr.bf16.mxu0 0
    %1839 = vmatpush2.bf16.msra.mxu0 0
    %1840 = vmatprep.subr.bf16.mxu0 0
    %1841 = vmatpush2.bf16.msra.mxu0 0
    %1842 = vmatprep.subr.bf16.mxu0 0
    %1843 = vmatpush2.bf16.msra.mxu0 0
    %1844 = vmatprep.subr.bf16.mxu0 0
    %1845 = vmatpush2.bf16.msra.mxu0 0
    %1846 = vmatprep.subr.bf16.mxu0 0
    %1847 = vmatpush2.bf16.msra.mxu0 0
    %1848 = vmatprep.subr.bf16.mxu0 0
    %1849 = vmatpush2.bf16.msra.mxu0 0
    %1850 = vmatprep.mubr.bf16.mxu0 0
    %1851 = vmatmul.mubr.bf16.gmra.mxu0 %v1817
    %v1852 = vpop.f32.mrf.mxu0
    %v1853 = vadd.f32 %v155, %v1852
    %v1854 = vpop.f32.mrf.mxu0
    %v1855 = vadd.f32 %v159, %v1854
    %v1856 = vpop.f32.mrf.mxu0
    %v1857 = vpop.f32.mrf.mxu0
    %1858 = vdwg.mxu0
    %1859 = vmatprep.subr.bf16.mxu0 %v302
    %1860 = vmatpush1.bf16.msra.mxu0 %v301
    %1861 = vmatprep.subr.bf16.mxu0 %v298
    %1862 = vmatpush1.bf16.msra.mxu0 %v297
    %1863 = vmatprep.subr.bf16.mxu0 %v294
    %1864 = vmatpush1.bf16.msra.mxu0 %v293
    %1865 = vmatprep.subr.bf16.mxu0 %v290
    %1866 = vmatpush1.bf16.msra.mxu0 %v289
    %1867 = vmatprep.subr.bf16.mxu0 %v286
    %1868 = vmatpush1.bf16.msra.mxu0 %v285
    %1869 = vmatprep.subr.bf16.mxu0 %v282
    %1870 = vmatpush1.bf16.msra.mxu0 %v281
    %1871 = vmatprep.subr.bf16.mxu0 %v278
    %1872 = vmatpush1.bf16.msra.mxu0 %v277
    %1873 = vmatprep.subr.bf16.mxu0 %v274
    %1874 = vmatpush1.bf16.msra.mxu0 %v273
    %1875 = vmatprep.subr.bf16.mxu0 0
    %1876 = vmatpush2.bf16.msra.mxu0 0
    %1877 = vmatprep.subr.bf16.mxu0 0
    %1878 = vmatpush2.bf16.msra.mxu0 0
    %1879 = vmatprep.subr.bf16.mxu0 0
    %1880 = vmatpush2.bf16.msra.mxu0 0
    %1881 = vmatprep.subr.bf16.mxu0 0
    %1882 = vmatpush2.bf16.msra.mxu0 0
    %1883 = vmatprep.subr.bf16.mxu0 0
    %1884 = vmatpush2.bf16.msra.mxu0 0
    %1885 = vmatprep.subr.bf16.mxu0 0
    %1886 = vmatpush2.bf16.msra.mxu0 0
    %1887 = vmatprep.subr.bf16.mxu0 0
    %1888 = vmatpush2.bf16.msra.mxu0 0
    %1889 = vmatprep.subr.bf16.mxu0 0
    %1890 = vmatpush2.bf16.msra.mxu0 0
    %1891 = vmatprep.mubr.bf16.mxu0 0
    %1892 = vmatmul.mubr.bf16.gmra.mxu0 %v1817
    %v1893 = vpop.f32.mrf.mxu0
    %v1894 = vadd.f32 %v163, %v1893
    %v1895 = vpop.f32.mrf.mxu0
    %v1896 = vadd.f32 %v167, %v1895
    %v1897 = vpop.f32.mrf.mxu0
    %v1898 = vpop.f32.mrf.mxu0
    %1899 = vdwg.mxu0
    %v1900 = vpack.c.bf16 %v1815, %v1815
    %1901 = vmatprep.subr.bf16.mxu0 %v543
    %1902 = vmatpush1.bf16.msra.mxu0 %v542
    %1903 = vmatprep.subr.bf16.mxu0 %v539
    %1904 = vmatpush1.bf16.msra.mxu0 %v538
    %1905 = vmatprep.subr.bf16.mxu0 %v535
    %1906 = vmatpush1.bf16.msra.mxu0 %v534
    %1907 = vmatprep.subr.bf16.mxu0 %v531
    %1908 = vmatpush1.bf16.msra.mxu0 %v530
    %1909 = vmatprep.subr.bf16.mxu0 %v527
    %1910 = vmatpush1.bf16.msra.mxu0 %v526
    %1911 = vmatprep.subr.bf16.mxu0 %v523
    %1912 = vmatpush1.bf16.msra.mxu0 %v522
    %1913 = vmatprep.subr.bf16.mxu0 %v519
    %1914 = vmatpush1.bf16.msra.mxu0 %v518
    %1915 = vmatprep.subr.bf16.mxu0 %v515
    %1916 = vmatpush1.bf16.msra.mxu0 %v514
    %1917 = vmatprep.subr.bf16.mxu0 0
    %1918 = vmatpush2.bf16.msra.mxu0 0
    %1919 = vmatprep.subr.bf16.mxu0 0
    %1920 = vmatpush2.bf16.msra.mxu0 0
    %1921 = vmatprep.subr.bf16.mxu0 0
    %1922 = vmatpush2.bf16.msra.mxu0 0
    %1923 = vmatprep.subr.bf16.mxu0 0
    %1924 = vmatpush2.bf16.msra.mxu0 0
    %1925 = vmatprep.subr.bf16.mxu0 0
    %1926 = vmatpush2.bf16.msra.mxu0 0
    %1927 = vmatprep.subr.bf16.mxu0 0
    %1928 = vmatpush2.bf16.msra.mxu0 0
    %1929 = vmatprep.subr.bf16.mxu0 0
    %1930 = vmatpush2.bf16.msra.mxu0 0
    %1931 = vmatprep.subr.bf16.mxu0 0
    %1932 = vmatpush2.bf16.msra.mxu0 0
    %1933 = vmatprep.mubr.bf16.mxu0 0
    %1934 = vmatmul.mubr.bf16.gmra.mxu0 %v1900
    %v1935 = vpop.f32.mrf.mxu0
    %v1936 = vadd.f32 0.0, %v1935
    %v1937 = vpop.f32.mrf.mxu0
    %v1938 = vadd.f32 0.0, %v1937
    %v1939 = vpop.f32.mrf.mxu0
    %v1940 = vpop.f32.mrf.mxu0
    %1941 = vdwg.mxu0
    %1942 = vmatprep.subr.bf16.mxu0 %v545
    %1943 = vmatpush1.bf16.msra.mxu0 %v544
    %1944 = vmatprep.subr.bf16.mxu0 %v541
    %1945 = vmatpush1.bf16.msra.mxu0 %v540
    %1946 = vmatprep.subr.bf16.mxu0 %v537
    %1947 = vmatpush1.bf16.msra.mxu0 %v536
    %1948 = vmatprep.subr.bf16.mxu0 %v533
    %1949 = vmatpush1.bf16.msra.mxu0 %v532
    %1950 = vmatprep.subr.bf16.mxu0 %v529
    %1951 = vmatpush1.bf16.msra.mxu0 %v528
    %1952 = vmatprep.subr.bf16.mxu0 %v525
    %1953 = vmatpush1.bf16.msra.mxu0 %v524
    %1954 = vmatprep.subr.bf16.mxu0 %v521
    %1955 = vmatpush1.bf16.msra.mxu0 %v520
    %1956 = vmatprep.subr.bf16.mxu0 %v517
    %1957 = vmatpush1.bf16.msra.mxu0 %v516
    %1958 = vmatprep.subr.bf16.mxu0 0
    %1959 = vmatpush2.bf16.msra.mxu0 0
    %1960 = vmatprep.subr.bf16.mxu0 0
    %1961 = vmatpush2.bf16.msra.mxu0 0
    %1962 = vmatprep.subr.bf16.mxu0 0
    %1963 = vmatpush2.bf16.msra.mxu0 0
    %1964 = vmatprep.subr.bf16.mxu0 0
    %1965 = vmatpush2.bf16.msra.mxu0 0
    %1966 = vmatprep.subr.bf16.mxu0 0
    %1967 = vmatpush2.bf16.msra.mxu0 0
    %1968 = vmatprep.subr.bf16.mxu0 0
    %1969 = vmatpush2.bf16.msra.mxu0 0
    %1970 = vmatprep.subr.bf16.mxu0 0
    %1971 = vmatpush2.bf16.msra.mxu0 0
    %1972 = vmatprep.subr.bf16.mxu0 0
    %1973 = vmatpush2.bf16.msra.mxu0 0
    %1974 = vmatprep.mubr.bf16.mxu0 0
    %1975 = vmatmul.mubr.bf16.gmra.mxu0 %v1900
    %v1976 = vpop.f32.mrf.mxu0
    %v1977 = vadd.f32 0.0, %v1976
    %v1978 = vpop.f32.mrf.mxu0
    %v1979 = vadd.f32 0.0, %v1978
    %v1980 = vpop.f32.mrf.mxu0
    %v1981 = vpop.f32.mrf.mxu0
    %1982 = vdwg.mxu0
    %v1983 = vadd.f32 %v1853, %v1936
    %v1984 = vadd.f32 %v1855, %v1938
    %v1985 = vadd.f32 %v1894, %v1977
    %v1986 = vadd.f32 %v1896, %v1979
    %v1987 = vmul.f32 %v1983, 0.5
    %v1988 = vtanh.pop %v1987
    %v1989 = vmul.f32 %v1988, 0.5
    %v1990 = vadd.f32 %v1989, 0.5
    %v1991 = vmul.f32 %v1984, 0.5
    %v1992 = vtanh.pop %v1991
    %v1993 = vmul.f32 %v1992, 0.5
    %v1994 = vadd.f32 %v1993, 0.5
    %v1995 = vtanh.pop %v1985
    %v1996 = vmul.f32 %v1986, 0.5
    %v1997 = vtanh.pop %v1996
    %v1998 = vmul.f32 %v1997, 0.5
    %v1999 = vadd.f32 %v1998, 0.5
    %v2000 = vmul.f32 %v1994, %v1813
    %v2001 = vmul.f32 %v1990, %v1995
    %v2002 = vadd.f32 %v2000, %v2001
    %v2003 = vtanh.pop %v2002
    %v2004 = vmul.f32 %v1999, %v2003
    %2005 = vst [vmem:[#allocation2] sm:$0xff] %v2004
    %2006 = vst [vmem:[#allocation3] sm:$0xff] %v2002
    // Predicated region
    $region46: #{tpu_custom_call.1} parent=1 // pred_check
      %p2007 = pneg %p80
    $region47: #{tpu_custom_call.1} parent=1 // pred_check_branch
      %2009 = sbr.rel (%p2007) target = $region49
    $region48: #{tpu_custom_call.1} parent=1 // pred_region
      %v2010 = vld [vmem:[#allocation2] sm:$0xff]
      %v2011 = vpack.c.bf16 %v2010, %v2010
      %v2012 = vld [vmem:[#allocation10] sm:$0xf]
      %v2013 = vld [vmem:[#allocation10 + $0x4] sm:$0xf]
      %v2014 = vld [vmem:[#allocation10 + $0x8] sm:$0xf]
      %v2015 = vld [vmem:[#allocation10 + $0xc] sm:$0xf]
      %v2016 = vld [vmem:[#allocation10 + $0x10] sm:$0xf]
      %v2017 = vld [vmem:[#allocation10 + $0x14] sm:$0xf]
      %v2018 = vld [vmem:[#allocation10 + $0x18] sm:$0xf]
      %v2019 = vld [vmem:[#allocation10 + $0x1c] sm:$0xf]
      %v2020 = vld [vmem:[#allocation10 + $0x20] sm:$0xf]
      %v2021 = vld [vmem:[#allocation10 + $0x24] sm:$0xf]
      %v2022 = vld [vmem:[#allocation10 + $0x28] sm:$0xf]
      %v2023 = vld [vmem:[#allocation10 + $0x2c] sm:$0xf]
      %v2024 = vld [vmem:[#allocation10 + $0x30] sm:$0xf]
      %v2025 = vld [vmem:[#allocation10 + $0x34] sm:$0xf]
      %v2026 = vld [vmem:[#allocation10 + $0x38] sm:$0xf]
      %v2027 = vld [vmem:[#allocation10 + $0x3c] sm:$0xf]
      %v2028 = vld [vmem:[%s5] sm:$0x1]
      %v2030 = vlaneseq
      %v2031 = vshrl.u32 %v2030, 7
      %v2032 = vsub.s32 0, %v2031
      %v2033 = vrot.slane %v2028, %v2032
      %v2051 = vunpack.c.l.b16 %v2012
      %v2052 = vunpack.c.l.b16 %v2013
      %v2053 = vunpack.c.l.b16 %v2014
      %v2054 = vunpack.c.l.b16 %v2015
      %v2055 = vunpack.c.l.b16 %v2016
      %v2056 = vunpack.c.l.b16 %v2017
      %v2057 = vunpack.c.l.b16 %v2018
      %v2058 = vunpack.c.l.b16 %v2019
      %v2059 = vunpack.c.l.b16 %v2020
      %v2060 = vunpack.c.l.b16 %v2021
      %v2061 = vunpack.c.l.b16 %v2022
      %v2062 = vunpack.c.l.b16 %v2023
      %v2063 = vunpack.c.l.b16 %v2024
      %v2064 = vunpack.c.l.b16 %v2025
      %v2065 = vunpack.c.l.b16 %v2026
      %v2066 = vunpack.c.l.b16 %v2027
      %v2067 = vpack.c.b16 %v2052, %v2051
      %v2068 = vpack.c.b16 %v2054, %v2053
      %v2069 = vpack.c.b16 %v2056, %v2055
      %v2070 = vpack.c.b16 %v2058, %v2057
      %v2071 = vpack.c.b16 %v2060, %v2059
      %v2072 = vpack.c.b16 %v2062, %v2061
      %v2073 = vpack.c.b16 %v2064, %v2063
      %v2074 = vpack.c.b16 %v2066, %v2065
      %2083 = vmatprep.subr.bf16.mxu0 0
      %2084 = vmatpush1.bf16.msra.mxu0 %v2074
      %2085 = vmatprep.subr.bf16.mxu0 0
      %2086 = vmatpush1.bf16.msra.mxu0 %v2073
      %2087 = vmatprep.subr.bf16.mxu0 0
      %2088 = vmatpush1.bf16.msra.mxu0 %v2072
      %2089 = vmatprep.subr.bf16.mxu0 0
      %2090 = vmatpush1.bf16.msra.mxu0 %v2071
      %2091 = vmatprep.subr.bf16.mxu0 0
      %2092 = vmatpush1.bf16.msra.mxu0 %v2070
      %2093 = vmatprep.subr.bf16.mxu0 0
      %2094 = vmatpush1.bf16.msra.mxu0 %v2069
      %2095 = vmatprep.subr.bf16.mxu0 0
      %2096 = vmatpush1.bf16.msra.mxu0 %v2068
      %2097 = vmatprep.subr.bf16.mxu0 0
      %2098 = vmatpush1.bf16.msra.mxu0 %v2067
      %2099 = vmatprep.subr.bf16.mxu0 0
      %2100 = vmatpush2.bf16.msra.mxu0 0
      %2101 = vmatprep.subr.bf16.mxu0 0
      %2102 = vmatpush2.bf16.msra.mxu0 0
      %2103 = vmatprep.subr.bf16.mxu0 0
      %2104 = vmatpush2.bf16.msra.mxu0 0
      %2105 = vmatprep.subr.bf16.mxu0 0
      %2106 = vmatpush2.bf16.msra.mxu0 0
      %2107 = vmatprep.subr.bf16.mxu0 0
      %2108 = vmatpush2.bf16.msra.mxu0 0
      %2109 = vmatprep.subr.bf16.mxu0 0
      %2110 = vmatpush2.bf16.msra.mxu0 0
      %2111 = vmatprep.subr.bf16.mxu0 0
      %2112 = vmatpush2.bf16.msra.mxu0 0
      %2113 = vmatprep.subr.bf16.mxu0 0
      %2114 = vmatpush2.bf16.msra.mxu0 0
      %2115 = vmatprep.mubr.bf16.mxu0 0
      %2116 = vmatmul.mubr.bf16.gmra.mxu0 %v2011
      %v2117 = vpop.f32.mrf.mxu0
      %v2118 = vadd.f32 %v2033, %v2117
      %v2119 = vpop.f32.mrf.mxu0
      %v2120 = vpop.f32.mrf.mxu0
      %v2121 = vpop.f32.mrf.mxu0
      %2122 = vdwg.mxu0
      %2123 = vst [vmem:[#allocation12] sm:$0xff] %v2118
    $region49: #{tpu_custom_call.1} parent=1 // pred_fallthru
      _
    // Predicated region
    $region50: #{tpu_custom_call.1} parent=1 // pred_check
      _
    $region51: #{tpu_custom_call.1} parent=1 // pred_check_branch
      %2125 = sbr.rel (0) target = $region53
    $region52: #{tpu_custom_call.1} parent=1 // pred_region
      %s2127 = ssub.s32 128, 128
      %2128 = vsyncadd [#allocation6], %s2127
      %s2130 = sshll.u32 [#allocation12], 4
      %s2131 = int_to_ptr.vmem [resolvable:$true] %s2130
      %2133 = dma.vmem_to_hbm [thread:$0]  %s2131, 128, %s6, [#allocation6]
    $region53: #{tpu_custom_call.1} parent=1 // pred_fallthru
      _
    // Predicated region
    $region54: #{tpu_custom_call.1} parent=1 // pred_check
      _
    $region55: #{tpu_custom_call.1} parent=1 // pred_check_branch
      %2135 = sbr.rel (0) target = $region57
    $region56: #{tpu_custom_call.1} parent=1 // pred_region
      %2136 = dma.done [#allocation6], 128
    $region57: #{tpu_custom_call.1} parent=1 // pred_fallthru
      _
    %2137 = vsyncpa [#allocation5], 1
    %2138 = vsyncpa [#allocation8], 1
    %2139 = vsyncpa [#allocation11], 1
    %2140 = vsyncpa [#allocation6], 1

</llo_original>
